<compile_context>
chip_gen: v6e
topology: v6e:2x2x1
jax: 0.10.0
libtpu: 0.0.40
codegen_flags: <defaults>
</compile_context>

<pallas_src>
import numpy as np
import jax
import jax.numpy as jnp
from jax.experimental import pallas as pl
from jax.experimental.pallas import tpu as pltpu


_VMEM_LIMIT = 48 * 1024 * 1024     # < v7x 64 MiB physical; > v5e/v6e defaults
_VMEM_BUDGET = 8 * 1024 * 1024     # rough per-step scratch/IO budget for Bt


def _pick_batch_tile(n, bytes_per_sample, budget=_VMEM_BUDGET, max_bt=32):
    """Largest divisor of n fitting the VMEM budget; prefer an even number of
    grid steps (v7x megacore shards the batch grid across 2 TensorCores)."""
    divs = [d for d in range(1, n + 1) if n % d == 0 and d <= max_bt]
    if not divs:
        divs = [1]
    fit = [d for d in divs if d * bytes_per_sample <= budget] or [divs[0]]
    even = [d for d in fit if (n // d) % 2 == 0]
    return max(even) if even else max(fit)


# ---------------------------------------------------------------------------
# Shared GroupNorm(groups==channels) + LeakyReLU(0.01) + AvgPool2d(2,2) tail.
# acc2d: (Bt*Hc*Wc, Cout) f32 conv output (bias-free; GN cancels the bias).
# ---------------------------------------------------------------------------
def _gn_act_pool(acc2d, Bt, Hc, Wc, gamma_ref, beta_ref, y_scr, o_ref):
    Cout = acc2d.shape[-1]
    HW = Hc * Wc
    Ho, Wo = Hc // 2, Wc // 2

    acc = acc2d.reshape(Bt, HW, Cout)
    inv = 1.0 / float(HW)
    # One-pass statistics: var = E[x^2] - mean^2 (saves a full VPU traversal).
    s1 = jnp.sum(acc, axis=1, keepdims=True)
    s2 = jnp.sum(acc * acc, axis=1, keepdims=True)
    mean = s1 * inv
    var = jnp.maximum(s2 * inv - mean * mean, 0.0)
    y = (acc - mean) * jax.lax.rsqrt(var + 1e-5)
    y = y * gamma_ref[...] + beta_ref[...]
    y = jnp.where(y > 0, y, 0.01 * y)          # LeakyReLU(0.01)

    if Wc % 8 == 0:
        y_scr[...] = y.reshape(Bt, Hc, Wc, Cout)     # layout-preserving store
    else:
        # Rare (MNIST-shaped) path: sub-8 W split is not layout-preserving.
        for h in range(Hc):
            y_scr[:, h, :, :] = y[:, h * Wc:(h + 1) * Wc, :]

    # AvgPool2d(2,2): strided VMEM reads pair W columns; a leading-dim reshape
    # pairs H rows.  No second scratch buffer.
    lo = y_scr[:, 0:2 * Ho, pl.ds(0, Wo, stride=2), :]
    hi = y_scr[:, 0:2 * Ho, pl.ds(1, Wo, stride=2), :]
    hp = (lo + hi).reshape(Bt * Ho, 2, Wo, Cout)
    vp = (hp[:, 0, :, :] + hp[:, 1, :, :]).reshape(Bt, Ho, Wo, Cout)
    o_ref[...] = (0.25 * vp).astype(o_ref.dtype)


# ---------------------------------------------------------------------------
# Lane-dense (Cin == 128) block: in-kernel halo pad + 9 accumulating MXU dots.
# ---------------------------------------------------------------------------
def _direct_block_kernel(x_ref, w_ref, gamma_ref, beta_ref, o_ref,
                         xp_scr, y_scr):
    Bt, H, W, Cin = x_ref.shape
    Hp, Wp = H + 2, W + 2                       # pad == 1 for all these layers
    Hc, Wc = H, W

    # Zero only the halo ring (interior is fully overwritten every step).
    zrow = jnp.zeros((Bt, 1, Wp, Cin), xp_scr.dtype)
    xp_scr[:, 0:1, :, :] = zrow
    xp_scr[:, Hp - 1:Hp, :, :] = zrow
    zcol = jnp.zeros((Bt, H, 1, Cin), xp_scr.dtype)
    xp_scr[:, 1:1 + H, 0:1, :] = zcol
    xp_scr[:, 1:1 + H, Wp - 1:Wp, :] = zcol
    xp_scr[:, 1:1 + H, 1:1 + W, :] = x_ref[...].astype(xp_scr.dtype)

    # Conv2d(3x3, pad=1): 9 bf16 MXU dots with K = Cin, f32 accumulation.
    # Conv bias omitted: GroupNorm(groups==channels) mean-sub cancels it.
    acc = None
    for ky in range(3):
        for kx in range(3):
            patch = xp_scr[:, ky:ky + Hc, kx:kx + Wc, :].reshape(
                Bt * Hc * Wc, Cin)
            d = jnp.dot(patch, w_ref[ky * 3 + kx],
                        preferred_element_type=jnp.float32)
            acc = d if acc is None else acc + d

    _gn_act_pool(acc, Bt, Hc, Wc, gamma_ref, beta_ref, y_scr, o_ref)


def conv_block_direct(x_nhwc, w9, gamma, beta):
    """Cin == Cout == 128 layers: conv(3x3, pad=1) + GN + LeakyReLU + pool."""
    N, H, W, Cin = x_nhwc.shape
    Cout = w9.shape[-1]
    assert Cin % 128 == 0 and Cout % 128 == 0
    Hp, Wp = H + 2, W + 2
    Hc, Wc = H, W
    Ho, Wo = Hc // 2, Wc // 2
    per_sample = (Hp * Wp * Cin * 2            # xp_scr (bf16)
                  + Hc * Wc * Cout * 8         # f32 acc value + f32 y_scr
                  + 2 * H * W * Cin * 2        # double-buffered input block
                  + 2 * Ho * Wo * Cout * 2)    # double-buffered output block
    Bt = _pick_batch_tile(N, per_sample)

    return pl.pallas_call(
        _direct_block_kernel,
        out_shape=jax.ShapeDtypeStruct((N, Ho, Wo, Cout), jnp.bfloat16),
        grid_spec=pltpu.PrefetchScalarGridSpec(
            num_scalar_prefetch=0,
            grid=(N // Bt,),
            in_specs=[
                pl.BlockSpec((Bt, H, W, Cin), lambda n: (n, 0, 0, 0)),
                pl.BlockSpec((9, Cin, Cout), lambda n: (0, 0, 0)),
                pl.BlockSpec((1, Cout), lambda n: (0, 0)),
                pl.BlockSpec((1, Cout), lambda n: (0, 0)),
            ],
            out_specs=pl.BlockSpec((Bt, Ho, Wo, Cout), lambda n: (n, 0, 0, 0)),
            scratch_shapes=[
                pltpu.VMEM((Bt, Hp, Wp, Cin), jnp.bfloat16),
                pltpu.VMEM((Bt, Hc, Wc, Cout), jnp.float32),
            ]),
        compiler_params=pltpu.CompilerParams(
            dimension_semantics=("parallel",),
            vmem_limit_bytes=_VMEM_LIMIT),
    )(x_nhwc, w9, gamma, beta)


# ---------------------------------------------------------------------------
# First layer (lane-sparse Cin): pre-im2col'd input -> single MXU matmul.
# ---------------------------------------------------------------------------
def _make_matmul_block_kernel(Hc, Wc):
    def kernel(xc_ref, w_ref, gamma_ref, beta_ref, o_ref, y_scr):
        Bt, HW, Kp = xc_ref.shape
        acc = jnp.dot(xc_ref[...].reshape(Bt * HW, Kp), w_ref[...],
                      preferred_element_type=jnp.float32)
        _gn_act_pool(acc, Bt, Hc, Wc, gamma_ref, beta_ref, y_scr, o_ref)
    return kernel


def conv_block_matmul(x_col, w_flat, gamma, beta, Hc, Wc):
    N, HW, Kp = x_col.shape
    Cout = w_flat.shape[-1]
    Ho, Wo = Hc // 2, Wc // 2
    per_sample = (2 * HW * max(Kp, 128) * 2    # double-buffered, lane-padded
                  + HW * Cout * 8              # f32 acc value + f32 y_scr
                  + 2 * Ho * Wo * Cout * 2)
    Bt = _pick_batch_tile(N, per_sample, max_bt=16)

    return pl.pallas_call(
        _make_matmul_block_kernel(Hc, Wc),
        out_shape=jax.ShapeDtypeStruct((N, Ho, Wo, Cout), jnp.bfloat16),
        grid_spec=pltpu.PrefetchScalarGridSpec(
            num_scalar_prefetch=0,
            grid=(N // Bt,),
            in_specs=[
                pl.BlockSpec((Bt, HW, Kp), lambda n: (n, 0, 0)),
                pl.BlockSpec((Kp, Cout), lambda n: (0, 0)),
                pl.BlockSpec((1, Cout), lambda n: (0, 0)),
                pl.BlockSpec((1, Cout), lambda n: (0, 0)),
            ],
            out_specs=pl.BlockSpec((Bt, Ho, Wo, Cout), lambda n: (n, 0, 0, 0)),
            scratch_shapes=[
                pltpu.VMEM((Bt, Hc, Wc, Cout), jnp.float32),
            ]),
        compiler_params=pltpu.CompilerParams(
            dimension_semantics=("parallel",),
            vmem_limit_bytes=_VMEM_LIMIT),
    )(x_col, w_flat, gamma, beta)


def _im2col_first_layer(x_nhwc, pad, k_pad):
    """Wrapper-side (XLA) patch extraction for the lane-sparse first layer.
    Layout plumbing only; the conv matmul itself runs inside the kernel."""
    N, H, W, Cin = x_nhwc.shape
    Hc, Wc = H + 2 * pad - 2, W + 2 * pad - 2
    xp = jnp.pad(x_nhwc, ((0, 0), (pad, pad), (pad, pad), (0, 0)))
    cols = [xp[:, ky:ky + Hc, kx:kx + Wc, :]
            for ky in range(3) for kx in range(3)]
    xc = jnp.concatenate(cols, axis=-1)              # (N, Hc, Wc, 9*Cin)
    k = 9 * Cin
    if k_pad > k:
        xc = jnp.pad(xc, ((0, 0), (0, 0), (0, 0), (0, k_pad - k)))
    return xc.reshape(N, Hc * Wc, k_pad)


# ---------------------------------------------------------------------------
# All task heads fused into one lane-dense matmul, tiled over batch rows.
# ---------------------------------------------------------------------------
def _heads_kernel(x_ref, w_ref, b_ref, o_ref):
    o_ref[...] = (jnp.dot(x_ref[...], w_ref[...],
                          preferred_element_type=jnp.float32)
                  + b_ref[...]).astype(o_ref.dtype)


def _pick_row_tile(n, max_rows=256):
    # Row tile must be a multiple of 8 or the full batch (TPU (8,128) rule);
    # prefer an even number of grid steps for v7x's 2 TensorCores.
    cands = [d for d in range(1, n + 1)
             if n % d == 0 and d <= max_rows and (d % 8 == 0 or d == n)]
    if not cands:
        return n
    even = [d for d in cands if (n // d) % 2 == 0]
    return max(even) if even else max(cands)


def fused_heads(feat, w_all, b_all):
    N, F = feat.shape
    Np = w_all.shape[1]
    Bm = _pick_row_tile(N)
    return pl.pallas_call(
        _heads_kernel,
        out_shape=jax.ShapeDtypeStruct((N, Np), jnp.float32),
        grid_spec=pltpu.PrefetchScalarGridSpec(
            num_scalar_prefetch=0,
            grid=(N // Bm,),
            in_specs=[
                pl.BlockSpec((Bm, F), lambda i: (i, 0)),
                pl.BlockSpec((F, Np), lambda i: (0, 0)),
                pl.BlockSpec((1, Np), lambda i: (0, 0)),
            ],
            out_specs=pl.BlockSpec((Bm, Np), lambda i: (i, 0)),
        ),
        compiler_params=pltpu.CompilerParams(
            dimension_semantics=("parallel",),
            vmem_limit_bytes=_VMEM_LIMIT),
    )(feat, w_all, b_all)


# ---------------------------------------------------------------------------
# Parameter init (torch-equivalent layout) and kernel-ready packing.
# ---------------------------------------------------------------------------
def init_params(key, channel, im_size, taskcla, net_width=128, net_depth=3):
    params = {"features": [], "heads": []}
    in_ch = channel
    H, W = im_size
    if H == 28:                      # mirrors Net2._make_layers bookkeeping
        H, W = 32, 32
    for d in range(net_depth):
        key, k1, k2 = jax.random.split(key, 3)
        fan_in = in_ch * 9
        # weights stored as (ky, kx, Cin, Cout) == torch (Cout, Cin, ky, kx).T
        w = jax.random.normal(k1, (3, 3, in_ch, net_width),
                              jnp.float32) / np.sqrt(fan_in)
        b = jax.random.normal(k2, (net_width,), jnp.float32) * 0.01
        g = jnp.ones((net_width,), jnp.float32)      # GroupNorm gamma
        bt = jnp.zeros((net_width,), jnp.float32)    # GroupNorm beta
        params["features"].append((w, b, g, bt))
        in_ch = net_width
        H //= 2
        W //= 2
    num_feat = net_width * H * W
    for t, n in taskcla:
        key, k1, k2 = jax.random.split(key, 3)
        w = jax.random.normal(k1, (num_feat, n),
                              jnp.float32) / np.sqrt(num_feat)
        b = jax.random.normal(k2, (n,), jnp.float32) * 0.01
        params["heads"].append((w, b))
    return params


def pack_params(params, channel, im_size):
    """Kernel-ready params: first layer as a (Kp, Cout) matmul weight, later
    layers as (9, Cin, Cout) bf16 tap stacks, fused + row-permuted heads."""
    H, W = im_size
    if H == 28:                      # mirror Net2._make_layers bookkeeping
        H, W = 32, 32
    feats = params["features"]

    # ---- first layer: lane-sparse Cin -> pre-im2col'd single-matmul form ----
    w0, b0, g0, bt0 = feats[0]
    pad0 = 3 if channel == 1 else 1
    Cin0, Cout = int(w0.shape[2]), int(w0.shape[3])
    k = 9 * Cin0
    k_pad = ((k + 7) // 8) * 8
    w0_flat = w0.reshape(k, Cout)
    if k_pad > k:
        w0_flat = jnp.pad(w0_flat, ((0, k_pad - k), (0, 0)))
    Hc0, Wc0 = H + 2 * pad0 - 2, W + 2 * pad0 - 2
    # Conv bias is dropped everywhere: GroupNorm here always has
    # groups == channels, so its per-channel spatial mean-sub cancels a
    # per-channel constant offset exactly.
    assert g0.shape == (Cout,) and bt0.shape == (Cout,)
    first = dict(w=w0_flat.astype(jnp.bfloat16),
                 gamma=g0.reshape(1, -1).astype(jnp.float32),
                 beta=bt0.reshape(1, -1).astype(jnp.float32),
                 pad=pad0, Hc=Hc0, Wc=Wc0, k_pad=k_pad)
    H, W, C = Hc0 // 2, Wc0 // 2, Cout

    # ---- remaining layers: lane-dense direct conv blocks (pad == 1) ---------
    rest = []
    for (w, b, g, bt) in feats[1:]:
        Cin, Co = int(w.shape[2]), int(w.shape[3])
        assert Cin == C and g.shape == (Co,)
        rest.append((w.reshape(9, Cin, Co).astype(jnp.bfloat16),
                     g.reshape(1, -1).astype(jnp.float32),
                     bt.reshape(1, -1).astype(jnp.float32)))
        H, W, C = H // 2, W // 2, Co
    f_actual = C * H * W

    # ---- heads: permute rows NCHW-flatten -> NHWC-flatten, fuse, lane-pad ---
    hh = np.arange(H)[:, None, None]
    ww = np.arange(W)[None, :, None]
    cc = np.arange(C)[None, None, :]
    perm = (cc * (H * W) + hh * W + ww).reshape(-1)
    ws, bs, sizes = [], [], []
    for (w, b) in params["heads"]:
        assert w.shape[0] == f_actual, "head feature size mismatch"
        ws.append(jnp.asarray(w)[perm, :])
        bs.append(b)
        sizes.append(int(w.shape[1]))
    w_all = jnp.concatenate(ws, axis=1)
    b_all = jnp.concatenate(bs)
    n_pad = (-w_all.shape[1]) % 128
    if n_pad:
        w_all = jnp.pad(w_all, ((0, 0), (0, n_pad)))
        b_all = jnp.pad(b_all, (0, n_pad))
    return {"first": first, "rest": rest,
            "w_heads": w_all.astype(jnp.bfloat16),
            "b_heads": b_all.reshape(1, -1).astype(jnp.float32),
            "head_sizes": sizes}


# ---------------------------------------------------------------------------
# Net2.forward
# ---------------------------------------------------------------------------
def net2_forward(x_nchw, packed):
    # NCHW (PyTorch convention) -> NHWC, bf16 inter-block activations.
    x = jnp.transpose(x_nchw, (0, 2, 3, 1)).astype(jnp.bfloat16)
    first = packed["first"]
    x_col = _im2col_first_layer(x, first["pad"], first["k_pad"])
    x = conv_block_matmul(x_col, first["w"], first["gamma"], first["beta"],
                          first["Hc"], first["Wc"])
    for (w9, gamma, beta) in packed["rest"]:
        x = conv_block_direct(x, w9, gamma, beta)
    feat = x.reshape(x.shape[0], -1)     # NHWC flatten; head rows pre-permuted
    logits = fused_heads(feat, packed["w_heads"], packed["b_heads"])
    ys, off = [], 0
    for n in packed["head_sizes"]:
        ys.append(logits[:, off:off + n])
        off += n
    return ys


# ---------------------------------------------------------------------------
# Pure-JAX f32 reference (exact PyTorch forward semantics, incl. conv bias).
# ---------------------------------------------------------------------------
def net2_reference(x_nchw, params, channel):
    x = x_nchw.astype(jnp.float32)
    for d, (w, b, g, bt) in enumerate(params["features"]):
        pad = 3 if (channel == 1 and d == 0) else 1
        y = jax.lax.conv_general_dilated(
            x, w, window_strides=(1, 1), padding=[(pad, pad), (pad, pad)],
            dimension_numbers=("NCHW", "HWIO", "NCHW"))
        y = y + b.reshape(1, -1, 1, 1)
        mean = jnp.mean(y, axis=(2, 3), keepdims=True)
        var = jnp.mean((y - mean) ** 2, axis=(2, 3), keepdims=True)
        y = (y - mean) * jax.lax.rsqrt(var + 1e-5)
        y = y * g.reshape(1, -1, 1, 1) + bt.reshape(1, -1, 1, 1)
        y = jnp.where(y > 0, y, 0.01 * y)
        n_, c_, h_, w_ = y.shape
        y = y[:, :, :h_ // 2 * 2, :w_ // 2 * 2]
        x = y.reshape(n_, c_, h_ // 2, 2, w_ // 2, 2).mean(axis=(3, 5))
    out = x.reshape(x.shape[0], -1)
    return [out @ w + b for (w, b) in params["heads"]]


if __name__ == "__main__":
    key = jax.random.PRNGKey(0)
    inputsize = (3, 16, 16)            # (C, H, W), small for the example
    taskcla = [(0, 5), (1, 7)]
    N = 2

    k_in, k_p = jax.random.split(key)
    x = jax.random.normal(k_in, (N,) + inputsize, jnp.float32)
    params = init_params(k_p, inputsize[0],
                         (inputsize[1], inputsize[2]), taskcla)
    packed = pack_params(params, inputsize[0],
                         (inputsize[1], inputsize[2]))

    fwd = jax.jit(lambda xx: net2_forward(xx, packed))
    ys = jax.block_until_ready(fwd(x))

    assert len(ys) == len(taskcla)
    assert ys[0].shape == (N, 5) and ys[0].dtype == jnp.float32
    assert ys[1].shape == (N, 7) and ys[1].dtype == jnp.float32
    assert all(bool(jnp.all(jnp.isfinite(y))) for y in ys)

    # Tolerance check vs. an f32 reference (kernel uses bf16 MXU inputs and
    # bf16 inter-block activations, so allow a loose bound).
    yr = net2_reference(x, params, inputsize[0])
    for a, r in zip(ys, yr):
        scale = max(1.0, float(jnp.max(jnp.abs(r))))
        err = float(jnp.max(jnp.abs(a.astype(jnp.float32) - r)))
        assert err < 0.1 * scale, f"mismatch vs reference: {err} (scale {scale})"

    print("KERNEL_OK")
</pallas_src>

<mosaic_0001>
module attributes {stable_mosaic.version = 11 : i64} {
  func.func @kernel(%arg0: i32, %arg1: memref<1x256x32xbf16, #tpu.memory_space<vmem>>, %arg2: memref<32x128xbf16, #tpu.memory_space<vmem>>, %arg3: memref<1x128xf32, #tpu.memory_space<vmem>>, %arg4: memref<1x128xf32, #tpu.memory_space<vmem>>, %arg5: memref<1x8x8x128xbf16, #tpu.memory_space<vmem>>, %arg6: memref<1x16x16x128xf32, #tpu.memory_space<vmem>>) attributes {dimension_semantics = [#tpu.dimension_semantics<parallel>], iteration_bounds = array<i64: 2>, scalar_prefetch = 0 : i64, scratch_operands = 1 : i64, tpu.core_type = #tpu.core_type<tc>, window_params = [{transform_indices = @transform_0, window_bounds = array<i64: 1, 256, 32>}, {pipeline_mode = #tpu.pipeline_mode<synchronous>, transform_indices = @transform_1, window_bounds = array<i64: 32, 128>}, {pipeline_mode = #tpu.pipeline_mode<synchronous>, transform_indices = @transform_2, window_bounds = array<i64: 1, 128>}, {pipeline_mode = #tpu.pipeline_mode<synchronous>, transform_indices = @transform_3, window_bounds = array<i64: 1, 128>}, {transform_indices = @transform_4, window_bounds = array<i64: 1, 8, 8, 128>}]} {
    %c0 = arith.constant 0 : index
    %c0_0 = arith.constant 0 : index
    %c0_1 = arith.constant 0 : index
    %0 = vector.load %arg1[%c0, %c0_0, %c0_1] : memref<1x256x32xbf16, #tpu.memory_space<vmem>>, vector<1x256x32xbf16>
    %1 = vector.shape_cast %0 : vector<1x256x32xbf16> to vector<256x32xbf16>
    %c0_2 = arith.constant 0 : index
    %c0_3 = arith.constant 0 : index
    %2 = vector.load %arg2[%c0_2, %c0_3] : memref<32x128xbf16, #tpu.memory_space<vmem>>, vector<32x128xbf16>
    %cst = arith.constant dense<0.000000e+00> : vector<256x128xf32>
    %3 = tpu.matmul %1, %2, %cst {dimension_numbers = #tpu.dot_dimension_numbers<[1], [0], [0], [1], [0, 0, 1, 1], [], []>} : vector<256x32xbf16>, vector<32x128xbf16>, vector<256x128xf32> -> vector<256x128xf32>
    %4 = vector.shape_cast %3 : vector<256x128xf32> to vector<1x256x128xf32>
    %cst_4 = arith.constant dense<0.000000e+00> : vector<1x128xf32>
    %5 = vector.multi_reduction <add>, %4, %cst_4 [1] : vector<1x256x128xf32> to vector<1x128xf32>
    %6 = vector.shape_cast %5 : vector<1x128xf32> to vector<1x1x128xf32>
    %7 = arith.mulf %4, %4 : vector<1x256x128xf32>
    %cst_5 = arith.constant dense<0.000000e+00> : vector<1x128xf32>
    %8 = vector.multi_reduction <add>, %7, %cst_5 [1] : vector<1x256x128xf32> to vector<1x128xf32>
    %9 = vector.shape_cast %8 : vector<1x128xf32> to vector<1x1x128xf32>
    %cst_6 = arith.constant 3.906250e-03 : f32
    %10 = vector.broadcast %cst_6 : f32 to vector<1x1x128xf32>
    %11 = arith.mulf %6, %10 : vector<1x1x128xf32>
    %cst_7 = arith.constant 3.906250e-03 : f32
    %12 = vector.broadcast %cst_7 : f32 to vector<1x1x128xf32>
    %13 = arith.mulf %9, %12 : vector<1x1x128xf32>
    %14 = arith.mulf %11, %11 : vector<1x1x128xf32>
    %15 = arith.subf %13, %14 : vector<1x1x128xf32>
    %cst_8 = arith.constant 0.000000e+00 : f32
    %16 = vector.broadcast %cst_8 : f32 to vector<1x1x128xf32>
    %17 = arith.maximumf %15, %16 : vector<1x1x128xf32>
    %18 = vector.broadcast %11 : vector<1x1x128xf32> to vector<1x256x128xf32>
    %19 = arith.subf %4, %18 : vector<1x256x128xf32>
    %cst_9 = arith.constant 9.99999974E-6 : f32
    %20 = vector.broadcast %cst_9 : f32 to vector<1x1x128xf32>
    %21 = arith.addf %17, %20 : vector<1x1x128xf32>
    %22 = math.rsqrt %21 : vector<1x1x128xf32>
    %23 = vector.broadcast %22 : vector<1x1x128xf32> to vector<1x256x128xf32>
    %24 = arith.mulf %19, %23 : vector<1x256x128xf32>
    %c0_10 = arith.constant 0 : index
    %c0_11 = arith.constant 0 : index
    %25 = vector.load %arg3[%c0_10, %c0_11] : memref<1x128xf32, #tpu.memory_space<vmem>>, vector<1x128xf32>
    %26 = vector.shape_cast %25 : vector<1x128xf32> to vector<1x1x128xf32>
    %27 = vector.broadcast %26 : vector<1x1x128xf32> to vector<1x256x128xf32>
    %28 = arith.mulf %24, %27 : vector<1x256x128xf32>
    %c0_12 = arith.constant 0 : index
    %c0_13 = arith.constant 0 : index
    %29 = vector.load %arg4[%c0_12, %c0_13] : memref<1x128xf32, #tpu.memory_space<vmem>>, vector<1x128xf32>
    %30 = vector.shape_cast %29 : vector<1x128xf32> to vector<1x1x128xf32>
    %31 = vector.broadcast %30 : vector<1x1x128xf32> to vector<1x256x128xf32>
    %32 = arith.addf %28, %31 : vector<1x256x128xf32>
    %cst_14 = arith.constant 0.000000e+00 : f32
    %33 = vector.broadcast %cst_14 : f32 to vector<1x256x128xf32>
    %34 = arith.cmpf ogt, %32, %33 : vector<1x256x128xf32>
    %cst_15 = arith.constant 0.00999999977 : f32
    %35 = vector.broadcast %cst_15 : f32 to vector<1x256x128xf32>
    %36 = arith.mulf %35, %32 : vector<1x256x128xf32>
    %37 = arith.select %34, %32, %36 : vector<1x256x128xi1>, vector<1x256x128xf32>
    %38 = vector.shape_cast %37 : vector<1x256x128xf32> to vector<1x16x16x128xf32>
    %c0_16 = arith.constant 0 : index
    %c0_17 = arith.constant 0 : index
    %c0_18 = arith.constant 0 : index
    %c0_19 = arith.constant 0 : index
    %39 = vector.load %arg6[%c0_16, %c0_17, %c0_18, %c0_19] : memref<1x16x16x128xf32, #tpu.memory_space<vmem>>, vector<1x16x16x128xf32>
    tpu.vector_store %arg6[%c0_16, %c0_17, %c0_18, %c0_19], %38 {strides = array<i32>} : memref<1x16x16x128xf32, #tpu.memory_space<vmem>>, vector<1x16x16x128xf32>,
    %c0_20 = arith.constant 0 : index
    %c0_21 = arith.constant 0 : index
    %c0_22 = arith.constant 0 : index
    %c0_23 = arith.constant 0 : index
    %40 = tpu.strided_load %arg6[%c0_20, %c0_21, %c0_22, %c0_23] {strides = array<i32: 1, 1, 2, 1>} : memref<1x16x16x128xf32, #tpu.memory_space<vmem>>, vector<1x16x8x128xf32>
    %c0_24 = arith.constant 0 : index
    %c0_25 = arith.constant 0 : index
    %c1 = arith.constant 1 : index
    %c0_26 = arith.constant 0 : index
    %41 = tpu.strided_load %arg6[%c0_24, %c0_25, %c1, %c0_26] {strides = array<i32: 1, 1, 2, 1>} : memref<1x16x16x128xf32, #tpu.memory_space<vmem>>, vector<1x16x8x128xf32>
    %42 = arith.addf %40, %41 : vector<1x16x8x128xf32>
    %43 = vector.shape_cast %42 : vector<1x16x8x128xf32> to vector<8x2x8x128xf32>
    %44 = vector.extract_strided_slice %43 {offsets = [0, 0, 0, 0], sizes = [8, 1, 8, 128], strides = [1, 1, 1, 1]} : vector<8x2x8x128xf32> to vector<8x1x8x128xf32>
    %45 = vector.shape_cast %44 : vector<8x1x8x128xf32> to vector<8x8x128xf32>
    %46 = vector.extract_strided_slice %43 {offsets = [0, 1, 0, 0], sizes = [8, 1, 8, 128], strides = [1, 1, 1, 1]} : vector<8x2x8x128xf32> to vector<8x1x8x128xf32>
    %47 = vector.shape_cast %46 : vector<8x1x8x128xf32> to vector<8x8x128xf32>
    %48 = arith.addf %45, %47 : vector<8x8x128xf32>
    %49 = vector.shape_cast %48 : vector<8x8x128xf32> to vector<1x8x8x128xf32>
    %cst_27 = arith.constant 2.500000e-01 : f32
    %50 = vector.broadcast %cst_27 : f32 to vector<1x8x8x128xf32>
    %51 = arith.mulf %50, %49 : vector<1x8x8x128xf32>
    %52 = arith.truncf %51 : vector<1x8x8x128xf32> to vector<1x8x8x128xbf16>
    %c0_28 = arith.constant 0 : index
    %c0_29 = arith.constant 0 : index
    %c0_30 = arith.constant 0 : index
    %c0_31 = arith.constant 0 : index
    %53 = vector.load %arg5[%c0_28, %c0_29, %c0_30, %c0_31] : memref<1x8x8x128xbf16, #tpu.memory_space<vmem>>, vector<1x8x8x128xbf16>
    tpu.vector_store %arg5[%c0_28, %c0_29, %c0_30, %c0_31], %52 {strides = array<i32>} : memref<1x8x8x128xbf16, #tpu.memory_space<vmem>>, vector<1x8x8x128xbf16>,
    return
  }
  func.func @transform_0(%arg0: i32) -> (i32, i32, i32) {
    %c0_i32 = arith.constant 0 : i32
    %c0_i32_0 = arith.constant 0 : i32
    %c0_i32_1 = arith.constant 0 : i32
    return %arg0, %c0_i32, %c0_i32_0 : i32, i32, i32
  }
  func.func @transform_1(%arg0: i32) -> (i32, i32) {
    %c0_i32 = arith.constant 0 : i32
    %c0_i32_0 = arith.constant 0 : i32
    %c0_i32_1 = arith.constant 0 : i32
    return %c0_i32, %c0_i32_0 : i32, i32
  }
  func.func @transform_2(%arg0: i32) -> (i32, i32) {
    %c0_i32 = arith.constant 0 : i32
    %c0_i32_0 = arith.constant 0 : i32
    %c0_i32_1 = arith.constant 0 : i32
    return %c0_i32, %c0_i32_0 : i32, i32
  }
  func.func @transform_3(%arg0: i32) -> (i32, i32) {
    %c0_i32 = arith.constant 0 : i32
    %c0_i32_0 = arith.constant 0 : i32
    %c0_i32_1 = arith.constant 0 : i32
    return %c0_i32, %c0_i32_0 : i32, i32
  }
  func.func @transform_4(%arg0: i32) -> (i32, i32, i32, i32) {
    %c0_i32 = arith.constant 0 : i32
    %c0_i32_0 = arith.constant 0 : i32
    %c0_i32_1 = arith.constant 0 : i32
    %c0_i32_2 = arith.constant 0 : i32
    return %arg0, %c0_i32, %c0_i32_0, %c0_i32_1 : i32, i32, i32, i32
  }
}

module attributes {stable_mosaic.version = 11 : i64} {
  func.func @_direct_block_kernel(%arg0: i32, %arg1: memref<1x8x8x128xbf16, #tpu.memory_space<vmem>>, %arg2: memref<9x128x128xbf16, #tpu.memory_space<vmem>>, %arg3: memref<1x128xf32, #tpu.memory_space<vmem>>, %arg4: memref<1x128xf32, #tpu.memory_space<vmem>>, %arg5: memref<1x4x4x128xbf16, #tpu.memory_space<vmem>>, %arg6: memref<1x10x10x128xbf16, #tpu.memory_space<vmem>>, %arg7: memref<1x8x8x128xf32, #tpu.memory_space<vmem>>) attributes {dimension_semantics = [#tpu.dimension_semantics<parallel>], iteration_bounds = array<i64: 2>, scalar_prefetch = 0 : i64, scratch_operands = 2 : i64, tpu.core_type = #tpu.core_type<tc>, window_params = [{transform_indices = @transform_0, window_bounds = array<i64: 1, 8, 8, 128>}, {pipeline_mode = #tpu.pipeline_mode<synchronous>, transform_indices = @transform_1, window_bounds = array<i64: 9, 128, 128>}, {pipeline_mode = #tpu.pipeline_mode<synchronous>, transform_indices = @transform_2, window_bounds = array<i64: 1, 128>}, {pipeline_mode = #tpu.pipeline_mode<synchronous>, transform_indices = @transform_3, window_bounds = array<i64: 1, 128>}, {transform_indices = @transform_4, window_bounds = array<i64: 1, 4, 4, 128>}]} {
    %cst = arith.constant 0.000000e+00 : bf16
    %0 = vector.broadcast %cst : bf16 to vector<1x1x10x128xbf16>
    %c0 = arith.constant 0 : index
    %c0_0 = arith.constant 0 : index
    %c0_1 = arith.constant 0 : index
    %c0_2 = arith.constant 0 : index
    %1 = vector.load %arg6[%c0, %c0_0, %c0_1, %c0_2] : memref<1x10x10x128xbf16, #tpu.memory_space<vmem>>, vector<1x1x10x128xbf16>
    tpu.vector_store %arg6[%c0, %c0_0, %c0_1, %c0_2], %0 {strides = array<i32>} : memref<1x10x10x128xbf16, #tpu.memory_space<vmem>>, vector<1x1x10x128xbf16>,
    %c0_3 = arith.constant 0 : index
    %c9 = arith.constant 9 : index
    %c0_4 = arith.constant 0 : index
    %c0_5 = arith.constant 0 : index
    %2 = vector.load %arg6[%c0_3, %c9, %c0_4, %c0_5] : memref<1x10x10x128xbf16, #tpu.memory_space<vmem>>, vector<1x1x10x128xbf16>
    tpu.vector_store %arg6[%c0_3, %c9, %c0_4, %c0_5], %0 {strides = array<i32>} : memref<1x10x10x128xbf16, #tpu.memory_space<vmem>>, vector<1x1x10x128xbf16>,
    %cst_6 = arith.constant 0.000000e+00 : bf16
    %3 = vector.broadcast %cst_6 : bf16 to vector<1x8x1x128xbf16>
    %c0_7 = arith.constant 0 : index
    %c1 = arith.constant 1 : index
    %c0_8 = arith.constant 0 : index
    %c0_9 = arith.constant 0 : index
    %4 = vector.load %arg6[%c0_7, %c1, %c0_8, %c0_9] : memref<1x10x10x128xbf16, #tpu.memory_space<vmem>>, vector<1x8x1x128xbf16>
    tpu.vector_store %arg6[%c0_7, %c1, %c0_8, %c0_9], %3 {strides = array<i32>} : memref<1x10x10x128xbf16, #tpu.memory_space<vmem>>, vector<1x8x1x128xbf16>,
    %c0_10 = arith.constant 0 : index
    %c1_11 = arith.constant 1 : index
    %c9_12 = arith.constant 9 : index
    %c0_13 = arith.constant 0 : index
    %5 = vector.load %arg6[%c0_10, %c1_11, %c9_12, %c0_13] : memref<1x10x10x128xbf16, #tpu.memory_space<vmem>>, vector<1x8x1x128xbf16>
    tpu.vector_store %arg6[%c0_10, %c1_11, %c9_12, %c0_13], %3 {strides = array<i32>} : memref<1x10x10x128xbf16, #tpu.memory_space<vmem>>, vector<1x8x1x128xbf16>,
    %c0_14 = arith.constant 0 : index
    %c0_15 = arith.constant 0 : index
    %c0_16 = arith.constant 0 : index
    %c0_17 = arith.constant 0 : index
    %6 = vector.load %arg1[%c0_14, %c0_15, %c0_16, %c0_17] : memref<1x8x8x128xbf16, #tpu.memory_space<vmem>>, vector<1x8x8x128xbf16>
    %c0_18 = arith.constant 0 : index
    %c1_19 = arith.constant 1 : index
    %c1_20 = arith.constant 1 : index
    %c0_21 = arith.constant 0 : index
    %7 = vector.load %arg6[%c0_18, %c1_19, %c1_20, %c0_21] : memref<1x10x10x128xbf16, #tpu.memory_space<vmem>>, vector<1x8x8x128xbf16>
    tpu.vector_store %arg6[%c0_18, %c1_19, %c1_20, %c0_21], %6 {strides = array<i32>} : memref<1x10x10x128xbf16, #tpu.memory_space<vmem>>, vector<1x8x8x128xbf16>,
    %c0_22 = arith.constant 0 : index
    %c0_23 = arith.constant 0 : index
    %c0_24 = arith.constant 0 : index
    %c0_25 = arith.constant 0 : index
    %8 = vector.load %arg6[%c0_22, %c0_23, %c0_24, %c0_25] : memref<1x10x10x128xbf16, #tpu.memory_space<vmem>>, vector<1x8x8x128xbf16>
    %9 = vector.shape_cast %8 : vector<1x8x8x128xbf16> to vector<64x128xbf16>
    %c0_26 = arith.constant 0 : index
    %c0_27 = arith.constant 0 : index
    %c0_28 = arith.constant 0 : index
    %10 = vector.load %arg2[%c0_26, %c0_27, %c0_28] : memref<9x128x128xbf16, #tpu.memory_space<vmem>>, vector<1x128x128xbf16>
    %11 = vector.shape_cast %10 : vector<1x128x128xbf16> to vector<128x128xbf16>
    %cst_29 = arith.constant dense<0.000000e+00> : vector<64x128xf32>
    %12 = tpu.matmul %9, %11, %cst_29 {dimension_numbers = #tpu.dot_dimension_numbers<[1], [0], [0], [1], [0, 0, 1, 1], [], []>} : vector<64x128xbf16>, vector<128x128xbf16>, vector<64x128xf32> -> vector<64x128xf32>
    %c0_30 = arith.constant 0 : index
    %c0_31 = arith.constant 0 : index
    %c1_32 = arith.constant 1 : index
    %c0_33 = arith.constant 0 : index
    %13 = vector.load %arg6[%c0_30, %c0_31, %c1_32, %c0_33] : memref<1x10x10x128xbf16, #tpu.memory_space<vmem>>, vector<1x8x8x128xbf16>
    %14 = vector.shape_cast %13 : vector<1x8x8x128xbf16> to vector<64x128xbf16>
    %c1_34 = arith.constant 1 : index
    %c0_35 = arith.constant 0 : index
    %c0_36 = arith.constant 0 : index
    %15 = vector.load %arg2[%c1_34, %c0_35, %c0_36] : memref<9x128x128xbf16, #tpu.memory_space<vmem>>, vector<1x128x128xbf16>
    %16 = vector.shape_cast %15 : vector<1x128x128xbf16> to vector<128x128xbf16>
    %cst_37 = arith.constant dense<0.000000e+00> : vector<64x128xf32>
    %17 = tpu.matmul %14, %16, %cst_37 {dimension_numbers = #tpu.dot_dimension_numbers<[1], [0], [0], [1], [0, 0, 1, 1], [], []>} : vector<64x128xbf16>, vector<128x128xbf16>, vector<64x128xf32> -> vector<64x128xf32>
    %18 = arith.addf %12, %17 : vector<64x128xf32>
    %c0_38 = arith.constant 0 : index
    %c0_39 = arith.constant 0 : index
    %c2 = arith.constant 2 : index
    %c0_40 = arith.constant 0 : index
    %19 = vector.load %arg6[%c0_38, %c0_39, %c2, %c0_40] : memref<1x10x10x128xbf16, #tpu.memory_space<vmem>>, vector<1x8x8x128xbf16>
    %20 = vector.shape_cast %19 : vector<1x8x8x128xbf16> to vector<64x128xbf16>
    %c2_41 = arith.constant 2 : index
    %c0_42 = arith.constant 0 : index
    %c0_43 = arith.constant 0 : index
    %21 = vector.load %arg2[%c2_41, %c0_42, %c0_43] : memref<9x128x128xbf16, #tpu.memory_space<vmem>>, vector<1x128x128xbf16>
    %22 = vector.shape_cast %21 : vector<1x128x128xbf16> to vector<128x128xbf16>
    %cst_44 = arith.constant dense<0.000000e+00> : vector<64x128xf32>
    %23 = tpu.matmul %20, %22, %cst_44 {dimension_numbers = #tpu.dot_dimension_numbers<[1], [0], [0], [1], [0, 0, 1, 1], [], []>} : vector<64x128xbf16>, vector<128x128xbf16>, vector<64x128xf32> -> vector<64x128xf32>
    %24 = arith.addf %18, %23 : vector<64x128xf32>
    %c0_45 = arith.constant 0 : index
    %c1_46 = arith.constant 1 : index
    %c0_47 = arith.constant 0 : index
    %c0_48 = arith.constant 0 : index
    %25 = vector.load %arg6[%c0_45, %c1_46, %c0_47, %c0_48] : memref<1x10x10x128xbf16, #tpu.memory_space<vmem>>, vector<1x8x8x128xbf16>
    %26 = vector.shape_cast %25 : vector<1x8x8x128xbf16> to vector<64x128xbf16>
    %c3 = arith.constant 3 : index
    %c0_49 = arith.constant 0 : index
    %c0_50 = arith.constant 0 : index
    %27 = vector.load %arg2[%c3, %c0_49, %c0_50] : memref<9x128x128xbf16, #tpu.memory_space<vmem>>, vector<1x128x128xbf16>
    %28 = vector.shape_cast %27 : vector<1x128x128xbf16> to vector<128x128xbf16>
    %cst_51 = arith.constant dense<0.000000e+00> : vector<64x128xf32>
    %29 = tpu.matmul %26, %28, %cst_51 {dimension_numbers = #tpu.dot_dimension_numbers<[1], [0], [0], [1], [0, 0, 1, 1], [], []>} : vector<64x128xbf16>, vector<128x128xbf16>, vector<64x128xf32> -> vector<64x128xf32>
    %30 = arith.addf %24, %29 : vector<64x128xf32>
    %c0_52 = arith.constant 0 : index
    %c1_53 = arith.constant 1 : index
    %c1_54 = arith.constant 1 : index
    %c0_55 = arith.constant 0 : index
    %31 = vector.load %arg6[%c0_52, %c1_53, %c1_54, %c0_55] : memref<1x10x10x128xbf16, #tpu.memory_space<vmem>>, vector<1x8x8x128xbf16>
    %32 = vector.shape_cast %31 : vector<1x8x8x128xbf16> to vector<64x128xbf16>
    %c4 = arith.constant 4 : index
    %c0_56 = arith.constant 0 : index
    %c0_57 = arith.constant 0 : index
    %33 = vector.load %arg2[%c4, %c0_56, %c0_57] : memref<9x128x128xbf16, #tpu.memory_space<vmem>>, vector<1x128x128xbf16>
    %34 = vector.shape_cast %33 : vector<1x128x128xbf16> to vector<128x128xbf16>
    %cst_58 = arith.constant dense<0.000000e+00> : vector<64x128xf32>
    %35 = tpu.matmul %32, %34, %cst_58 {dimension_numbers = #tpu.dot_dimension_numbers<[1], [0], [0], [1], [0, 0, 1, 1], [], []>} : vector<64x128xbf16>, vector<128x128xbf16>, vector<64x128xf32> -> vector<64x128xf32>
    %36 = arith.addf %30, %35 : vector<64x128xf32>
    %c0_59 = arith.constant 0 : index
    %c1_60 = arith.constant 1 : index
    %c2_61 = arith.constant 2 : index
    %c0_62 = arith.constant 0 : index
    %37 = vector.load %arg6[%c0_59, %c1_60, %c2_61, %c0_62] : memref<1x10x10x128xbf16, #tpu.memory_space<vmem>>, vector<1x8x8x128xbf16>
    %38 = vector.shape_cast %37 : vector<1x8x8x128xbf16> to vector<64x128xbf16>
    %c5 = arith.constant 5 : index
    %c0_63 = arith.constant 0 : index
    %c0_64 = arith.constant 0 : index
    %39 = vector.load %arg2[%c5, %c0_63, %c0_64] : memref<9x128x128xbf16, #tpu.memory_space<vmem>>, vector<1x128x128xbf16>
    %40 = vector.shape_cast %39 : vector<1x128x128xbf16> to vector<128x128xbf16>
    %cst_65 = arith.constant dense<0.000000e+00> : vector<64x128xf32>
    %41 = tpu.matmul %38, %40, %cst_65 {dimension_numbers = #tpu.dot_dimension_numbers<[1], [0], [0], [1], [0, 0, 1, 1], [], []>} : vector<64x128xbf16>, vector<128x128xbf16>, vector<64x128xf32> -> vector<64x128xf32>
    %42 = arith.addf %36, %41 : vector<64x128xf32>
    %c0_66 = arith.constant 0 : index
    %c2_67 = arith.constant 2 : index
    %c0_68 = arith.constant 0 : index
    %c0_69 = arith.constant 0 : index
    %43 = vector.load %arg6[%c0_66, %c2_67, %c0_68, %c0_69] : memref<1x10x10x128xbf16, #tpu.memory_space<vmem>>, vector<1x8x8x128xbf16>
    %44 = vector.shape_cast %43 : vector<1x8x8x128xbf16> to vector<64x128xbf16>
    %c6 = arith.constant 6 : index
    %c0_70 = arith.constant 0 : index
    %c0_71 = arith.constant 0 : index
    %45 = vector.load %arg2[%c6, %c0_70, %c0_71] : memref<9x128x128xbf16, #tpu.memory_space<vmem>>, vector<1x128x128xbf16>
    %46 = vector.shape_cast %45 : vector<1x128x128xbf16> to vector<128x128xbf16>
    %cst_72 = arith.constant dense<0.000000e+00> : vector<64x128xf32>
    %47 = tpu.matmul %44, %46, %cst_72 {dimension_numbers = #tpu.dot_dimension_numbers<[1], [0], [0], [1], [0, 0, 1, 1], [], []>} : vector<64x128xbf16>, vector<128x128xbf16>, vector<64x128xf32> -> vector<64x128xf32>
    %48 = arith.addf %42, %47 : vector<64x128xf32>
    %c0_73 = arith.constant 0 : index
    %c2_74 = arith.constant 2 : index
    %c1_75 = arith.constant 1 : index
    %c0_76 = arith.constant 0 : index
    %49 = vector.load %arg6[%c0_73, %c2_74, %c1_75, %c0_76] : memref<1x10x10x128xbf16, #tpu.memory_space<vmem>>, vector<1x8x8x128xbf16>
    %50 = vector.shape_cast %49 : vector<1x8x8x128xbf16> to vector<64x128xbf16>
    %c7 = arith.constant 7 : index
    %c0_77 = arith.constant 0 : index
    %c0_78 = arith.constant 0 : index
    %51 = vector.load %arg2[%c7, %c0_77, %c0_78] : memref<9x128x128xbf16, #tpu.memory_space<vmem>>, vector<1x128x128xbf16>
    %52 = vector.shape_cast %51 : vector<1x128x128xbf16> to vector<128x128xbf16>
    %cst_79 = arith.constant dense<0.000000e+00> : vector<64x128xf32>
    %53 = tpu.matmul %50, %52, %cst_79 {dimension_numbers = #tpu.dot_dimension_numbers<[1], [0], [0], [1], [0, 0, 1, 1], [], []>} : vector<64x128xbf16>, vector<128x128xbf16>, vector<64x128xf32> -> vector<64x128xf32>
    %54 = arith.addf %48, %53 : vector<64x128xf32>
    %c0_80 = arith.constant 0 : index
    %c2_81 = arith.constant 2 : index
    %c2_82 = arith.constant 2 : index
    %c0_83 = arith.constant 0 : index
    %55 = vector.load %arg6[%c0_80, %c2_81, %c2_82, %c0_83] : memref<1x10x10x128xbf16, #tpu.memory_space<vmem>>, vector<1x8x8x128xbf16>
    %56 = vector.shape_cast %55 : vector<1x8x8x128xbf16> to vector<64x128xbf16>
    %c8 = arith.constant 8 : index
    %c0_84 = arith.constant 0 : index
    %c0_85 = arith.constant 0 : index
    %57 = vector.load %arg2[%c8, %c0_84, %c0_85] : memref<9x128x128xbf16, #tpu.memory_space<vmem>>, vector<1x128x128xbf16>
    %58 = vector.shape_cast %57 : vector<1x128x128xbf16> to vector<128x128xbf16>
    %cst_86 = arith.constant dense<0.000000e+00> : vector<64x128xf32>
    %59 = tpu.matmul %56, %58, %cst_86 {dimension_numbers = #tpu.dot_dimension_numbers<[1], [0], [0], [1], [0, 0, 1, 1], [], []>} : vector<64x128xbf16>, vector<128x128xbf16>, vector<64x128xf32> -> vector<64x128xf32>
    %60 = arith.addf %54, %59 : vector<64x128xf32>
    %61 = vector.shape_cast %60 : vector<64x128xf32> to vector<1x64x128xf32>
    %cst_87 = arith.constant dense<0.000000e+00> : vector<1x128xf32>
    %62 = vector.multi_reduction <add>, %61, %cst_87 [1] : vector<1x64x128xf32> to vector<1x128xf32>
    %63 = vector.shape_cast %62 : vector<1x128xf32> to vector<1x1x128xf32>
    %64 = arith.mulf %61, %61 : vector<1x64x128xf32>
    %cst_88 = arith.constant dense<0.000000e+00> : vector<1x128xf32>
    %65 = vector.multi_reduction <add>, %64, %cst_88 [1] : vector<1x64x128xf32> to vector<1x128xf32>
    %66 = vector.shape_cast %65 : vector<1x128xf32> to vector<1x1x128xf32>
    %cst_89 = arith.constant 1.562500e-02 : f32
    %67 = vector.broadcast %cst_89 : f32 to vector<1x1x128xf32>
    %68 = arith.mulf %63, %67 : vector<1x1x128xf32>
    %cst_90 = arith.constant 1.562500e-02 : f32
    %69 = vector.broadcast %cst_90 : f32 to vector<1x1x128xf32>
    %70 = arith.mulf %66, %69 : vector<1x1x128xf32>
    %71 = arith.mulf %68, %68 : vector<1x1x128xf32>
    %72 = arith.subf %70, %71 : vector<1x1x128xf32>
    %cst_91 = arith.constant 0.000000e+00 : f32
    %73 = vector.broadcast %cst_91 : f32 to vector<1x1x128xf32>
    %74 = arith.maximumf %72, %73 : vector<1x1x128xf32>
    %75 = vector.broadcast %68 : vector<1x1x128xf32> to vector<1x64x128xf32>
    %76 = arith.subf %61, %75 : vector<1x64x128xf32>
    %cst_92 = arith.constant 9.99999974E-6 : f32
    %77 = vector.broadcast %cst_92 : f32 to vector<1x1x128xf32>
    %78 = arith.addf %74, %77 : vector<1x1x128xf32>
    %79 = math.rsqrt %78 : vector<1x1x128xf32>
    %80 = vector.broadcast %79 : vector<1x1x128xf32> to vector<1x64x128xf32>
    %81 = arith.mulf %76, %80 : vector<1x64x128xf32>
    %c0_93 = arith.constant 0 : index
    %c0_94 = arith.constant 0 : index
    %82 = vector.load %arg3[%c0_93, %c0_94] : memref<1x128xf32, #tpu.memory_space<vmem>>, vector<1x128xf32>
    %83 = vector.shape_cast %82 : vector<1x128xf32> to vector<1x1x128xf32>
    %84 = vector.broadcast %83 : vector<1x1x128xf32> to vector<1x64x128xf32>
    %85 = arith.mulf %81, %84 : vector<1x64x128xf32>
    %c0_95 = arith.constant 0 : index
    %c0_96 = arith.constant 0 : index
    %86 = vector.load %arg4[%c0_95, %c0_96] : memref<1x128xf32, #tpu.memory_space<vmem>>, vector<1x128xf32>
    %87 = vector.shape_cast %86 : vector<1x128xf32> to vector<1x1x128xf32>
    %88 = vector.broadcast %87 : vector<1x1x128xf32> to vector<1x64x128xf32>
    %89 = arith.addf %85, %88 : vector<1x64x128xf32>
    %cst_97 = arith.constant 0.000000e+00 : f32
    %90 = vector.broadcast %cst_97 : f32 to vector<1x64x128xf32>
    %91 = arith.cmpf ogt, %89, %90 : vector<1x64x128xf32>
    %cst_98 = arith.constant 0.00999999977 : f32
    %92 = vector.broadcast %cst_98 : f32 to vector<1x64x128xf32>
    %93 = arith.mulf %92, %89 : vector<1x64x128xf32>
    %94 = arith.select %91, %89, %93 : vector<1x64x128xi1>, vector<1x64x128xf32>
    %95 = vector.shape_cast %94 : vector<1x64x128xf32> to vector<1x8x8x128xf32>
    %c0_99 = arith.constant 0 : index
    %c0_100 = arith.constant 0 : index
    %c0_101 = arith.constant 0 : index
    %c0_102 = arith.constant 0 : index
    %96 = vector.load %arg7[%c0_99, %c0_100, %c0_101, %c0_102] : memref<1x8x8x128xf32, #tpu.memory_space<vmem>>, vector<1x8x8x128xf32>
    tpu.vector_store %arg7[%c0_99, %c0_100, %c0_101, %c0_102], %95 {strides = array<i32>} : memref<1x8x8x128xf32, #tpu.memory_space<vmem>>, vector<1x8x8x128xf32>,
    %c0_103 = arith.constant 0 : index
    %c0_104 = arith.constant 0 : index
    %c0_105 = arith.constant 0 : index
    %c0_106 = arith.constant 0 : index
    %97 = tpu.strided_load %arg7[%c0_103, %c0_104, %c0_105, %c0_106] {strides = array<i32: 1, 1, 2, 1>} : memref<1x8x8x128xf32, #tpu.memory_space<vmem>>, vector<1x8x4x128xf32>
    %c0_107 = arith.constant 0 : index
    %c0_108 = arith.constant 0 : index
    %c1_109 = arith.constant 1 : index
    %c0_110 = arith.constant 0 : index
    %98 = tpu.strided_load %arg7[%c0_107, %c0_108, %c1_109, %c0_110] {strides = array<i32: 1, 1, 2, 1>} : memref<1x8x8x128xf32, #tpu.memory_space<vmem>>, vector<1x8x4x128xf32>
    %99 = arith.addf %97, %98 : vector<1x8x4x128xf32>
    %100 = vector.shape_cast %99 : vector<1x8x4x128xf32> to vector<4x2x4x128xf32>
    %101 = vector.extract_strided_slice %100 {offsets = [0, 0, 0, 0], sizes = [4, 1, 4, 128], strides = [1, 1, 1, 1]} : vector<4x2x4x128xf32> to vector<4x1x4x128xf32>
    %102 = vector.shape_cast %101 : vector<4x1x4x128xf32> to vector<4x4x128xf32>
    %103 = vector.extract_strided_slice %100 {offsets = [0, 1, 0, 0], sizes = [4, 1, 4, 128], strides = [1, 1, 1, 1]} : vector<4x2x4x128xf32> to vector<4x1x4x128xf32>
    %104 = vector.shape_cast %103 : vector<4x1x4x128xf32> to vector<4x4x128xf32>
    %105 = arith.addf %102, %104 : vector<4x4x128xf32>
    %106 = vector.shape_cast %105 : vector<4x4x128xf32> to vector<1x4x4x128xf32>
    %cst_111 = arith.constant 2.500000e-01 : f32
    %107 = vector.broadcast %cst_111 : f32 to vector<1x4x4x128xf32>
    %108 = arith.mulf %107, %106 : vector<1x4x4x128xf32>
    %109 = arith.truncf %108 : vector<1x4x4x128xf32> to vector<1x4x4x128xbf16>
    %c0_112 = arith.constant 0 : index
    %c0_113 = arith.constant 0 : index
    %c0_114 = arith.constant 0 : index
    %c0_115 = arith.constant 0 : index
    %110 = vector.load %arg5[%c0_112, %c0_113, %c0_114, %c0_115] : memref<1x4x4x128xbf16, #tpu.memory_space<vmem>>, vector<1x4x4x128xbf16>
    tpu.vector_store %arg5[%c0_112, %c0_113, %c0_114, %c0_115], %109 {strides = array<i32>} : memref<1x4x4x128xbf16, #tpu.memory_space<vmem>>, vector<1x4x4x128xbf16>,
    return
  }
  func.func @transform_0(%arg0: i32) -> (i32, i32, i32, i32) {
    %c0_i32 = arith.constant 0 : i32
    %c0_i32_0 = arith.constant 0 : i32
    %c0_i32_1 = arith.constant 0 : i32
    %c0_i32_2 = arith.constant 0 : i32
    return %arg0, %c0_i32, %c0_i32_0, %c0_i32_1 : i32, i32, i32, i32
  }
  func.func @transform_1(%arg0: i32) -> (i32, i32, i32) {
    %c0_i32 = arith.constant 0 : i32
    %c0_i32_0 = arith.constant 0 : i32
    %c0_i32_1 = arith.constant 0 : i32
    %c0_i32_2 = arith.constant 0 : i32
    return %c0_i32, %c0_i32_0, %c0_i32_1 : i32, i32, i32
  }
  func.func @transform_2(%arg0: i32) -> (i32, i32) {
    %c0_i32 = arith.constant 0 : i32
    %c0_i32_0 = arith.constant 0 : i32
    %c0_i32_1 = arith.constant 0 : i32
    return %c0_i32, %c0_i32_0 : i32, i32
  }
  func.func @transform_3(%arg0: i32) -> (i32, i32) {
    %c0_i32 = arith.constant 0 : i32
    %c0_i32_0 = arith.constant 0 : i32
    %c0_i32_1 = arith.constant 0 : i32
    return %c0_i32, %c0_i32_0 : i32, i32
  }
  func.func @transform_4(%arg0: i32) -> (i32, i32, i32, i32) {
    %c0_i32 = arith.constant 0 : i32
    %c0_i32_0 = arith.constant 0 : i32
    %c0_i32_1 = arith.constant 0 : i32
    %c0_i32_2 = arith.constant 0 : i32
    return %arg0, %c0_i32, %c0_i32_0, %c0_i32_1 : i32, i32, i32, i32
  }
}

module attributes {stable_mosaic.version = 11 : i64} {
  func.func @_direct_block_kernel(%arg0: i32, %arg1: memref<1x4x4x128xbf16, #tpu.memory_space<vmem>>, %arg2: memref<9x128x128xbf16, #tpu.memory_space<vmem>>, %arg3: memref<1x128xf32, #tpu.memory_space<vmem>>, %arg4: memref<1x128xf32, #tpu.memory_space<vmem>>, %arg5: memref<1x2x2x128xbf16, #tpu.memory_space<vmem>>, %arg6: memref<1x6x6x128xbf16, #tpu.memory_space<vmem>>, %arg7: memref<1x4x4x128xf32, #tpu.memory_space<vmem>>) attributes {dimension_semantics = [#tpu.dimension_semantics<parallel>], iteration_bounds = array<i64: 2>, scalar_prefetch = 0 : i64, scratch_operands = 2 : i64, tpu.core_type = #tpu.core_type<tc>, window_params = [{transform_indices = @transform_0, window_bounds = array<i64: 1, 4, 4, 128>}, {pipeline_mode = #tpu.pipeline_mode<synchronous>, transform_indices = @transform_1, window_bounds = array<i64: 9, 128, 128>}, {pipeline_mode = #tpu.pipeline_mode<synchronous>, transform_indices = @transform_2, window_bounds = array<i64: 1, 128>}, {pipeline_mode = #tpu.pipeline_mode<synchronous>, transform_indices = @transform_3, window_bounds = array<i64: 1, 128>}, {transform_indices = @transform_4, window_bounds = array<i64: 1, 2, 2, 128>}]} {
    %cst = arith.constant 0.000000e+00 : bf16
    %0 = vector.broadcast %cst : bf16 to vector<1x1x6x128xbf16>
    %c0 = arith.constant 0 : index
    %c0_0 = arith.constant 0 : index
    %c0_1 = arith.constant 0 : index
    %c0_2 = arith.constant 0 : index
    %1 = vector.load %arg6[%c0, %c0_0, %c0_1, %c0_2] : memref<1x6x6x128xbf16, #tpu.memory_space<vmem>>, vector<1x1x6x128xbf16>
    tpu.vector_store %arg6[%c0, %c0_0, %c0_1, %c0_2], %0 {strides = array<i32>} : memref<1x6x6x128xbf16, #tpu.memory_space<vmem>>, vector<1x1x6x128xbf16>,
    %c0_3 = arith.constant 0 : index
    %c5 = arith.constant 5 : index
    %c0_4 = arith.constant 0 : index
    %c0_5 = arith.constant 0 : index
    %2 = vector.load %arg6[%c0_3, %c5, %c0_4, %c0_5] : memref<1x6x6x128xbf16, #tpu.memory_space<vmem>>, vector<1x1x6x128xbf16>
    tpu.vector_store %arg6[%c0_3, %c5, %c0_4, %c0_5], %0 {strides = array<i32>} : memref<1x6x6x128xbf16, #tpu.memory_space<vmem>>, vector<1x1x6x128xbf16>,
    %cst_6 = arith.constant 0.000000e+00 : bf16
    %3 = vector.broadcast %cst_6 : bf16 to vector<1x4x1x128xbf16>
    %c0_7 = arith.constant 0 : index
    %c1 = arith.constant 1 : index
    %c0_8 = arith.constant 0 : index
    %c0_9 = arith.constant 0 : index
    %4 = vector.load %arg6[%c0_7, %c1, %c0_8, %c0_9] : memref<1x6x6x128xbf16, #tpu.memory_space<vmem>>, vector<1x4x1x128xbf16>
    tpu.vector_store %arg6[%c0_7, %c1, %c0_8, %c0_9], %3 {strides = array<i32>} : memref<1x6x6x128xbf16, #tpu.memory_space<vmem>>, vector<1x4x1x128xbf16>,
    %c0_10 = arith.constant 0 : index
    %c1_11 = arith.constant 1 : index
    %c5_12 = arith.constant 5 : index
    %c0_13 = arith.constant 0 : index
    %5 = vector.load %arg6[%c0_10, %c1_11, %c5_12, %c0_13] : memref<1x6x6x128xbf16, #tpu.memory_space<vmem>>, vector<1x4x1x128xbf16>
    tpu.vector_store %arg6[%c0_10, %c1_11, %c5_12, %c0_13], %3 {strides = array<i32>} : memref<1x6x6x128xbf16, #tpu.memory_space<vmem>>, vector<1x4x1x128xbf16>,
    %c0_14 = arith.constant 0 : index
    %c0_15 = arith.constant 0 : index
    %c0_16 = arith.constant 0 : index
    %c0_17 = arith.constant 0 : index
    %6 = vector.load %arg1[%c0_14, %c0_15, %c0_16, %c0_17] : memref<1x4x4x128xbf16, #tpu.memory_space<vmem>>, vector<1x4x4x128xbf16>
    %c0_18 = arith.constant 0 : index
    %c1_19 = arith.constant 1 : index
    %c1_20 = arith.constant 1 : index
    %c0_21 = arith.constant 0 : index
    %7 = vector.load %arg6[%c0_18, %c1_19, %c1_20, %c0_21] : memref<1x6x6x128xbf16, #tpu.memory_space<vmem>>, vector<1x4x4x128xbf16>
    tpu.vector_store %arg6[%c0_18, %c1_19, %c1_20, %c0_21], %6 {strides = array<i32>} : memref<1x6x6x128xbf16, #tpu.memory_space<vmem>>, vector<1x4x4x128xbf16>,
    %c0_22 = arith.constant 0 : index
    %c0_23 = arith.constant 0 : index
    %c0_24 = arith.constant 0 : index
    %c0_25 = arith.constant 0 : index
    %8 = vector.load %arg6[%c0_22, %c0_23, %c0_24, %c0_25] : memref<1x6x6x128xbf16, #tpu.memory_space<vmem>>, vector<1x4x4x128xbf16>
    %9 = vector.shape_cast %8 : vector<1x4x4x128xbf16> to vector<16x128xbf16>
    %c0_26 = arith.constant 0 : index
    %c0_27 = arith.constant 0 : index
    %c0_28 = arith.constant 0 : index
    %10 = vector.load %arg2[%c0_26, %c0_27, %c0_28] : memref<9x128x128xbf16, #tpu.memory_space<vmem>>, vector<1x128x128xbf16>
    %11 = vector.shape_cast %10 : vector<1x128x128xbf16> to vector<128x128xbf16>
    %cst_29 = arith.constant dense<0.000000e+00> : vector<16x128xf32>
    %12 = tpu.matmul %9, %11, %cst_29 {dimension_numbers = #tpu.dot_dimension_numbers<[1], [0], [0], [1], [0, 0, 1, 1], [], []>} : vector<16x128xbf16>, vector<128x128xbf16>, vector<16x128xf32> -> vector<16x128xf32>
    %c0_30 = arith.constant 0 : index
    %c0_31 = arith.constant 0 : index
    %c1_32 = arith.constant 1 : index
    %c0_33 = arith.constant 0 : index
    %13 = vector.load %arg6[%c0_30, %c0_31, %c1_32, %c0_33] : memref<1x6x6x128xbf16, #tpu.memory_space<vmem>>, vector<1x4x4x128xbf16>
    %14 = vector.shape_cast %13 : vector<1x4x4x128xbf16> to vector<16x128xbf16>
    %c1_34 = arith.constant 1 : index
    %c0_35 = arith.constant 0 : index
    %c0_36 = arith.constant 0 : index
    %15 = vector.load %arg2[%c1_34, %c0_35, %c0_36] : memref<9x128x128xbf16, #tpu.memory_space<vmem>>, vector<1x128x128xbf16>
    %16 = vector.shape_cast %15 : vector<1x128x128xbf16> to vector<128x128xbf16>
    %cst_37 = arith.constant dense<0.000000e+00> : vector<16x128xf32>
    %17 = tpu.matmul %14, %16, %cst_37 {dimension_numbers = #tpu.dot_dimension_numbers<[1], [0], [0], [1], [0, 0, 1, 1], [], []>} : vector<16x128xbf16>, vector<128x128xbf16>, vector<16x128xf32> -> vector<16x128xf32>
    %18 = arith.addf %12, %17 : vector<16x128xf32>
    %c0_38 = arith.constant 0 : index
    %c0_39 = arith.constant 0 : index
    %c2 = arith.constant 2 : index
    %c0_40 = arith.constant 0 : index
    %19 = vector.load %arg6[%c0_38, %c0_39, %c2, %c0_40] : memref<1x6x6x128xbf16, #tpu.memory_space<vmem>>, vector<1x4x4x128xbf16>
    %20 = vector.shape_cast %19 : vector<1x4x4x128xbf16> to vector<16x128xbf16>
    %c2_41 = arith.constant 2 : index
    %c0_42 = arith.constant 0 : index
    %c0_43 = arith.constant 0 : index
    %21 = vector.load %arg2[%c2_41, %c0_42, %c0_43] : memref<9x128x128xbf16, #tpu.memory_space<vmem>>, vector<1x128x128xbf16>
    %22 = vector.shape_cast %21 : vector<1x128x128xbf16> to vector<128x128xbf16>
    %cst_44 = arith.constant dense<0.000000e+00> : vector<16x128xf32>
    %23 = tpu.matmul %20, %22, %cst_44 {dimension_numbers = #tpu.dot_dimension_numbers<[1], [0], [0], [1], [0, 0, 1, 1], [], []>} : vector<16x128xbf16>, vector<128x128xbf16>, vector<16x128xf32> -> vector<16x128xf32>
    %24 = arith.addf %18, %23 : vector<16x128xf32>
    %c0_45 = arith.constant 0 : index
    %c1_46 = arith.constant 1 : index
    %c0_47 = arith.constant 0 : index
    %c0_48 = arith.constant 0 : index
    %25 = vector.load %arg6[%c0_45, %c1_46, %c0_47, %c0_48] : memref<1x6x6x128xbf16, #tpu.memory_space<vmem>>, vector<1x4x4x128xbf16>
    %26 = vector.shape_cast %25 : vector<1x4x4x128xbf16> to vector<16x128xbf16>
    %c3 = arith.constant 3 : index
    %c0_49 = arith.constant 0 : index
    %c0_50 = arith.constant 0 : index
    %27 = vector.load %arg2[%c3, %c0_49, %c0_50] : memref<9x128x128xbf16, #tpu.memory_space<vmem>>, vector<1x128x128xbf16>
    %28 = vector.shape_cast %27 : vector<1x128x128xbf16> to vector<128x128xbf16>
    %cst_51 = arith.constant dense<0.000000e+00> : vector<16x128xf32>
    %29 = tpu.matmul %26, %28, %cst_51 {dimension_numbers = #tpu.dot_dimension_numbers<[1], [0], [0], [1], [0, 0, 1, 1], [], []>} : vector<16x128xbf16>, vector<128x128xbf16>, vector<16x128xf32> -> vector<16x128xf32>
    %30 = arith.addf %24, %29 : vector<16x128xf32>
    %c0_52 = arith.constant 0 : index
    %c1_53 = arith.constant 1 : index
    %c1_54 = arith.constant 1 : index
    %c0_55 = arith.constant 0 : index
    %31 = vector.load %arg6[%c0_52, %c1_53, %c1_54, %c0_55] : memref<1x6x6x128xbf16, #tpu.memory_space<vmem>>, vector<1x4x4x128xbf16>
    %32 = vector.shape_cast %31 : vector<1x4x4x128xbf16> to vector<16x128xbf16>
    %c4 = arith.constant 4 : index
    %c0_56 = arith.constant 0 : index
    %c0_57 = arith.constant 0 : index
    %33 = vector.load %arg2[%c4, %c0_56, %c0_57] : memref<9x128x128xbf16, #tpu.memory_space<vmem>>, vector<1x128x128xbf16>
    %34 = vector.shape_cast %33 : vector<1x128x128xbf16> to vector<128x128xbf16>
    %cst_58 = arith.constant dense<0.000000e+00> : vector<16x128xf32>
    %35 = tpu.matmul %32, %34, %cst_58 {dimension_numbers = #tpu.dot_dimension_numbers<[1], [0], [0], [1], [0, 0, 1, 1], [], []>} : vector<16x128xbf16>, vector<128x128xbf16>, vector<16x128xf32> -> vector<16x128xf32>
    %36 = arith.addf %30, %35 : vector<16x128xf32>
    %c0_59 = arith.constant 0 : index
    %c1_60 = arith.constant 1 : index
    %c2_61 = arith.constant 2 : index
    %c0_62 = arith.constant 0 : index
    %37 = vector.load %arg6[%c0_59, %c1_60, %c2_61, %c0_62] : memref<1x6x6x128xbf16, #tpu.memory_space<vmem>>, vector<1x4x4x128xbf16>
    %38 = vector.shape_cast %37 : vector<1x4x4x128xbf16> to vector<16x128xbf16>
    %c5_63 = arith.constant 5 : index
    %c0_64 = arith.constant 0 : index
    %c0_65 = arith.constant 0 : index
    %39 = vector.load %arg2[%c5_63, %c0_64, %c0_65] : memref<9x128x128xbf16, #tpu.memory_space<vmem>>, vector<1x128x128xbf16>
    %40 = vector.shape_cast %39 : vector<1x128x128xbf16> to vector<128x128xbf16>
    %cst_66 = arith.constant dense<0.000000e+00> : vector<16x128xf32>
    %41 = tpu.matmul %38, %40, %cst_66 {dimension_numbers = #tpu.dot_dimension_numbers<[1], [0], [0], [1], [0, 0, 1, 1], [], []>} : vector<16x128xbf16>, vector<128x128xbf16>, vector<16x128xf32> -> vector<16x128xf32>
    %42 = arith.addf %36, %41 : vector<16x128xf32>
    %c0_67 = arith.constant 0 : index
    %c2_68 = arith.constant 2 : index
    %c0_69 = arith.constant 0 : index
    %c0_70 = arith.constant 0 : index
    %43 = vector.load %arg6[%c0_67, %c2_68, %c0_69, %c0_70] : memref<1x6x6x128xbf16, #tpu.memory_space<vmem>>, vector<1x4x4x128xbf16>
    %44 = vector.shape_cast %43 : vector<1x4x4x128xbf16> to vector<16x128xbf16>
    %c6 = arith.constant 6 : index
    %c0_71 = arith.constant 0 : index
    %c0_72 = arith.constant 0 : index
    %45 = vector.load %arg2[%c6, %c0_71, %c0_72] : memref<9x128x128xbf16, #tpu.memory_space<vmem>>, vector<1x128x128xbf16>
    %46 = vector.shape_cast %45 : vector<1x128x128xbf16> to vector<128x128xbf16>
    %cst_73 = arith.constant dense<0.000000e+00> : vector<16x128xf32>
    %47 = tpu.matmul %44, %46, %cst_73 {dimension_numbers = #tpu.dot_dimension_numbers<[1], [0], [0], [1], [0, 0, 1, 1], [], []>} : vector<16x128xbf16>, vector<128x128xbf16>, vector<16x128xf32> -> vector<16x128xf32>
    %48 = arith.addf %42, %47 : vector<16x128xf32>
    %c0_74 = arith.constant 0 : index
    %c2_75 = arith.constant 2 : index
    %c1_76 = arith.constant 1 : index
    %c0_77 = arith.constant 0 : index
    %49 = vector.load %arg6[%c0_74, %c2_75, %c1_76, %c0_77] : memref<1x6x6x128xbf16, #tpu.memory_space<vmem>>, vector<1x4x4x128xbf16>
    %50 = vector.shape_cast %49 : vector<1x4x4x128xbf16> to vector<16x128xbf16>
    %c7 = arith.constant 7 : index
    %c0_78 = arith.constant 0 : index
    %c0_79 = arith.constant 0 : index
    %51 = vector.load %arg2[%c7, %c0_78, %c0_79] : memref<9x128x128xbf16, #tpu.memory_space<vmem>>, vector<1x128x128xbf16>
    %52 = vector.shape_cast %51 : vector<1x128x128xbf16> to vector<128x128xbf16>
    %cst_80 = arith.constant dense<0.000000e+00> : vector<16x128xf32>
    %53 = tpu.matmul %50, %52, %cst_80 {dimension_numbers = #tpu.dot_dimension_numbers<[1], [0], [0], [1], [0, 0, 1, 1], [], []>} : vector<16x128xbf16>, vector<128x128xbf16>, vector<16x128xf32> -> vector<16x128xf32>
    %54 = arith.addf %48, %53 : vector<16x128xf32>
    %c0_81 = arith.constant 0 : index
    %c2_82 = arith.constant 2 : index
    %c2_83 = arith.constant 2 : index
    %c0_84 = arith.constant 0 : index
    %55 = vector.load %arg6[%c0_81, %c2_82, %c2_83, %c0_84] : memref<1x6x6x128xbf16, #tpu.memory_space<vmem>>, vector<1x4x4x128xbf16>
    %56 = vector.shape_cast %55 : vector<1x4x4x128xbf16> to vector<16x128xbf16>
    %c8 = arith.constant 8 : index
    %c0_85 = arith.constant 0 : index
    %c0_86 = arith.constant 0 : index
    %57 = vector.load %arg2[%c8, %c0_85, %c0_86] : memref<9x128x128xbf16, #tpu.memory_space<vmem>>, vector<1x128x128xbf16>
    %58 = vector.shape_cast %57 : vector<1x128x128xbf16> to vector<128x128xbf16>
    %cst_87 = arith.constant dense<0.000000e+00> : vector<16x128xf32>
    %59 = tpu.matmul %56, %58, %cst_87 {dimension_numbers = #tpu.dot_dimension_numbers<[1], [0], [0], [1], [0, 0, 1, 1], [], []>} : vector<16x128xbf16>, vector<128x128xbf16>, vector<16x128xf32> -> vector<16x128xf32>
    %60 = arith.addf %54, %59 : vector<16x128xf32>
    %61 = vector.shape_cast %60 : vector<16x128xf32> to vector<1x16x128xf32>
    %cst_88 = arith.constant dense<0.000000e+00> : vector<1x128xf32>
    %62 = vector.multi_reduction <add>, %61, %cst_88 [1] : vector<1x16x128xf32> to vector<1x128xf32>
    %63 = vector.shape_cast %62 : vector<1x128xf32> to vector<1x1x128xf32>
    %64 = arith.mulf %61, %61 : vector<1x16x128xf32>
    %cst_89 = arith.constant dense<0.000000e+00> : vector<1x128xf32>
    %65 = vector.multi_reduction <add>, %64, %cst_89 [1] : vector<1x16x128xf32> to vector<1x128xf32>
    %66 = vector.shape_cast %65 : vector<1x128xf32> to vector<1x1x128xf32>
    %cst_90 = arith.constant 6.250000e-02 : f32
    %67 = vector.broadcast %cst_90 : f32 to vector<1x1x128xf32>
    %68 = arith.mulf %63, %67 : vector<1x1x128xf32>
    %cst_91 = arith.constant 6.250000e-02 : f32
    %69 = vector.broadcast %cst_91 : f32 to vector<1x1x128xf32>
    %70 = arith.mulf %66, %69 : vector<1x1x128xf32>
    %71 = arith.mulf %68, %68 : vector<1x1x128xf32>
    %72 = arith.subf %70, %71 : vector<1x1x128xf32>
    %cst_92 = arith.constant 0.000000e+00 : f32
    %73 = vector.broadcast %cst_92 : f32 to vector<1x1x128xf32>
    %74 = arith.maximumf %72, %73 : vector<1x1x128xf32>
    %75 = vector.broadcast %68 : vector<1x1x128xf32> to vector<1x16x128xf32>
    %76 = arith.subf %61, %75 : vector<1x16x128xf32>
    %cst_93 = arith.constant 9.99999974E-6 : f32
    %77 = vector.broadcast %cst_93 : f32 to vector<1x1x128xf32>
    %78 = arith.addf %74, %77 : vector<1x1x128xf32>
    %79 = math.rsqrt %78 : vector<1x1x128xf32>
    %80 = vector.broadcast %79 : vector<1x1x128xf32> to vector<1x16x128xf32>
    %81 = arith.mulf %76, %80 : vector<1x16x128xf32>
    %c0_94 = arith.constant 0 : index
    %c0_95 = arith.constant 0 : index
    %82 = vector.load %arg3[%c0_94, %c0_95] : memref<1x128xf32, #tpu.memory_space<vmem>>, vector<1x128xf32>
    %83 = vector.shape_cast %82 : vector<1x128xf32> to vector<1x1x128xf32>
    %84 = vector.broadcast %83 : vector<1x1x128xf32> to vector<1x16x128xf32>
    %85 = arith.mulf %81, %84 : vector<1x16x128xf32>
    %c0_96 = arith.constant 0 : index
    %c0_97 = arith.constant 0 : index
    %86 = vector.load %arg4[%c0_96, %c0_97] : memref<1x128xf32, #tpu.memory_space<vmem>>, vector<1x128xf32>
    %87 = vector.shape_cast %86 : vector<1x128xf32> to vector<1x1x128xf32>
    %88 = vector.broadcast %87 : vector<1x1x128xf32> to vector<1x16x128xf32>
    %89 = arith.addf %85, %88 : vector<1x16x128xf32>
    %cst_98 = arith.constant 0.000000e+00 : f32
    %90 = vector.broadcast %cst_98 : f32 to vector<1x16x128xf32>
    %91 = arith.cmpf ogt, %89, %90 : vector<1x16x128xf32>
    %cst_99 = arith.constant 0.00999999977 : f32
    %92 = vector.broadcast %cst_99 : f32 to vector<1x16x128xf32>
    %93 = arith.mulf %92, %89 : vector<1x16x128xf32>
    %94 = arith.select %91, %89, %93 : vector<1x16x128xi1>, vector<1x16x128xf32>
    %95 = vector.extract_strided_slice %94 {offsets = [0, 0, 0], sizes = [1, 4, 128], strides = [1, 1, 1]} : vector<1x16x128xf32> to vector<1x4x128xf32>
    %c0_100 = arith.constant 0 : index
    %c0_101 = arith.constant 0 : index
    %c0_102 = arith.constant 0 : index
    %c0_103 = arith.constant 0 : index
    %96 = vector.load %arg7[%c0_100, %c0_101, %c0_102, %c0_103] : memref<1x4x4x128xf32, #tpu.memory_space<vmem>>, vector<1x1x4x128xf32>
    %97 = vector.shape_cast %96 : vector<1x1x4x128xf32> to vector<1x4x128xf32>
    %98 = vector.shape_cast %95 : vector<1x4x128xf32> to vector<1x1x4x128xf32>
    tpu.vector_store %arg7[%c0_100, %c0_101, %c0_102, %c0_103], %98 {strides = array<i32>} : memref<1x4x4x128xf32, #tpu.memory_space<vmem>>, vector<1x1x4x128xf32>,
    %99 = vector.extract_strided_slice %94 {offsets = [0, 4, 0], sizes = [1, 4, 128], strides = [1, 1, 1]} : vector<1x16x128xf32> to vector<1x4x128xf32>
    %c0_104 = arith.constant 0 : index
    %c1_105 = arith.constant 1 : index
    %c0_106 = arith.constant 0 : index
    %c0_107 = arith.constant 0 : index
    %100 = vector.load %arg7[%c0_104, %c1_105, %c0_106, %c0_107] : memref<1x4x4x128xf32, #tpu.memory_space<vmem>>, vector<1x1x4x128xf32>
    %101 = vector.shape_cast %100 : vector<1x1x4x128xf32> to vector<1x4x128xf32>
    %102 = vector.shape_cast %99 : vector<1x4x128xf32> to vector<1x1x4x128xf32>
    tpu.vector_store %arg7[%c0_104, %c1_105, %c0_106, %c0_107], %102 {strides = array<i32>} : memref<1x4x4x128xf32, #tpu.memory_space<vmem>>, vector<1x1x4x128xf32>,
    %103 = vector.extract_strided_slice %94 {offsets = [0, 8, 0], sizes = [1, 4, 128], strides = [1, 1, 1]} : vector<1x16x128xf32> to vector<1x4x128xf32>
    %c0_108 = arith.constant 0 : index
    %c2_109 = arith.constant 2 : index
    %c0_110 = arith.constant 0 : index
    %c0_111 = arith.constant 0 : index
    %104 = vector.load %arg7[%c0_108, %c2_109, %c0_110, %c0_111] : memref<1x4x4x128xf32, #tpu.memory_space<vmem>>, vector<1x1x4x128xf32>
    %105 = vector.shape_cast %104 : vector<1x1x4x128xf32> to vector<1x4x128xf32>
    %106 = vector.shape_cast %103 : vector<1x4x128xf32> to vector<1x1x4x128xf32>
    tpu.vector_store %arg7[%c0_108, %c2_109, %c0_110, %c0_111], %106 {strides = array<i32>} : memref<1x4x4x128xf32, #tpu.memory_space<vmem>>, vector<1x1x4x128xf32>,
    %107 = vector.extract_strided_slice %94 {offsets = [0, 12, 0], sizes = [1, 4, 128], strides = [1, 1, 1]} : vector<1x16x128xf32> to vector<1x4x128xf32>
    %c0_112 = arith.constant 0 : index
    %c3_113 = arith.constant 3 : index
    %c0_114 = arith.constant 0 : index
    %c0_115 = arith.constant 0 : index
    %108 = vector.load %arg7[%c0_112, %c3_113, %c0_114, %c0_115] : memref<1x4x4x128xf32, #tpu.memory_space<vmem>>, vector<1x1x4x128xf32>
    %109 = vector.shape_cast %108 : vector<1x1x4x128xf32> to vector<1x4x128xf32>
    %110 = vector.shape_cast %107 : vector<1x4x128xf32> to vector<1x1x4x128xf32>
    tpu.vector_store %arg7[%c0_112, %c3_113, %c0_114, %c0_115], %110 {strides = array<i32>} : memref<1x4x4x128xf32, #tpu.memory_space<vmem>>, vector<1x1x4x128xf32>,
    %c0_116 = arith.constant 0 : index
    %c0_117 = arith.constant 0 : index
    %c0_118 = arith.constant 0 : index
    %c0_119 = arith.constant 0 : index
    %111 = tpu.strided_load %arg7[%c0_116, %c0_117, %c0_118, %c0_119] {strides = array<i32: 1, 1, 2, 1>} : memref<1x4x4x128xf32, #tpu.memory_space<vmem>>, vector<1x4x2x128xf32>
    %c0_120 = arith.constant 0 : index
    %c0_121 = arith.constant 0 : index
    %c1_122 = arith.constant 1 : index
    %c0_123 = arith.constant 0 : index
    %112 = tpu.strided_load %arg7[%c0_120, %c0_121, %c1_122, %c0_123] {strides = array<i32: 1, 1, 2, 1>} : memref<1x4x4x128xf32, #tpu.memory_space<vmem>>, vector<1x4x2x128xf32>
    %113 = arith.addf %111, %112 : vector<1x4x2x128xf32>
    %114 = vector.shape_cast %113 : vector<1x4x2x128xf32> to vector<2x2x2x128xf32>
    %115 = vector.extract_strided_slice %114 {offsets = [0, 0, 0, 0], sizes = [2, 1, 2, 128], strides = [1, 1, 1, 1]} : vector<2x2x2x128xf32> to vector<2x1x2x128xf32>
    %116 = vector.shape_cast %115 : vector<2x1x2x128xf32> to vector<2x2x128xf32>
    %117 = vector.extract_strided_slice %114 {offsets = [0, 1, 0, 0], sizes = [2, 1, 2, 128], strides = [1, 1, 1, 1]} : vector<2x2x2x128xf32> to vector<2x1x2x128xf32>
    %118 = vector.shape_cast %117 : vector<2x1x2x128xf32> to vector<2x2x128xf32>
    %119 = arith.addf %116, %118 : vector<2x2x128xf32>
    %120 = vector.shape_cast %119 : vector<2x2x128xf32> to vector<1x2x2x128xf32>
    %cst_124 = arith.constant 2.500000e-01 : f32
    %121 = vector.broadcast %cst_124 : f32 to vector<1x2x2x128xf32>
    %122 = arith.mulf %121, %120 : vector<1x2x2x128xf32>
    %123 = arith.truncf %122 : vector<1x2x2x128xf32> to vector<1x2x2x128xbf16>
    %c0_125 = arith.constant 0 : index
    %c0_126 = arith.constant 0 : index
    %c0_127 = arith.constant 0 : index
    %c0_128 = arith.constant 0 : index
    %124 = vector.load %arg5[%c0_125, %c0_126, %c0_127, %c0_128] : memref<1x2x2x128xbf16, #tpu.memory_space<vmem>>, vector<1x2x2x128xbf16>
    tpu.vector_store %arg5[%c0_125, %c0_126, %c0_127, %c0_128], %123 {strides = array<i32>} : memref<1x2x2x128xbf16, #tpu.memory_space<vmem>>, vector<1x2x2x128xbf16>,
    return
  }
  func.func @transform_0(%arg0: i32) -> (i32, i32, i32, i32) {
    %c0_i32 = arith.constant 0 : i32
    %c0_i32_0 = arith.constant 0 : i32
    %c0_i32_1 = arith.constant 0 : i32
    %c0_i32_2 = arith.constant 0 : i32
    return %arg0, %c0_i32, %c0_i32_0, %c0_i32_1 : i32, i32, i32, i32
  }
  func.func @transform_1(%arg0: i32) -> (i32, i32, i32) {
    %c0_i32 = arith.constant 0 : i32
    %c0_i32_0 = arith.constant 0 : i32
    %c0_i32_1 = arith.constant 0 : i32
    %c0_i32_2 = arith.constant 0 : i32
    return %c0_i32, %c0_i32_0, %c0_i32_1 : i32, i32, i32
  }
  func.func @transform_2(%arg0: i32) -> (i32, i32) {
    %c0_i32 = arith.constant 0 : i32
    %c0_i32_0 = arith.constant 0 : i32
    %c0_i32_1 = arith.constant 0 : i32
    return %c0_i32, %c0_i32_0 : i32, i32
  }
  func.func @transform_3(%arg0: i32) -> (i32, i32) {
    %c0_i32 = arith.constant 0 : i32
    %c0_i32_0 = arith.constant 0 : i32
    %c0_i32_1 = arith.constant 0 : i32
    return %c0_i32, %c0_i32_0 : i32, i32
  }
  func.func @transform_4(%arg0: i32) -> (i32, i32, i32, i32) {
    %c0_i32 = arith.constant 0 : i32
    %c0_i32_0 = arith.constant 0 : i32
    %c0_i32_1 = arith.constant 0 : i32
    %c0_i32_2 = arith.constant 0 : i32
    return %arg0, %c0_i32, %c0_i32_0, %c0_i32_1 : i32, i32, i32, i32
  }
}

module attributes {stable_mosaic.version = 11 : i64} {
  func.func @_heads_kernel(%arg0: i32, %arg1: memref<2x512xbf16, #tpu.memory_space<vmem>>, %arg2: memref<512x128xbf16, #tpu.memory_space<vmem>>, %arg3: memref<1x128xf32, #tpu.memory_space<vmem>>, %arg4: memref<2x128xf32, #tpu.memory_space<vmem>>) attributes {dimension_semantics = [#tpu.dimension_semantics<parallel>], iteration_bounds = array<i64: 1>, scalar_prefetch = 0 : i64, scratch_operands = 0 : i64, tpu.core_type = #tpu.core_type<tc>, window_params = [{transform_indices = @transform_0, window_bounds = array<i64: 2, 512>}, {pipeline_mode = #tpu.pipeline_mode<synchronous>, transform_indices = @transform_1, window_bounds = array<i64: 512, 128>}, {pipeline_mode = #tpu.pipeline_mode<synchronous>, transform_indices = @transform_2, window_bounds = array<i64: 1, 128>}, {transform_indices = @transform_3, window_bounds = array<i64: 2, 128>}]} {
    %c0 = arith.constant 0 : index
    %c0_0 = arith.constant 0 : index
    %0 = vector.load %arg1[%c0, %c0_0] : memref<2x512xbf16, #tpu.memory_space<vmem>>, vector<2x512xbf16>
    %c0_1 = arith.constant 0 : index
    %c0_2 = arith.constant 0 : index
    %1 = vector.load %arg2[%c0_1, %c0_2] : memref<512x128xbf16, #tpu.memory_space<vmem>>, vector<512x128xbf16>
    %cst = arith.constant dense<0.000000e+00> : vector<2x128xf32>
    %2 = tpu.matmul %0, %1, %cst {dimension_numbers = #tpu.dot_dimension_numbers<[1], [0], [0], [1], [0, 0, 1, 1], [], []>} : vector<2x512xbf16>, vector<512x128xbf16>, vector<2x128xf32> -> vector<2x128xf32>
    %c0_3 = arith.constant 0 : index
    %c0_4 = arith.constant 0 : index
    %3 = vector.load %arg3[%c0_3, %c0_4] : memref<1x128xf32, #tpu.memory_space<vmem>>, vector<1x128xf32>
    %4 = vector.broadcast %3 : vector<1x128xf32> to vector<2x128xf32>
    %5 = arith.addf %2, %4 : vector<2x128xf32>
    %c0_5 = arith.constant 0 : index
    %c0_6 = arith.constant 0 : index
    %6 = vector.load %arg4[%c0_5, %c0_6] : memref<2x128xf32, #tpu.memory_space<vmem>>, vector<2x128xf32>
    tpu.vector_store %arg4[%c0_5, %c0_6], %5 {strides = array<i32>} : memref<2x128xf32, #tpu.memory_space<vmem>>, vector<2x128xf32>,
    return
  }
  func.func @transform_0(%arg0: i32) -> (i32, i32) {
    %c0_i32 = arith.constant 0 : i32
    %c0_i32_0 = arith.constant 0 : i32
    return %arg0, %c0_i32 : i32, i32
  }
  func.func @transform_1(%arg0: i32) -> (i32, i32) {
    %c0_i32 = arith.constant 0 : i32
    %c0_i32_0 = arith.constant 0 : i32
    %c0_i32_1 = arith.constant 0 : i32
    return %c0_i32, %c0_i32_0 : i32, i32
  }
  func.func @transform_2(%arg0: i32) -> (i32, i32) {
    %c0_i32 = arith.constant 0 : i32
    %c0_i32_0 = arith.constant 0 : i32
    %c0_i32_1 = arith.constant 0 : i32
    return %c0_i32, %c0_i32_0 : i32, i32
  }
  func.func @transform_3(%arg0: i32) -> (i32, i32) {
    %c0_i32 = arith.constant 0 : i32
    %c0_i32_0 = arith.constant 0 : i32
    return %arg0, %c0_i32 : i32, i32
  }
}

</mosaic_0001>

<llo_original>
// kernel: _lambda_.4
$region0: #{_lambda_.4}
  #allocation0 [shape = 'u32[]', space=smem, size = 0x4, offset = 0x4, fixed_abs, tag = 'smem constant byte address 0x4 - core index']
  #allocation1 [shape = 'u32[144,128]{1,0:T(1,128)}', space=vmem, size = 0x12000, scoped, tag = 'internal scratch']
  #allocation2 [shape = 'f32[1,16,16,128]{3,2,1,0:T(8,128)}', space=vmem, size = 0x20000, scoped, tag = 'scratch operand']
  %s0 = inlined_call_operand.vmem [shape: bf16[2,256,32], index: 0, kind: input, shape index: {}]
  %s1 = inlined_call_operand.vmem [shape: bf16[32,128], index: 1, kind: input, shape index: {}]
  %s2 = inlined_call_operand.vmem [shape: f32[1,128], index: 2, kind: input, shape index: {}]
  %s3 = inlined_call_operand.vmem [shape: f32[1,128], index: 3, kind: input, shape index: {}]
  %s4 = inlined_call_operand.vmem [shape: bf16[2,8,8,128], index: 4, kind: output, shape index: {}]
  %s5 = sld [smem:[#allocation0]]
  $region49: #{_lambda_.4} parent=0
    _
  %s7 = ssub.s32 1, %s5
  %s8 = scalar_select 0, %s7, %s5
  loop: start=0, step=1, limit=4
  $region2: #{_lambda_.4} parent=0 // loop_pre_header
    _
  $region3: #{_lambda_.4} parent=0 // loop_header
    %s10 = sphi 0, %s14
    %p11 = scmp.ge.s32.totalorder %s10, 4
    %s20 = sphi 0, %s22
    %s23 = sphi 0, %s20
    %s24 = sphi 0, %s23
    %s40 = sphi 0, %s24
    %s44 = sphi 0, %s44
    %s46 = sphi 0, %s44
    %s47 = sphi 0, %s46
    %s61 = sphi 0, %s47
    %s65 = sphi 0, %s65
    %s67 = sphi 0, %s65
    %s68 = sphi 0, %s67
    %s82 = sphi 0, %s68
    %s86 = sphi 0, %s86
    %s88 = sphi 0, %s86
    %s89 = sphi 0, %s88
    %s103 = sphi 0, %s89
    %s109 = sphi 0, %s111
    %s112 = sphi 0, %s109
    %s113 = sphi 0, %s112
    %s129 = sphi 0, %s113
  $region4: #{_lambda_.4} parent=0 // loop_header_branch
    %13 = sbr.rel (%p11) target = $region8
  $region5: #{_lambda_.4} parent=0 // loop_body
    %s15 = ssub.s32 %s10, 1
    %s16 = ssub.s32 %s10, 2
    %s17 = sadd.s32 %s10, 1
    %s18 = ssub.s32 %s10, %s17
    %p19 = scmp.eq.s32.totalorder %s18, 0
    %s21 = sadd.s32 %s20, 1
    %s22 = scalar_select %p19, %s20, %s21
    %p25 = pneg %p19
    %p26 = scmp.eq.s32.totalorder %s10, 1
    %p27 = por %p25, %p26
    %p28 = scmp.ne.s32.totalorder %s20, %s23
    %p29 = scmp.eq.s32.totalorder %s10, 0
    %p30 = por %p28, %p29
    %p31 = scmp.ne.s32.totalorder %s20, %s23
    %p32 = scmp.eq.s32.totalorder %s15, 1
    %p33 = por %p31, %p32
    %p34 = scmp.ne.s32.totalorder %s23, %s24
    %p35 = scmp.eq.s32.totalorder %s15, 0
    %p36 = por %p34, %p35
    %p37 = scmp.ne.s32.totalorder %s23, %s24
    %p38 = scmp.eq.s32.totalorder %s16, 1
    %p39 = por %p37, %p38
    %p41 = scmp.ne.s32.totalorder %s24, %s40
    %p42 = scmp.eq.s32.totalorder %s16, 0
    %p43 = por %p41, %p42
    %s45 = sadd.s32 %s44, 1
    %p48 = scmp.eq.s32.totalorder %s10, 1
    %p49 = scmp.ne.s32.totalorder %s44, %s46
    %p50 = scmp.eq.s32.totalorder %s10, 0
    %p51 = por %p49, %p50
    %p52 = scmp.ne.s32.totalorder %s44, %s46
    %p53 = scmp.eq.s32.totalorder %s15, 1
    %p54 = por %p52, %p53
    %p55 = scmp.ne.s32.totalorder %s46, %s47
    %p56 = scmp.eq.s32.totalorder %s15, 0
    %p57 = por %p55, %p56
    %p58 = scmp.ne.s32.totalorder %s46, %s47
    %p59 = scmp.eq.s32.totalorder %s16, 1
    %p60 = por %p58, %p59
    %p62 = scmp.ne.s32.totalorder %s47, %s61
    %p63 = scmp.eq.s32.totalorder %s16, 0
    %p64 = por %p62, %p63
    %s66 = sadd.s32 %s65, 1
    %p69 = scmp.eq.s32.totalorder %s10, 1
    %p70 = scmp.ne.s32.totalorder %s65, %s67
    %p71 = scmp.eq.s32.totalorder %s10, 0
    %p72 = por %p70, %p71
    %p73 = scmp.ne.s32.totalorder %s65, %s67
    %p74 = scmp.eq.s32.totalorder %s15, 1
    %p75 = por %p73, %p74
    %p76 = scmp.ne.s32.totalorder %s67, %s68
    %p77 = scmp.eq.s32.totalorder %s15, 0
    %p78 = por %p76, %p77
    %p79 = scmp.ne.s32.totalorder %s67, %s68
    %p80 = scmp.eq.s32.totalorder %s16, 1
    %p81 = por %p79, %p80
    %p83 = scmp.ne.s32.totalorder %s68, %s82
    %p84 = scmp.eq.s32.totalorder %s16, 0
    %p85 = por %p83, %p84
    %s87 = sadd.s32 %s86, 1
    %p90 = scmp.eq.s32.totalorder %s10, 1
    %p91 = scmp.ne.s32.totalorder %s86, %s88
    %p92 = scmp.eq.s32.totalorder %s10, 0
    %p93 = por %p91, %p92
    %p94 = scmp.ne.s32.totalorder %s86, %s88
    %p95 = scmp.eq.s32.totalorder %s15, 1
    %p96 = por %p94, %p95
    %p97 = scmp.ne.s32.totalorder %s88, %s89
    %p98 = scmp.eq.s32.totalorder %s15, 0
    %p99 = por %p97, %p98
    %p100 = scmp.ne.s32.totalorder %s88, %s89
    %p101 = scmp.eq.s32.totalorder %s16, 1
    %p102 = por %p100, %p101
    %p104 = scmp.ne.s32.totalorder %s89, %s103
    %p105 = scmp.eq.s32.totalorder %s16, 0
    %p106 = por %p104, %p105
    %s107 = ssub.s32 %s10, %s17
    %p108 = scmp.eq.s32.totalorder %s107, 0
    %s110 = sadd.s32 %s109, 1
    %s111 = scalar_select %p108, %s109, %s110
    %p114 = pneg %p108
    %p115 = scmp.eq.s32.totalorder %s10, 1
    %p116 = por %p114, %p115
    %p117 = scmp.ne.s32.totalorder %s109, %s112
    %p118 = scmp.eq.s32.totalorder %s10, 0
    %p119 = por %p117, %p118
    %p120 = scmp.ne.s32.totalorder %s109, %s112
    %p121 = scmp.eq.s32.totalorder %s15, 1
    %p122 = por %p120, %p121
    %p123 = scmp.ne.s32.totalorder %s112, %s113
    %p124 = scmp.eq.s32.totalorder %s15, 0
    %p125 = por %p123, %p124
    %p126 = scmp.ne.s32.totalorder %s112, %s113
    %p127 = scmp.eq.s32.totalorder %s16, 1
    %p128 = por %p126, %p127
    %p130 = scmp.ne.s32.totalorder %s113, %s129
    %p131 = scmp.eq.s32.totalorder %s16, 0
    %p132 = por %p130, %p131
    %p133 = scmp.le.s32.totalorder 1, %s10
    %p134 = scmp.lt.s32.totalorder %s10, 3
    %p135 = pnand %p133, %p134
    %p136 = pneg %p135
    // Predicated region
    $region9: #{_lambda_.4} parent=5 // pred_check
      _
    $region10: #{_lambda_.4} parent=5 // pred_check_branch
      %138 = sbr.rel (%p135) target = $region12
    $region11: #{_lambda_.4} parent=5 // pred_region
      %s139 = ssub.s32 %s10, 1
      // Predicated region
      $region13: #{_lambda_.4} parent=11 // pred_check
        %p140 = pneg %p57
      $region14: #{_lambda_.4} parent=11 // pred_check_branch
        %142 = sbr.rel (%p140) target = $region16
      $region15: #{_lambda_.4} parent=11 // pred_region
        _
      $region16: #{_lambda_.4} parent=11 // pred_fallthru
        _
      // Predicated region
      $region17: #{_lambda_.4} parent=11 // pred_check
        %p143 = pneg %p78
      $region18: #{_lambda_.4} parent=11 // pred_check_branch
        %145 = sbr.rel (%p143) target = $region20
      $region19: #{_lambda_.4} parent=11 // pred_region
        _
      $region20: #{_lambda_.4} parent=11 // pred_fallthru
        _
      // Predicated region
      $region21: #{_lambda_.4} parent=11 // pred_check
        %p146 = pneg %p99
      $region22: #{_lambda_.4} parent=11 // pred_check_branch
        %148 = sbr.rel (%p146) target = $region24
      $region23: #{_lambda_.4} parent=11 // pred_region
        _
      $region24: #{_lambda_.4} parent=11 // pred_fallthru
        _
    $region12: #{_lambda_.4} parent=5 // pred_fallthru
      _
    %p149 = scmp.lt.s32.totalorder %s10, 2
    // Predicated region
    $region25: #{_lambda_.4} parent=5 // pred_check
      %p150 = pneg %p149
    $region26: #{_lambda_.4} parent=5 // pred_check_branch
      %152 = sbr.rel (%p150) target = $region28
    $region27: #{_lambda_.4} parent=5 // pred_region
      // Predicated region
      $region29: #{_lambda_.4} parent=27 // pred_check
        %p153 = pneg %p30
      $region30: #{_lambda_.4} parent=27 // pred_check_branch
        %155 = sbr.rel (%p153) target = $region32
      $region31: #{_lambda_.4} parent=27 // pred_region
        %p156 = scmp.lt.s32.totalorder %s10, 1
        %s157 = scalar_select %p156, %s10, 1
        %s158 = smul.addr %s157, 32
        %s159 = smul.addr %s158, 4
        %s160 = scalar_lea.vmem %s0, %s159
      $region32: #{_lambda_.4} parent=27 // pred_fallthru
        _
    $region28: #{_lambda_.4} parent=5 // pred_fallthru
      _
    %p161 = scmp.le.s32.totalorder 1, %s10
    %p162 = scmp.lt.s32.totalorder %s10, 3
    %p163 = pnand %p161, %p162
    %p164 = pneg %p163
    // Predicated region
    $region33: #{_lambda_.4} parent=5 // pred_check
      _
    $region34: #{_lambda_.4} parent=5 // pred_check_branch
      %166 = sbr.rel (%p163) target = $region36
    $region35: #{_lambda_.4} parent=5 // pred_region
      %s167 = ssub.s32 %s10, 1
      %p168 = scmp.lt.s32.totalorder %s15, 1
      %s169 = scalar_select %p168, %s15, 1
      %s170 = smul.addr %s169, 32
      %s171 = smul.addr %s170, 4
      %s172 = scalar_lea.vmem %s0, %s171
      %p173 = pneg %p36
      %p174 = pneg %p33
      %p175 = pneg %p57
      %p176 = pneg %p54
      %p177 = pneg %p78
      %p178 = pneg %p75
      %p179 = pneg %p99
      %p180 = pneg %p96
      %p181 = pneg %p125
      %p182 = pneg %p122
      %p183 = scmp.lt.s32.totalorder %s15, 1
      %s184 = scalar_select %p183, %s15, 1
      %s185 = smul.addr %s184, 8
      %s186 = smul.addr %s185, 4
      %s187 = scalar_lea.vmem %s4, %s186
      %p188 = scmp.lt.s32.totalorder %s15, 1
      %s189 = scalar_select %p188, %s15, 1
      %s190 = smul.addr %s189, 32
      %s191 = smul.addr %s190, 4
      %s192 = scalar_lea.vmem %s0, %s191
      %p193 = scmp.lt.s32.totalorder %s15, 1
      %s194 = scalar_select %p193, %s15, 1
      %s195 = smul.addr %s194, 8
      %s196 = smul.addr %s195, 4
      %s197 = scalar_lea.vmem %s4, %s196
      %v199 = vld [vmem:[%s192] sm:$0xf]
      %v200 = vld [vmem:[%s192 + $0x4] sm:$0xf]
      %v201 = vld [vmem:[%s192 + $0x8] sm:$0xf]
      %v202 = vld [vmem:[%s192 + $0xc] sm:$0xf]
      %v203 = vld [vmem:[%s192 + $0x10] sm:$0xf]
      %v204 = vld [vmem:[%s192 + $0x14] sm:$0xf]
      %v205 = vld [vmem:[%s192 + $0x18] sm:$0xf]
      %v206 = vld [vmem:[%s192 + $0x1c] sm:$0xf]
      %v207 = vld [vmem:[%s192 + $0x20] sm:$0xf]
      %v208 = vld [vmem:[%s192 + $0x24] sm:$0xf]
      %v209 = vld [vmem:[%s192 + $0x28] sm:$0xf]
      %v210 = vld [vmem:[%s192 + $0x2c] sm:$0xf]
      %v211 = vld [vmem:[%s192 + $0x30] sm:$0xf]
      %v212 = vld [vmem:[%s192 + $0x34] sm:$0xf]
      %v213 = vld [vmem:[%s192 + $0x38] sm:$0xf]
      %v214 = vld [vmem:[%s192 + $0x3c] sm:$0xf]
      %v215 = vld [vmem:[%s192 + $0x40] sm:$0xf]
      %v216 = vld [vmem:[%s192 + $0x44] sm:$0xf]
      %v217 = vld [vmem:[%s192 + $0x48] sm:$0xf]
      %v218 = vld [vmem:[%s192 + $0x4c] sm:$0xf]
      %v219 = vld [vmem:[%s192 + $0x50] sm:$0xf]
      %v220 = vld [vmem:[%s192 + $0x54] sm:$0xf]
      %v221 = vld [vmem:[%s192 + $0x58] sm:$0xf]
      %v222 = vld [vmem:[%s192 + $0x5c] sm:$0xf]
      %v223 = vld [vmem:[%s192 + $0x60] sm:$0xf]
      %v224 = vld [vmem:[%s192 + $0x64] sm:$0xf]
      %v225 = vld [vmem:[%s192 + $0x68] sm:$0xf]
      %v226 = vld [vmem:[%s192 + $0x6c] sm:$0xf]
      %v227 = vld [vmem:[%s192 + $0x70] sm:$0xf]
      %v228 = vld [vmem:[%s192 + $0x74] sm:$0xf]
      %v229 = vld [vmem:[%s192 + $0x78] sm:$0xf]
      %v230 = vld [vmem:[%s192 + $0x7c] sm:$0xf]
      %v231 = vld [vmem:[%s1] sm:$0xf]
      %v232 = vld [vmem:[%s1 + $0x4] sm:$0xf]
      %v233 = vld [vmem:[%s1 + $0x8] sm:$0xf]
      %v234 = vld [vmem:[%s1 + $0xc] sm:$0xf]
      %v267 = vunpack.c.l.b16 %v199
      %v268 = vunpack.c.l.b16 %v200
      %v269 = vunpack.c.l.b16 %v201
      %v270 = vunpack.c.l.b16 %v202
      %v271 = vunpack.c.l.b16 %v203
      %v272 = vunpack.c.l.b16 %v204
      %v273 = vunpack.c.l.b16 %v205
      %v274 = vunpack.c.l.b16 %v206
      %v275 = vunpack.c.l.b16 %v207
      %v276 = vunpack.c.l.b16 %v208
      %v277 = vunpack.c.l.b16 %v209
      %v278 = vunpack.c.l.b16 %v210
      %v279 = vunpack.c.l.b16 %v211
      %v280 = vunpack.c.l.b16 %v212
      %v281 = vunpack.c.l.b16 %v213
      %v282 = vunpack.c.l.b16 %v214
      %v283 = vunpack.c.l.b16 %v215
      %v284 = vunpack.c.l.b16 %v216
      %v285 = vunpack.c.l.b16 %v217
      %v286 = vunpack.c.l.b16 %v218
      %v287 = vunpack.c.l.b16 %v219
      %v288 = vunpack.c.l.b16 %v220
      %v289 = vunpack.c.l.b16 %v221
      %v290 = vunpack.c.l.b16 %v222
      %v291 = vunpack.c.l.b16 %v223
      %v292 = vunpack.c.l.b16 %v224
      %v293 = vunpack.c.l.b16 %v225
      %v294 = vunpack.c.l.b16 %v226
      %v295 = vunpack.c.l.b16 %v227
      %v296 = vunpack.c.l.b16 %v228
      %v297 = vunpack.c.l.b16 %v229
      %v298 = vunpack.c.l.b16 %v230
      %v299 = vpack.c.b16 %v268, %v267
      %v300 = vpack.c.b16 %v270, %v269
      %v301 = vpack.c.b16 %v272, %v271
      %v302 = vpack.c.b16 %v274, %v273
      %v303 = vpack.c.b16 %v276, %v275
      %v304 = vpack.c.b16 %v278, %v277
      %v305 = vpack.c.b16 %v280, %v279
      %v306 = vpack.c.b16 %v282, %v281
      %v307 = vpack.c.b16 %v284, %v283
      %v308 = vpack.c.b16 %v286, %v285
      %v309 = vpack.c.b16 %v288, %v287
      %v310 = vpack.c.b16 %v290, %v289
      %v311 = vpack.c.b16 %v292, %v291
      %v312 = vpack.c.b16 %v294, %v293
      %v313 = vpack.c.b16 %v296, %v295
      %v314 = vpack.c.b16 %v298, %v297
      %v319 = vunpack.c.l.b16 %v231
      %v320 = vunpack.c.l.b16 %v232
      %v321 = vunpack.c.l.b16 %v233
      %v322 = vunpack.c.l.b16 %v234
      %v323 = vpack.c.b16 %v320, %v319
      %v324 = vpack.c.b16 %v322, %v321
      %vm327 = vcmask 261120
      %v329 = vsel %vm327, %v299, 0
      %v332 = vsel %vm327, %v300, 0
      %v335 = vsel %vm327, %v301, 0
      %v338 = vsel %vm327, %v302, 0
      %v341 = vsel %vm327, %v303, 0
      %v344 = vsel %vm327, %v304, 0
      %v347 = vsel %vm327, %v305, 0
      %v350 = vsel %vm327, %v306, 0
      %v353 = vsel %vm327, %v307, 0
      %v356 = vsel %vm327, %v308, 0
      %v359 = vsel %vm327, %v309, 0
      %v362 = vsel %vm327, %v310, 0
      %v365 = vsel %vm327, %v311, 0
      %v368 = vsel %vm327, %v312, 0
      %v371 = vsel %vm327, %v313, 0
      %v374 = vsel %vm327, %v314, 0
      %376 = vmatprep.subr.bf16.mxu0 0
      %377 = vmatpush1.bf16.msra.mxu0 0
      %378 = vmatprep.subr.bf16.mxu0 0
      %379 = vmatpush1.bf16.msra.mxu0 0
      %380 = vmatprep.subr.bf16.mxu0 0
      %381 = vmatpush1.bf16.msra.mxu0 0
      %382 = vmatprep.subr.bf16.mxu0 0
      %383 = vmatpush1.bf16.msra.mxu0 0
      %384 = vmatprep.subr.bf16.mxu0 0
      %385 = vmatpush1.bf16.msra.mxu0 0
      %386 = vmatprep.subr.bf16.mxu0 0
      %387 = vmatpush1.bf16.msra.mxu0 0
      %388 = vmatprep.subr.bf16.mxu0 0
      %389 = vmatpush1.bf16.msra.mxu0 %v324
      %390 = vmatprep.subr.bf16.mxu0 0
      %391 = vmatpush1.bf16.msra.mxu0 %v323
      %392 = vmatprep.subr.bf16.mxu0 0
      %393 = vmatpush2.bf16.msra.mxu0 0
      %394 = vmatprep.subr.bf16.mxu0 0
      %395 = vmatpush2.bf16.msra.mxu0 0
      %396 = vmatprep.subr.bf16.mxu0 0
      %397 = vmatpush2.bf16.msra.mxu0 0
      %398 = vmatprep.subr.bf16.mxu0 0
      %399 = vmatpush2.bf16.msra.mxu0 0
      %400 = vmatprep.subr.bf16.mxu0 0
      %401 = vmatpush2.bf16.msra.mxu0 0
      %402 = vmatprep.subr.bf16.mxu0 0
      %403 = vmatpush2.bf16.msra.mxu0 0
      %404 = vmatprep.subr.bf16.mxu0 0
      %405 = vmatpush2.bf16.msra.mxu0 0
      %406 = vmatprep.subr.bf16.mxu0 0
      %407 = vmatpush2.bf16.msra.mxu0 0
      %408 = vmatprep.mubr.bf16.mxu0 0
      %409 = vmatmul.mubr.bf16.gmra.mxu0 %v329
      %v410 = vpop.f32.mrf.mxu0
      %v411 = vadd.f32 0.0, %v410
      %v412 = vpop.f32.mrf.mxu0
      %v413 = vpop.f32.mrf.mxu0
      %v414 = vadd.f32 0.0, %v413
      %v415 = vpop.f32.mrf.mxu0
      %416 = vmatprep.mubr.bf16.mxu0 0
      %417 = vmatmul.mubr.bf16.gmra.mxu0 %v332
      %v418 = vpop.f32.mrf.mxu0
      %v419 = vadd.f32 0.0, %v418
      %v420 = vpop.f32.mrf.mxu0
      %v421 = vpop.f32.mrf.mxu0
      %v422 = vadd.f32 0.0, %v421
      %v423 = vpop.f32.mrf.mxu0
      %424 = vmatprep.mubr.bf16.mxu0 0
      %425 = vmatmul.mubr.bf16.gmra.mxu0 %v335
      %v426 = vpop.f32.mrf.mxu0
      %v427 = vadd.f32 0.0, %v426
      %v428 = vpop.f32.mrf.mxu0
      %v429 = vpop.f32.mrf.mxu0
      %v430 = vadd.f32 0.0, %v429
      %v431 = vpop.f32.mrf.mxu0
      %432 = vmatprep.mubr.bf16.mxu0 0
      %433 = vmatmul.mubr.bf16.gmra.mxu0 %v338
      %v434 = vpop.f32.mrf.mxu0
      %v435 = vadd.f32 0.0, %v434
      %v436 = vpop.f32.mrf.mxu0
      %v437 = vpop.f32.mrf.mxu0
      %v438 = vadd.f32 0.0, %v437
      %v439 = vpop.f32.mrf.mxu0
      %440 = vmatprep.mubr.bf16.mxu0 0
      %441 = vmatmul.mubr.bf16.gmra.mxu0 %v341
      %v442 = vpop.f32.mrf.mxu0
      %v443 = vadd.f32 0.0, %v442
      %v444 = vpop.f32.mrf.mxu0
      %v445 = vpop.f32.mrf.mxu0
      %v446 = vadd.f32 0.0, %v445
      %v447 = vpop.f32.mrf.mxu0
      %448 = vmatprep.mubr.bf16.mxu0 0
      %449 = vmatmul.mubr.bf16.gmra.mxu0 %v344
      %v450 = vpop.f32.mrf.mxu0
      %v451 = vadd.f32 0.0, %v450
      %v452 = vpop.f32.mrf.mxu0
      %v453 = vpop.f32.mrf.mxu0
      %v454 = vadd.f32 0.0, %v453
      %v455 = vpop.f32.mrf.mxu0
      %456 = vmatprep.mubr.bf16.mxu0 0
      %457 = vmatmul.mubr.bf16.gmra.mxu0 %v347
      %v458 = vpop.f32.mrf.mxu0
      %v459 = vadd.f32 0.0, %v458
      %v460 = vpop.f32.mrf.mxu0
      %v461 = vpop.f32.mrf.mxu0
      %v462 = vadd.f32 0.0, %v461
      %v463 = vpop.f32.mrf.mxu0
      %464 = vmatprep.mubr.bf16.mxu0 0
      %465 = vmatmul.mubr.bf16.gmra.mxu0 %v350
      %v466 = vpop.f32.mrf.mxu0
      %v467 = vadd.f32 0.0, %v466
      %v468 = vpop.f32.mrf.mxu0
      %v469 = vpop.f32.mrf.mxu0
      %v470 = vadd.f32 0.0, %v469
      %v471 = vpop.f32.mrf.mxu0
      %472 = vmatprep.mubr.bf16.mxu0 0
      %473 = vmatmul.mubr.bf16.gmra.mxu0 %v353
      %v474 = vpop.f32.mrf.mxu0
      %v475 = vadd.f32 0.0, %v474
      %v476 = vpop.f32.mrf.mxu0
      %v477 = vpop.f32.mrf.mxu0
      %v478 = vadd.f32 0.0, %v477
      %v479 = vpop.f32.mrf.mxu0
      %480 = vmatprep.mubr.bf16.mxu0 0
      %481 = vmatmul.mubr.bf16.gmra.mxu0 %v356
      %v482 = vpop.f32.mrf.mxu0
      %v483 = vadd.f32 0.0, %v482
      %v484 = vpop.f32.mrf.mxu0
      %v485 = vpop.f32.mrf.mxu0
      %v486 = vadd.f32 0.0, %v485
      %v487 = vpop.f32.mrf.mxu0
      %488 = vmatprep.mubr.bf16.mxu0 0
      %489 = vmatmul.mubr.bf16.gmra.mxu0 %v359
      %v490 = vpop.f32.mrf.mxu0
      %v491 = vadd.f32 0.0, %v490
      %v492 = vpop.f32.mrf.mxu0
      %v493 = vpop.f32.mrf.mxu0
      %v494 = vadd.f32 0.0, %v493
      %v495 = vpop.f32.mrf.mxu0
      %496 = vmatprep.mubr.bf16.mxu0 0
      %497 = vmatmul.mubr.bf16.gmra.mxu0 %v362
      %v498 = vpop.f32.mrf.mxu0
      %v499 = vadd.f32 0.0, %v498
      %v500 = vpop.f32.mrf.mxu0
      %v501 = vpop.f32.mrf.mxu0
      %v502 = vadd.f32 0.0, %v501
      %v503 = vpop.f32.mrf.mxu0
      %504 = vmatprep.mubr.bf16.mxu0 0
      %505 = vmatmul.mubr.bf16.gmra.mxu0 %v365
      %v506 = vpop.f32.mrf.mxu0
      %v507 = vadd.f32 0.0, %v506
      %v508 = vpop.f32.mrf.mxu0
      %v509 = vpop.f32.mrf.mxu0
      %v510 = vadd.f32 0.0, %v509
      %v511 = vpop.f32.mrf.mxu0
      %512 = vmatprep.mubr.bf16.mxu0 0
      %513 = vmatmul.mubr.bf16.gmra.mxu0 %v368
      %v514 = vpop.f32.mrf.mxu0
      %v515 = vadd.f32 0.0, %v514
      %v516 = vpop.f32.mrf.mxu0
      %v517 = vpop.f32.mrf.mxu0
      %v518 = vadd.f32 0.0, %v517
      %v519 = vpop.f32.mrf.mxu0
      %520 = vmatprep.mubr.bf16.mxu0 0
      %521 = vmatmul.mubr.bf16.gmra.mxu0 %v371
      %v522 = vpop.f32.mrf.mxu0
      %v523 = vadd.f32 0.0, %v522
      %v524 = vpop.f32.mrf.mxu0
      %v525 = vpop.f32.mrf.mxu0
      %v526 = vadd.f32 0.0, %v525
      %v527 = vpop.f32.mrf.mxu0
      %528 = vmatprep.mubr.bf16.mxu0 0
      %529 = vmatmul.mubr.bf16.gmra.mxu0 %v374
      %v530 = vpop.f32.mrf.mxu0
      %v531 = vadd.f32 0.0, %v530
      %v532 = vpop.f32.mrf.mxu0
      %v533 = vpop.f32.mrf.mxu0
      %v534 = vadd.f32 0.0, %v533
      %v535 = vpop.f32.mrf.mxu0
      %536 = vdwg.mxu0
      %v537 = vadd.f32 %v411, %v414
      %v538 = vadd.f32 %v537, %v419
      %v539 = vadd.f32 %v538, %v422
      %v540 = vadd.f32 %v539, %v427
      %v541 = vadd.f32 %v540, %v430
      %v542 = vadd.f32 %v541, %v435
      %v543 = vadd.f32 %v542, %v438
      %v544 = vadd.f32 %v543, %v443
      %v545 = vadd.f32 %v544, %v446
      %v546 = vadd.f32 %v545, %v451
      %v547 = vadd.f32 %v546, %v454
      %v548 = vadd.f32 %v547, %v459
      %v549 = vadd.f32 %v548, %v462
      %v550 = vadd.f32 %v549, %v467
      %v551 = vadd.f32 %v550, %v470
      %v552 = vadd.f32 %v551, %v475
      %v553 = vadd.f32 %v552, %v478
      %v554 = vadd.f32 %v553, %v483
      %v555 = vadd.f32 %v554, %v486
      %v556 = vadd.f32 %v555, %v491
      %v557 = vadd.f32 %v556, %v494
      %v558 = vadd.f32 %v557, %v499
      %v559 = vadd.f32 %v558, %v502
      %v560 = vadd.f32 %v559, %v507
      %v561 = vadd.f32 %v560, %v510
      %v562 = vadd.f32 %v561, %v515
      %v563 = vadd.f32 %v562, %v518
      %v564 = vadd.f32 %v563, %v523
      %v565 = vadd.f32 %v564, %v526
      %v566 = vadd.f32 %v565, %v531
      %v567 = vadd.f32 %v566, %v534
      %v568 = vrot.slane %v567, 4
      %v569 = vadd.f32 %v567, %v568
      %v570 = vrot.slane %v569, 2
      %v571 = vadd.f32 %v569, %v570
      %v572 = vrot.slane %v571, 1
      %v573 = vadd.f32 %v571, %v572
      %v574 = vmul.f32 %v411, %v411
      %v575 = vmul.f32 %v414, %v414
      %v576 = vmul.f32 %v419, %v419
      %v577 = vmul.f32 %v422, %v422
      %v578 = vmul.f32 %v427, %v427
      %v579 = vmul.f32 %v430, %v430
      %v580 = vmul.f32 %v435, %v435
      %v581 = vmul.f32 %v438, %v438
      %v582 = vmul.f32 %v443, %v443
      %v583 = vmul.f32 %v446, %v446
      %v584 = vmul.f32 %v451, %v451
      %v585 = vmul.f32 %v454, %v454
      %v586 = vmul.f32 %v459, %v459
      %v587 = vmul.f32 %v462, %v462
      %v588 = vmul.f32 %v467, %v467
      %v589 = vmul.f32 %v470, %v470
      %v590 = vmul.f32 %v475, %v475
      %v591 = vmul.f32 %v478, %v478
      %v592 = vmul.f32 %v483, %v483
      %v593 = vmul.f32 %v486, %v486
      %v594 = vmul.f32 %v491, %v491
      %v595 = vmul.f32 %v494, %v494
      %v596 = vmul.f32 %v499, %v499
      %v597 = vmul.f32 %v502, %v502
      %v598 = vmul.f32 %v507, %v507
      %v599 = vmul.f32 %v510, %v510
      %v600 = vmul.f32 %v515, %v515
      %v601 = vmul.f32 %v518, %v518
      %v602 = vmul.f32 %v523, %v523
      %v603 = vmul.f32 %v526, %v526
      %v604 = vmul.f32 %v531, %v531
      %v605 = vmul.f32 %v534, %v534
      %v606 = vadd.f32 %v574, %v575
      %v607 = vadd.f32 %v606, %v576
      %v608 = vadd.f32 %v607, %v577
      %v609 = vadd.f32 %v608, %v578
      %v610 = vadd.f32 %v609, %v579
      %v611 = vadd.f32 %v610, %v580
      %v612 = vadd.f32 %v611, %v581
      %v613 = vadd.f32 %v612, %v582
      %v614 = vadd.f32 %v613, %v583
      %v615 = vadd.f32 %v614, %v584
      %v616 = vadd.f32 %v615, %v585
      %v617 = vadd.f32 %v616, %v586
      %v618 = vadd.f32 %v617, %v587
      %v619 = vadd.f32 %v618, %v588
      %v620 = vadd.f32 %v619, %v589
      %v621 = vadd.f32 %v620, %v590
      %v622 = vadd.f32 %v621, %v591
      %v623 = vadd.f32 %v622, %v592
      %v624 = vadd.f32 %v623, %v593
      %v625 = vadd.f32 %v624, %v594
      %v626 = vadd.f32 %v625, %v595
      %v627 = vadd.f32 %v626, %v596
      %v628 = vadd.f32 %v627, %v597
      %v629 = vadd.f32 %v628, %v598
      %v630 = vadd.f32 %v629, %v599
      %v631 = vadd.f32 %v630, %v600
      %v632 = vadd.f32 %v631, %v601
      %v633 = vadd.f32 %v632, %v602
      %v634 = vadd.f32 %v633, %v603
      %v635 = vadd.f32 %v634, %v604
      %v636 = vadd.f32 %v635, %v605
      %v637 = vrot.slane %v636, 4
      %v638 = vadd.f32 %v636, %v637
      %v639 = vrot.slane %v638, 2
      %v640 = vadd.f32 %v638, %v639
      %v641 = vrot.slane %v640, 1
      %v642 = vadd.f32 %v640, %v641
      %v643 = vmul.f32 %v573, 0.00390625
      %v644 = vmul.f32 %v642, 0.00390625
      %v645 = vmul.f32 %v643, %v643
      %v646 = vsub.f32 %v644, %v645
      %v647 = vmax.f32 %v646, 0.0
      %v648 = vsub.f32 %v411, %v643
      %v649 = vsub.f32 %v414, %v643
      %v650 = vsub.f32 %v419, %v643
      %v651 = vsub.f32 %v422, %v643
      %v652 = vsub.f32 %v427, %v643
      %v653 = vsub.f32 %v430, %v643
      %v654 = vsub.f32 %v435, %v643
      %v655 = vsub.f32 %v438, %v643
      %v656 = vsub.f32 %v443, %v643
      %v657 = vsub.f32 %v446, %v643
      %v658 = vsub.f32 %v451, %v643
      %v659 = vsub.f32 %v454, %v643
      %v660 = vsub.f32 %v459, %v643
      %v661 = vsub.f32 %v462, %v643
      %v662 = vsub.f32 %v467, %v643
      %v663 = vsub.f32 %v470, %v643
      %v664 = vsub.f32 %v475, %v643
      %v665 = vsub.f32 %v478, %v643
      %v666 = vsub.f32 %v483, %v643
      %v667 = vsub.f32 %v486, %v643
      %v668 = vsub.f32 %v491, %v643
      %v669 = vsub.f32 %v494, %v643
      %v670 = vsub.f32 %v499, %v643
      %v671 = vsub.f32 %v502, %v643
      %v672 = vsub.f32 %v507, %v643
      %v673 = vsub.f32 %v510, %v643
      %v674 = vsub.f32 %v515, %v643
      %v675 = vsub.f32 %v518, %v643
      %v676 = vsub.f32 %v523, %v643
      %v677 = vsub.f32 %v526, %v643
      %v678 = vsub.f32 %v531, %v643
      %v679 = vsub.f32 %v534, %v643
      %v680 = vadd.f32 %v647, 1e-05
      %v681 = vrsqrt.pop %v680
      %v682 = vmul.f32 %v648, %v681
      %v683 = vmul.f32 %v649, %v681
      %v684 = vmul.f32 %v650, %v681
      %v685 = vmul.f32 %v651, %v681
      %v686 = vmul.f32 %v652, %v681
      %v687 = vmul.f32 %v653, %v681
      %v688 = vmul.f32 %v654, %v681
      %v689 = vmul.f32 %v655, %v681
      %v690 = vmul.f32 %v656, %v681
      %v691 = vmul.f32 %v657, %v681
      %v692 = vmul.f32 %v658, %v681
      %v693 = vmul.f32 %v659, %v681
      %v694 = vmul.f32 %v660, %v681
      %v695 = vmul.f32 %v661, %v681
      %v696 = vmul.f32 %v662, %v681
      %v697 = vmul.f32 %v663, %v681
      %v698 = vmul.f32 %v664, %v681
      %v699 = vmul.f32 %v665, %v681
      %v700 = vmul.f32 %v666, %v681
      %v701 = vmul.f32 %v667, %v681
      %v702 = vmul.f32 %v668, %v681
      %v703 = vmul.f32 %v669, %v681
      %v704 = vmul.f32 %v670, %v681
      %v705 = vmul.f32 %v671, %v681
      %v706 = vmul.f32 %v672, %v681
      %v707 = vmul.f32 %v673, %v681
      %v708 = vmul.f32 %v674, %v681
      %v709 = vmul.f32 %v675, %v681
      %v710 = vmul.f32 %v676, %v681
      %v711 = vmul.f32 %v677, %v681
      %v712 = vmul.f32 %v678, %v681
      %v713 = vmul.f32 %v679, %v681
      %v714 = vld [vmem:[%s2] sm:$0x1]
      %v716 = vlaneseq
      %v717 = vshrl.u32 %v716, 7
      %v718 = vsub.s32 0, %v717
      %v719 = vrot.slane %v714, %v718
      %v721 = vmul.f32 %v682, %v719
      %v722 = vmul.f32 %v683, %v719
      %v723 = vmul.f32 %v684, %v719
      %v724 = vmul.f32 %v685, %v719
      %v725 = vmul.f32 %v686, %v719
      %v726 = vmul.f32 %v687, %v719
      %v727 = vmul.f32 %v688, %v719
      %v728 = vmul.f32 %v689, %v719
      %v729 = vmul.f32 %v690, %v719
      %v730 = vmul.f32 %v691, %v719
      %v731 = vmul.f32 %v692, %v719
      %v732 = vmul.f32 %v693, %v719
      %v733 = vmul.f32 %v694, %v719
      %v734 = vmul.f32 %v695, %v719
      %v735 = vmul.f32 %v696, %v719
      %v736 = vmul.f32 %v697, %v719
      %v737 = vmul.f32 %v698, %v719
      %v738 = vmul.f32 %v699, %v719
      %v739 = vmul.f32 %v700, %v719
      %v740 = vmul.f32 %v701, %v719
      %v741 = vmul.f32 %v702, %v719
      %v742 = vmul.f32 %v703, %v719
      %v743 = vmul.f32 %v704, %v719
      %v744 = vmul.f32 %v705, %v719
      %v745 = vmul.f32 %v706, %v719
      %v746 = vmul.f32 %v707, %v719
      %v747 = vmul.f32 %v708, %v719
      %v748 = vmul.f32 %v709, %v719
      %v749 = vmul.f32 %v710, %v719
      %v750 = vmul.f32 %v711, %v719
      %v751 = vmul.f32 %v712, %v719
      %v752 = vmul.f32 %v713, %v719
      %v753 = vld [vmem:[%s3] sm:$0x1]
      %v755 = vlaneseq
      %v756 = vshrl.u32 %v755, 7
      %v757 = vsub.s32 0, %v756
      %v758 = vrot.slane %v753, %v757
      %v760 = vadd.f32 %v721, %v758
      %v761 = vadd.f32 %v722, %v758
      %v762 = vadd.f32 %v723, %v758
      %v763 = vadd.f32 %v724, %v758
      %v764 = vadd.f32 %v725, %v758
      %v765 = vadd.f32 %v726, %v758
      %v766 = vadd.f32 %v727, %v758
      %v767 = vadd.f32 %v728, %v758
      %v768 = vadd.f32 %v729, %v758
      %v769 = vadd.f32 %v730, %v758
      %v770 = vadd.f32 %v731, %v758
      %v771 = vadd.f32 %v732, %v758
      %v772 = vadd.f32 %v733, %v758
      %v773 = vadd.f32 %v734, %v758
      %v774 = vadd.f32 %v735, %v758
      %v775 = vadd.f32 %v736, %v758
      %v776 = vadd.f32 %v737, %v758
      %v777 = vadd.f32 %v738, %v758
      %v778 = vadd.f32 %v739, %v758
      %v779 = vadd.f32 %v740, %v758
      %v780 = vadd.f32 %v741, %v758
      %v781 = vadd.f32 %v742, %v758
      %v782 = vadd.f32 %v743, %v758
      %v783 = vadd.f32 %v744, %v758
      %v784 = vadd.f32 %v745, %v758
      %v785 = vadd.f32 %v746, %v758
      %v786 = vadd.f32 %v747, %v758
      %v787 = vadd.f32 %v748, %v758
      %v788 = vadd.f32 %v749, %v758
      %v789 = vadd.f32 %v750, %v758
      %v790 = vadd.f32 %v751, %v758
      %v791 = vadd.f32 %v752, %v758
      %vm792 = vcmp.gt.f32.partialorder %v760, 0.0
      %vm793 = vcmp.gt.f32.partialorder %v761, 0.0
      %vm794 = vcmp.gt.f32.partialorder %v762, 0.0
      %vm795 = vcmp.gt.f32.partialorder %v763, 0.0
      %vm796 = vcmp.gt.f32.partialorder %v764, 0.0
      %vm797 = vcmp.gt.f32.partialorder %v765, 0.0
      %vm798 = vcmp.gt.f32.partialorder %v766, 0.0
      %vm799 = vcmp.gt.f32.partialorder %v767, 0.0
      %vm800 = vcmp.gt.f32.partialorder %v768, 0.0
      %vm801 = vcmp.gt.f32.partialorder %v769, 0.0
      %vm802 = vcmp.gt.f32.partialorder %v770, 0.0
      %vm803 = vcmp.gt.f32.partialorder %v771, 0.0
      %vm804 = vcmp.gt.f32.partialorder %v772, 0.0
      %vm805 = vcmp.gt.f32.partialorder %v773, 0.0
      %vm806 = vcmp.gt.f32.partialorder %v774, 0.0
      %vm807 = vcmp.gt.f32.partialorder %v775, 0.0
      %vm808 = vcmp.gt.f32.partialorder %v776, 0.0
      %vm809 = vcmp.gt.f32.partialorder %v777, 0.0
      %vm810 = vcmp.gt.f32.partialorder %v778, 0.0
      %vm811 = vcmp.gt.f32.partialorder %v779, 0.0
      %vm812 = vcmp.gt.f32.partialorder %v780, 0.0
      %vm813 = vcmp.gt.f32.partialorder %v781, 0.0
      %vm814 = vcmp.gt.f32.partialorder %v782, 0.0
      %vm815 = vcmp.gt.f32.partialorder %v783, 0.0
      %vm816 = vcmp.gt.f32.partialorder %v784, 0.0
      %vm817 = vcmp.gt.f32.partialorder %v785, 0.0
      %vm818 = vcmp.gt.f32.partialorder %v786, 0.0
      %vm819 = vcmp.gt.f32.partialorder %v787, 0.0
      %vm820 = vcmp.gt.f32.partialorder %v788, 0.0
      %vm821 = vcmp.gt.f32.partialorder %v789, 0.0
      %vm822 = vcmp.gt.f32.partialorder %v790, 0.0
      %vm823 = vcmp.gt.f32.partialorder %v791, 0.0
      %v824 = vmul.f32 %v760, 0.01
      %v825 = vmul.f32 %v761, 0.01
      %v826 = vmul.f32 %v762, 0.01
      %v827 = vmul.f32 %v763, 0.01
      %v828 = vmul.f32 %v764, 0.01
      %v829 = vmul.f32 %v765, 0.01
      %v830 = vmul.f32 %v766, 0.01
      %v831 = vmul.f32 %v767, 0.01
      %v832 = vmul.f32 %v768, 0.01
      %v833 = vmul.f32 %v769, 0.01
      %v834 = vmul.f32 %v770, 0.01
      %v835 = vmul.f32 %v771, 0.01
      %v836 = vmul.f32 %v772, 0.01
      %v837 = vmul.f32 %v773, 0.01
      %v838 = vmul.f32 %v774, 0.01
      %v839 = vmul.f32 %v775, 0.01
      %v840 = vmul.f32 %v776, 0.01
      %v841 = vmul.f32 %v777, 0.01
      %v842 = vmul.f32 %v778, 0.01
      %v843 = vmul.f32 %v779, 0.01
      %v844 = vmul.f32 %v780, 0.01
      %v845 = vmul.f32 %v781, 0.01
      %v846 = vmul.f32 %v782, 0.01
      %v847 = vmul.f32 %v783, 0.01
      %v848 = vmul.f32 %v784, 0.01
      %v849 = vmul.f32 %v785, 0.01
      %v850 = vmul.f32 %v786, 0.01
      %v851 = vmul.f32 %v787, 0.01
      %v852 = vmul.f32 %v788, 0.01
      %v853 = vmul.f32 %v789, 0.01
      %v854 = vmul.f32 %v790, 0.01
      %v855 = vmul.f32 %v791, 0.01
      %v856 = vsel %vm792, %v760, %v824
      %v857 = vsel %vm793, %v761, %v825
      %v858 = vsel %vm794, %v762, %v826
      %v859 = vsel %vm795, %v763, %v827
      %v860 = vsel %vm796, %v764, %v828
      %v861 = vsel %vm797, %v765, %v829
      %v862 = vsel %vm798, %v766, %v830
      %v863 = vsel %vm799, %v767, %v831
      %v864 = vsel %vm800, %v768, %v832
      %v865 = vsel %vm801, %v769, %v833
      %v866 = vsel %vm802, %v770, %v834
      %v867 = vsel %vm803, %v771, %v835
      %v868 = vsel %vm804, %v772, %v836
      %v869 = vsel %vm805, %v773, %v837
      %v870 = vsel %vm806, %v774, %v838
      %v871 = vsel %vm807, %v775, %v839
      %v872 = vsel %vm808, %v776, %v840
      %v873 = vsel %vm809, %v777, %v841
      %v874 = vsel %vm810, %v778, %v842
      %v875 = vsel %vm811, %v779, %v843
      %v876 = vsel %vm812, %v780, %v844
      %v877 = vsel %vm813, %v781, %v845
      %v878 = vsel %vm814, %v782, %v846
      %v879 = vsel %vm815, %v783, %v847
      %v880 = vsel %vm816, %v784, %v848
      %v881 = vsel %vm817, %v785, %v849
      %v882 = vsel %vm818, %v786, %v850
      %v883 = vsel %vm819, %v787, %v851
      %v884 = vsel %vm820, %v788, %v852
      %v885 = vsel %vm821, %v789, %v853
      %v886 = vsel %vm822, %v790, %v854
      %v887 = vsel %vm823, %v791, %v855
      %888 = vst [vmem:[#allocation2] sm:$0xff] %v856
      %889 = vst [vmem:[#allocation2 + $0x8] sm:$0xff] %v857
      %890 = vst [vmem:[#allocation2 + $0x10] sm:$0xff] %v858
      %891 = vst [vmem:[#allocation2 + $0x18] sm:$0xff] %v859
      %892 = vst [vmem:[#allocation2 + $0x20] sm:$0xff] %v860
      %893 = vst [vmem:[#allocation2 + $0x28] sm:$0xff] %v861
      %894 = vst [vmem:[#allocation2 + $0x30] sm:$0xff] %v862
      %895 = vst [vmem:[#allocation2 + $0x38] sm:$0xff] %v863
      %896 = vst [vmem:[#allocation2 + $0x40] sm:$0xff] %v864
      %897 = vst [vmem:[#allocation2 + $0x48] sm:$0xff] %v865
      %898 = vst [vmem:[#allocation2 + $0x50] sm:$0xff] %v866
      %899 = vst [vmem:[#allocation2 + $0x58] sm:$0xff] %v867
      %900 = vst [vmem:[#allocation2 + $0x60] sm:$0xff] %v868
      %901 = vst [vmem:[#allocation2 + $0x68] sm:$0xff] %v869
      %902 = vst [vmem:[#allocation2 + $0x70] sm:$0xff] %v870
      %903 = vst [vmem:[#allocation2 + $0x78] sm:$0xff] %v871
      %904 = vst [vmem:[#allocation2 + $0x80] sm:$0xff] %v872
      %905 = vst [vmem:[#allocation2 + $0x88] sm:$0xff] %v873
      %906 = vst [vmem:[#allocation2 + $0x90] sm:$0xff] %v874
      %907 = vst [vmem:[#allocation2 + $0x98] sm:$0xff] %v875
      %908 = vst [vmem:[#allocation2 + $0xa0] sm:$0xff] %v876
      %909 = vst [vmem:[#allocation2 + $0xa8] sm:$0xff] %v877
      %910 = vst [vmem:[#allocation2 + $0xb0] sm:$0xff] %v878
      %911 = vst [vmem:[#allocation2 + $0xb8] sm:$0xff] %v879
      %912 = vst [vmem:[#allocation2 + $0xc0] sm:$0xff] %v880
      %913 = vst [vmem:[#allocation2 + $0xc8] sm:$0xff] %v881
      %914 = vst [vmem:[#allocation2 + $0xd0] sm:$0xff] %v882
      %915 = vst [vmem:[#allocation2 + $0xd8] sm:$0xff] %v883
      %916 = vst [vmem:[#allocation2 + $0xe0] sm:$0xff] %v884
      %917 = vst [vmem:[#allocation2 + $0xe8] sm:$0xff] %v885
      %918 = vst [vmem:[#allocation2 + $0xf0] sm:$0xff] %v886
      %919 = vst [vmem:[#allocation2 + $0xf8] sm:$0xff] %v887
      %v920 = vld [vmem:[#allocation2] ss:$2 sm:$0xff]
      %s921 = scalar_lea.vmem [#allocation2], 16
      %v922 = vld [vmem:[%s921] ss:$2 sm:$0xff]
      %s923 = scalar_lea.vmem [#allocation2], 32
      %v924 = vld [vmem:[%s923] ss:$2 sm:$0xff]
      %s925 = scalar_lea.vmem [#allocation2], 48
      %v926 = vld [vmem:[%s925] ss:$2 sm:$0xff]
      %s927 = scalar_lea.vmem [#allocation2], 64
      %v928 = vld [vmem:[%s927] ss:$2 sm:$0xff]
      %s929 = scalar_lea.vmem [#allocation2], 80
      %v930 = vld [vmem:[%s929] ss:$2 sm:$0xff]
      %s931 = scalar_lea.vmem [#allocation2], 96
      %v932 = vld [vmem:[%s931] ss:$2 sm:$0xff]
      %s933 = scalar_lea.vmem [#allocation2], 112
      %v934 = vld [vmem:[%s933] ss:$2 sm:$0xff]
      %s935 = scalar_lea.vmem [#allocation2], 128
      %v936 = vld [vmem:[%s935] ss:$2 sm:$0xff]
      %s937 = scalar_lea.vmem [#allocation2], 144
      %v938 = vld [vmem:[%s937] ss:$2 sm:$0xff]
      %s939 = scalar_lea.vmem [#allocation2], 160
      %v940 = vld [vmem:[%s939] ss:$2 sm:$0xff]
      %s941 = scalar_lea.vmem [#allocation2], 176
      %v942 = vld [vmem:[%s941] ss:$2 sm:$0xff]
      %s943 = scalar_lea.vmem [#allocation2], 192
      %v944 = vld [vmem:[%s943] ss:$2 sm:$0xff]
      %s945 = scalar_lea.vmem [#allocation2], 208
      %v946 = vld [vmem:[%s945] ss:$2 sm:$0xff]
      %s947 = scalar_lea.vmem [#allocation2], 224
      %v948 = vld [vmem:[%s947] ss:$2 sm:$0xff]
      %s949 = scalar_lea.vmem [#allocation2], 240
      %v950 = vld [vmem:[%s949] ss:$2 sm:$0xff]
      %s951 = scalar_lea.vmem [#allocation2], 1
      %v952 = vld [vmem:[%s951] ss:$2 sm:$0xff]
      %s953 = scalar_lea.vmem [#allocation2], 17
      %v954 = vld [vmem:[%s953] ss:$2 sm:$0xff]
      %s955 = scalar_lea.vmem [#allocation2], 33
      %v956 = vld [vmem:[%s955] ss:$2 sm:$0xff]
      %s957 = scalar_lea.vmem [#allocation2], 49
      %v958 = vld [vmem:[%s957] ss:$2 sm:$0xff]
      %s959 = scalar_lea.vmem [#allocation2], 65
      %v960 = vld [vmem:[%s959] ss:$2 sm:$0xff]
      %s961 = scalar_lea.vmem [#allocation2], 81
      %v962 = vld [vmem:[%s961] ss:$2 sm:$0xff]
      %s963 = scalar_lea.vmem [#allocation2], 97
      %v964 = vld [vmem:[%s963] ss:$2 sm:$0xff]
      %s965 = scalar_lea.vmem [#allocation2], 113
      %v966 = vld [vmem:[%s965] ss:$2 sm:$0xff]
      %s967 = scalar_lea.vmem [#allocation2], 129
      %v968 = vld [vmem:[%s967] ss:$2 sm:$0xff]
      %s969 = scalar_lea.vmem [#allocation2], 145
      %v970 = vld [vmem:[%s969] ss:$2 sm:$0xff]
      %s971 = scalar_lea.vmem [#allocation2], 161
      %v972 = vld [vmem:[%s971] ss:$2 sm:$0xff]
      %s973 = scalar_lea.vmem [#allocation2], 177
      %v974 = vld [vmem:[%s973] ss:$2 sm:$0xff]
      %s975 = scalar_lea.vmem [#allocation2], 193
      %v976 = vld [vmem:[%s975] ss:$2 sm:$0xff]
      %s977 = scalar_lea.vmem [#allocation2], 209
      %v978 = vld [vmem:[%s977] ss:$2 sm:$0xff]
      %s979 = scalar_lea.vmem [#allocation2], 225
      %v980 = vld [vmem:[%s979] ss:$2 sm:$0xff]
      %s981 = scalar_lea.vmem [#allocation2], 241
      %v982 = vld [vmem:[%s981] ss:$2 sm:$0xff]
      %v983 = vadd.f32 %v920, %v952
      %v984 = vadd.f32 %v922, %v954
      %v985 = vadd.f32 %v924, %v956
      %v986 = vadd.f32 %v926, %v958
      %v987 = vadd.f32 %v928, %v960
      %v988 = vadd.f32 %v930, %v962
      %v989 = vadd.f32 %v932, %v964
      %v990 = vadd.f32 %v934, %v966
      %v991 = vadd.f32 %v936, %v968
      %v992 = vadd.f32 %v938, %v970
      %v993 = vadd.f32 %v940, %v972
      %v994 = vadd.f32 %v942, %v974
      %v995 = vadd.f32 %v944, %v976
      %v996 = vadd.f32 %v946, %v978
      %v997 = vadd.f32 %v948, %v980
      %v998 = vadd.f32 %v950, %v982
      %v999 = vadd.f32 %v983, %v984
      %v1000 = vadd.f32 %v985, %v986
      %v1001 = vadd.f32 %v987, %v988
      %v1002 = vadd.f32 %v989, %v990
      %v1003 = vadd.f32 %v991, %v992
      %v1004 = vadd.f32 %v993, %v994
      %v1005 = vadd.f32 %v995, %v996
      %v1006 = vadd.f32 %v997, %v998
      %v1007 = vmul.f32 %v999, 0.25
      %v1008 = vmul.f32 %v1000, 0.25
      %v1009 = vmul.f32 %v1001, 0.25
      %v1010 = vmul.f32 %v1002, 0.25
      %v1011 = vmul.f32 %v1003, 0.25
      %v1012 = vmul.f32 %v1004, 0.25
      %v1013 = vmul.f32 %v1005, 0.25
      %v1014 = vmul.f32 %v1006, 0.25
      %v1015 = vpack.c.bf16 %v1007, %v1007
      %v1016 = vpack.c.bf16 %v1008, %v1008
      %v1017 = vpack.c.bf16 %v1009, %v1009
      %v1018 = vpack.c.bf16 %v1010, %v1010
      %v1019 = vpack.c.bf16 %v1011, %v1011
      %v1020 = vpack.c.bf16 %v1012, %v1012
      %v1021 = vpack.c.bf16 %v1013, %v1013
      %v1022 = vpack.c.bf16 %v1014, %v1014
      %1023 = vst [vmem:[%s197] sm:$0xf] %v1015
      %1024 = vst [vmem:[%s197 + $0x4] sm:$0xf] %v1016
      %1025 = vst [vmem:[%s197 + $0x8] sm:$0xf] %v1017
      %1026 = vst [vmem:[%s197 + $0xc] sm:$0xf] %v1018
      %1027 = vst [vmem:[%s197 + $0x10] sm:$0xf] %v1019
      %1028 = vst [vmem:[%s197 + $0x14] sm:$0xf] %v1020
      %1029 = vst [vmem:[%s197 + $0x18] sm:$0xf] %v1021
      %1030 = vst [vmem:[%s197 + $0x1c] sm:$0xf] %v1022
      %p1031 = scmp.lt.s32.totalorder %s15, 1
      %s1032 = scalar_select %p1031, %s15, 1
      %s1033 = smul.addr %s1032, 8
      %s1034 = smul.addr %s1033, 4
      %s1035 = scalar_lea.vmem %s4, %s1034
      // Predicated region
      $region37: #{_lambda_.4} parent=35 // pred_check
        %p1036 = pneg %p122
      $region38: #{_lambda_.4} parent=35 // pred_check_branch
        %1038 = sbr.rel (%p1036) target = $region40
      $region39: #{_lambda_.4} parent=35 // pred_region
        _
      $region40: #{_lambda_.4} parent=35 // pred_fallthru
        _
    $region36: #{_lambda_.4} parent=5 // pred_fallthru
      _
    %p1039 = scmp.le.s32.totalorder 2, %s10
    // Predicated region
    $region41: #{_lambda_.4} parent=5 // pred_check
      %p1040 = pneg %p1039
    $region42: #{_lambda_.4} parent=5 // pred_check_branch
      %1042 = sbr.rel (%p1040) target = $region44
    $region43: #{_lambda_.4} parent=5 // pred_region
      %s1043 = ssub.s32 %s10, 2
      // Predicated region
      $region45: #{_lambda_.4} parent=43 // pred_check
        %p1044 = pneg %p128
      $region46: #{_lambda_.4} parent=43 // pred_check_branch
        %1046 = sbr.rel (%p1044) target = $region48
      $region47: #{_lambda_.4} parent=43 // pred_region
        %p1047 = scmp.lt.s32.totalorder %s16, 1
        %s1048 = scalar_select %p1047, %s16, 1
        %s1049 = smul.addr %s1048, 8
        %s1050 = smul.addr %s1049, 4
        %s1051 = scalar_lea.vmem %s4, %s1050
      $region48: #{_lambda_.4} parent=43 // pred_fallthru
        _
    $region44: #{_lambda_.4} parent=5 // pred_fallthru
      _
  $region6: #{_lambda_.4} parent=0 // loop_footer
    %s14 = sadd.s32 1, %s10
  $region7: #{_lambda_.4} parent=0 // loop_footer_branch
    %9 = sbr.rel target = $region3
  $region8: #{_lambda_.4} parent=0 // loop_exit
    _

// kernel: _lambda_.7
$region0: #{_lambda_.7}
  #allocation0 [shape = 'u32[]', space=smem, size = 0x4, offset = 0x4, fixed_abs, tag = 'smem constant byte address 0x4 - core index']
  #allocation1 [shape = 'u32[144,128]{1,0:T(1,128)}', space=vmem, size = 0x12000, scoped, tag = 'internal scratch']
  %s0 = inlined_call_operand.vmem [shape: bf16[2,512], index: 0, kind: input, shape index: {}]
  %s1 = inlined_call_operand.vmem [shape: bf16[512,128], index: 1, kind: input, shape index: {}]
  %s2 = inlined_call_operand.vmem [shape: f32[1,128], index: 2, kind: input, shape index: {}]
  %s3 = inlined_call_operand.vmem [shape: f32[2,128], index: 3, kind: output, shape index: {}]
  %s4 = sld [smem:[#allocation0]]
  $region22: #{_lambda_.7} parent=0
    _
  %s6 = ssub.s32 1, %s4
  %s7 = scalar_select 0, %s6, %s4
  // Predicated region
  $region2: #{_lambda_.7} parent=0 // pred_check
    _
  $region3: #{_lambda_.7} parent=0 // pred_check_branch
    %9 = sbr.rel (0) target = $region5
  $region4: #{_lambda_.7} parent=0 // pred_region
    _
  $region5: #{_lambda_.7} parent=0 // pred_fallthru
    _
  // Predicated region
  $region6: #{_lambda_.7} parent=0 // pred_check
    _
  $region7: #{_lambda_.7} parent=0 // pred_check_branch
    %11 = sbr.rel (0) target = $region9
  $region8: #{_lambda_.7} parent=0 // pred_region
    _
  $region9: #{_lambda_.7} parent=0 // pred_fallthru
    _
  // Predicated region
  $region10: #{_lambda_.7} parent=0 // pred_check
    _
  $region11: #{_lambda_.7} parent=0 // pred_check_branch
    %13 = sbr.rel (0) target = $region13
  $region12: #{_lambda_.7} parent=0 // pred_region
    _
  $region13: #{_lambda_.7} parent=0 // pred_fallthru
    _
  %v15 = vld [vmem:[%s0] sm:$0xf]
  %v16 = vld [vmem:[%s1] sm:$0xf]
  %v17 = vld [vmem:[%s1 + $0x4] sm:$0xf]
  %v18 = vld [vmem:[%s1 + $0x8] sm:$0xf]
  %v19 = vld [vmem:[%s1 + $0xc] sm:$0xf]
  %v20 = vld [vmem:[%s1 + $0x10] sm:$0xf]
  %v21 = vld [vmem:[%s1 + $0x14] sm:$0xf]
  %v22 = vld [vmem:[%s1 + $0x18] sm:$0xf]
  %v23 = vld [vmem:[%s1 + $0x1c] sm:$0xf]
  %v24 = vld [vmem:[%s1 + $0x20] sm:$0xf]
  %v25 = vld [vmem:[%s1 + $0x24] sm:$0xf]
  %v26 = vld [vmem:[%s1 + $0x28] sm:$0xf]
  %v27 = vld [vmem:[%s1 + $0x2c] sm:$0xf]
  %v28 = vld [vmem:[%s1 + $0x30] sm:$0xf]
  %v29 = vld [vmem:[%s1 + $0x34] sm:$0xf]
  %v30 = vld [vmem:[%s1 + $0x38] sm:$0xf]
  %v31 = vld [vmem:[%s1 + $0x3c] sm:$0xf]
  %v32 = vld [vmem:[%s1 + $0x40] sm:$0xf]
  %v33 = vld [vmem:[%s1 + $0x44] sm:$0xf]
  %v34 = vld [vmem:[%s1 + $0x48] sm:$0xf]
  %v35 = vld [vmem:[%s1 + $0x4c] sm:$0xf]
  %v36 = vld [vmem:[%s1 + $0x50] sm:$0xf]
  %v37 = vld [vmem:[%s1 + $0x54] sm:$0xf]
  %v38 = vld [vmem:[%s1 + $0x58] sm:$0xf]
  %v39 = vld [vmem:[%s1 + $0x5c] sm:$0xf]
  %v40 = vld [vmem:[%s1 + $0x60] sm:$0xf]
  %v41 = vld [vmem:[%s1 + $0x64] sm:$0xf]
  %v42 = vld [vmem:[%s1 + $0x68] sm:$0xf]
  %v43 = vld [vmem:[%s1 + $0x6c] sm:$0xf]
  %v44 = vld [vmem:[%s1 + $0x70] sm:$0xf]
  %v45 = vld [vmem:[%s1 + $0x74] sm:$0xf]
  %v46 = vld [vmem:[%s1 + $0x78] sm:$0xf]
  %v47 = vld [vmem:[%s1 + $0x7c] sm:$0xf]
  %v48 = vld [vmem:[%s1 + $0x80] sm:$0xf]
  %v49 = vld [vmem:[%s1 + $0x84] sm:$0xf]
  %v50 = vld [vmem:[%s1 + $0x88] sm:$0xf]
  %v51 = vld [vmem:[%s1 + $0x8c] sm:$0xf]
  %v52 = vld [vmem:[%s1 + $0x90] sm:$0xf]
  %v53 = vld [vmem:[%s1 + $0x94] sm:$0xf]
  %v54 = vld [vmem:[%s1 + $0x98] sm:$0xf]
  %v55 = vld [vmem:[%s1 + $0x9c] sm:$0xf]
  %v56 = vld [vmem:[%s1 + $0xa0] sm:$0xf]
  %v57 = vld [vmem:[%s1 + $0xa4] sm:$0xf]
  %v58 = vld [vmem:[%s1 + $0xa8] sm:$0xf]
  %v59 = vld [vmem:[%s1 + $0xac] sm:$0xf]
  %v60 = vld [vmem:[%s1 + $0xb0] sm:$0xf]
  %v61 = vld [vmem:[%s1 + $0xb4] sm:$0xf]
  %v62 = vld [vmem:[%s1 + $0xb8] sm:$0xf]
  %v63 = vld [vmem:[%s1 + $0xbc] sm:$0xf]
  %v64 = vld [vmem:[%s1 + $0xc0] sm:$0xf]
  %v65 = vld [vmem:[%s1 + $0xc4] sm:$0xf]
  %v66 = vld [vmem:[%s1 + $0xc8] sm:$0xf]
  %v67 = vld [vmem:[%s1 + $0xcc] sm:$0xf]
  %v68 = vld [vmem:[%s1 + $0xd0] sm:$0xf]
  %v69 = vld [vmem:[%s1 + $0xd4] sm:$0xf]
  %v70 = vld [vmem:[%s1 + $0xd8] sm:$0xf]
  %v71 = vld [vmem:[%s1 + $0xdc] sm:$0xf]
  %v72 = vld [vmem:[%s1 + $0xe0] sm:$0xf]
  %v73 = vld [vmem:[%s1 + $0xe4] sm:$0xf]
  %v74 = vld [vmem:[%s1 + $0xe8] sm:$0xf]
  %v75 = vld [vmem:[%s1 + $0xec] sm:$0xf]
  %v76 = vld [vmem:[%s1 + $0xf0] sm:$0xf]
  %v77 = vld [vmem:[%s1 + $0xf4] sm:$0xf]
  %v78 = vld [vmem:[%s1 + $0xf8] sm:$0xf]
  %v79 = vld [vmem:[%s1 + $0xfc] sm:$0xf]
  %v80 = vld [vmem:[%s2] sm:$0x1]
  %v82 = vlaneseq
  %v83 = vshrl.u32 %v82, 7
  %v84 = vsub.s32 0, %v83
  %v85 = vrot.slane %v80, %v84
  %v89 = vunpack.c.l.s4 1966171168
  %v90 = vunpack.c.0.s8 %v89
  %v91 = vlaneseq
  %v92 = vshrl.u32 %v91, 7
  %v93 = vsub.s32 %v90, %v92
  %v94 = vrot.slane %v15, %v93
  %v95 = vcombine.high %v94, %v94
  %v97 = vunpack.c.l.s4 1966171168
  %v98 = vunpack.c.0.s8 %v97
  %v99 = vlaneseq
  %v100 = vshrl.u32 %v99, 7
  %v101 = vsub.s32 %v98, %v100
  %v102 = vrot.slane %v94, %v101
  %v104 = vunpack.c.l.s4 1966171168
  %v105 = vunpack.c.0.s8 %v104
  %v106 = vlaneseq
  %v107 = vshrl.u32 %v106, 7
  %v108 = vsub.s32 %v105, %v107
  %v109 = vrot.slane %v95, %v108
  %v110 = vcombine.high %v102, %v102
  %v111 = vcombine.high %v109, %v109
  %v180 = vunpack.c.l.b16 %v16
  %v181 = vunpack.c.l.b16 %v17
  %v182 = vunpack.c.l.b16 %v18
  %v183 = vunpack.c.l.b16 %v19
  %v184 = vunpack.c.l.b16 %v20
  %v185 = vunpack.c.l.b16 %v21
  %v186 = vunpack.c.l.b16 %v22
  %v187 = vunpack.c.l.b16 %v23
  %v188 = vunpack.c.l.b16 %v24
  %v189 = vunpack.c.l.b16 %v25
  %v190 = vunpack.c.l.b16 %v26
  %v191 = vunpack.c.l.b16 %v27
  %v192 = vunpack.c.l.b16 %v28
  %v193 = vunpack.c.l.b16 %v29
  %v194 = vunpack.c.l.b16 %v30
  %v195 = vunpack.c.l.b16 %v31
  %v196 = vunpack.c.l.b16 %v32
  %v197 = vunpack.c.l.b16 %v33
  %v198 = vunpack.c.l.b16 %v34
  %v199 = vunpack.c.l.b16 %v35
  %v200 = vunpack.c.l.b16 %v36
  %v201 = vunpack.c.l.b16 %v37
  %v202 = vunpack.c.l.b16 %v38
  %v203 = vunpack.c.l.b16 %v39
  %v204 = vunpack.c.l.b16 %v40
  %v205 = vunpack.c.l.b16 %v41
  %v206 = vunpack.c.l.b16 %v42
  %v207 = vunpack.c.l.b16 %v43
  %v208 = vunpack.c.l.b16 %v44
  %v209 = vunpack.c.l.b16 %v45
  %v210 = vunpack.c.l.b16 %v46
  %v211 = vunpack.c.l.b16 %v47
  %v212 = vunpack.c.l.b16 %v48
  %v213 = vunpack.c.l.b16 %v49
  %v214 = vunpack.c.l.b16 %v50
  %v215 = vunpack.c.l.b16 %v51
  %v216 = vunpack.c.l.b16 %v52
  %v217 = vunpack.c.l.b16 %v53
  %v218 = vunpack.c.l.b16 %v54
  %v219 = vunpack.c.l.b16 %v55
  %v220 = vunpack.c.l.b16 %v56
  %v221 = vunpack.c.l.b16 %v57
  %v222 = vunpack.c.l.b16 %v58
  %v223 = vunpack.c.l.b16 %v59
  %v224 = vunpack.c.l.b16 %v60
  %v225 = vunpack.c.l.b16 %v61
  %v226 = vunpack.c.l.b16 %v62
  %v227 = vunpack.c.l.b16 %v63
  %v228 = vunpack.c.l.b16 %v64
  %v229 = vunpack.c.l.b16 %v65
  %v230 = vunpack.c.l.b16 %v66
  %v231 = vunpack.c.l.b16 %v67
  %v232 = vunpack.c.l.b16 %v68
  %v233 = vunpack.c.l.b16 %v69
  %v234 = vunpack.c.l.b16 %v70
  %v235 = vunpack.c.l.b16 %v71
  %v236 = vunpack.c.l.b16 %v72
  %v237 = vunpack.c.l.b16 %v73
  %v238 = vunpack.c.l.b16 %v74
  %v239 = vunpack.c.l.b16 %v75
  %v240 = vunpack.c.l.b16 %v76
  %v241 = vunpack.c.l.b16 %v77
  %v242 = vunpack.c.l.b16 %v78
  %v243 = vunpack.c.l.b16 %v79
  %v244 = vpack.c.b16 %v181, %v180
  %v245 = vpack.c.b16 %v183, %v182
  %v246 = vpack.c.b16 %v185, %v184
  %v247 = vpack.c.b16 %v187, %v186
  %v248 = vpack.c.b16 %v189, %v188
  %v249 = vpack.c.b16 %v191, %v190
  %v250 = vpack.c.b16 %v193, %v192
  %v251 = vpack.c.b16 %v195, %v194
  %v252 = vpack.c.b16 %v197, %v196
  %v253 = vpack.c.b16 %v199, %v198
  %v254 = vpack.c.b16 %v201, %v200
  %v255 = vpack.c.b16 %v203, %v202
  %v256 = vpack.c.b16 %v205, %v204
  %v257 = vpack.c.b16 %v207, %v206
  %v258 = vpack.c.b16 %v209, %v208
  %v259 = vpack.c.b16 %v211, %v210
  %v260 = vpack.c.b16 %v213, %v212
  %v261 = vpack.c.b16 %v215, %v214
  %v262 = vpack.c.b16 %v217, %v216
  %v263 = vpack.c.b16 %v219, %v218
  %v264 = vpack.c.b16 %v221, %v220
  %v265 = vpack.c.b16 %v223, %v222
  %v266 = vpack.c.b16 %v225, %v224
  %v267 = vpack.c.b16 %v227, %v226
  %v268 = vpack.c.b16 %v229, %v228
  %v269 = vpack.c.b16 %v231, %v230
  %v270 = vpack.c.b16 %v233, %v232
  %v271 = vpack.c.b16 %v235, %v234
  %v272 = vpack.c.b16 %v237, %v236
  %v273 = vpack.c.b16 %v239, %v238
  %v274 = vpack.c.b16 %v241, %v240
  %v275 = vpack.c.b16 %v243, %v242
  %308 = vmatprep.subr.bf16.mxu0 0
  %309 = vmatpush1.bf16.msra.mxu0 %v251
  %310 = vmatprep.subr.bf16.mxu0 0
  %311 = vmatpush1.bf16.msra.mxu0 %v250
  %312 = vmatprep.subr.bf16.mxu0 0
  %313 = vmatpush1.bf16.msra.mxu0 %v249
  %314 = vmatprep.subr.bf16.mxu0 0
  %315 = vmatpush1.bf16.msra.mxu0 %v248
  %316 = vmatprep.subr.bf16.mxu0 0
  %317 = vmatpush1.bf16.msra.mxu0 %v247
  %318 = vmatprep.subr.bf16.mxu0 0
  %319 = vmatpush1.bf16.msra.mxu0 %v246
  %320 = vmatprep.subr.bf16.mxu0 0
  %321 = vmatpush1.bf16.msra.mxu0 %v245
  %322 = vmatprep.subr.bf16.mxu0 0
  %323 = vmatpush1.bf16.msra.mxu0 %v244
  %324 = vmatprep.subr.bf16.mxu0 0
  %325 = vmatpush2.bf16.msra.mxu0 %v259
  %326 = vmatprep.subr.bf16.mxu0 0
  %327 = vmatpush2.bf16.msra.mxu0 %v258
  %328 = vmatprep.subr.bf16.mxu0 0
  %329 = vmatpush2.bf16.msra.mxu0 %v257
  %330 = vmatprep.subr.bf16.mxu0 0
  %331 = vmatpush2.bf16.msra.mxu0 %v256
  %332 = vmatprep.subr.bf16.mxu0 0
  %333 = vmatpush2.bf16.msra.mxu0 %v255
  %334 = vmatprep.subr.bf16.mxu0 0
  %335 = vmatpush2.bf16.msra.mxu0 %v254
  %336 = vmatprep.subr.bf16.mxu0 0
  %337 = vmatpush2.bf16.msra.mxu0 %v253
  %338 = vmatprep.subr.bf16.mxu0 0
  %339 = vmatpush2.bf16.msra.mxu0 %v252
  %340 = vmatprep.mubr.bf16.mxu0 %v109
  %341 = vmatmul.mubr.bf16.gmra.mxu0 %v102
  %v342 = vpop.f32.mrf.mxu0
  %v343 = vadd.f32 %v85, %v342
  %v344 = vpop.f32.mrf.mxu0
  %v345 = vpop.f32.mrf.mxu0
  %v346 = vpop.f32.mrf.mxu0
  %347 = vdwg.mxu0
  %348 = vmatprep.subr.bf16.mxu0 0
  %349 = vmatpush1.bf16.msra.mxu0 %v267
  %350 = vmatprep.subr.bf16.mxu0 0
  %351 = vmatpush1.bf16.msra.mxu0 %v266
  %352 = vmatprep.subr.bf16.mxu0 0
  %353 = vmatpush1.bf16.msra.mxu0 %v265
  %354 = vmatprep.subr.bf16.mxu0 0
  %355 = vmatpush1.bf16.msra.mxu0 %v264
  %356 = vmatprep.subr.bf16.mxu0 0
  %357 = vmatpush1.bf16.msra.mxu0 %v263
  %358 = vmatprep.subr.bf16.mxu0 0
  %359 = vmatpush1.bf16.msra.mxu0 %v262
  %360 = vmatprep.subr.bf16.mxu0 0
  %361 = vmatpush1.bf16.msra.mxu0 %v261
  %362 = vmatprep.subr.bf16.mxu0 0
  %363 = vmatpush1.bf16.msra.mxu0 %v260
  %364 = vmatprep.subr.bf16.mxu0 0
  %365 = vmatpush2.bf16.msra.mxu0 %v275
  %366 = vmatprep.subr.bf16.mxu0 0
  %367 = vmatpush2.bf16.msra.mxu0 %v274
  %368 = vmatprep.subr.bf16.mxu0 0
  %369 = vmatpush2.bf16.msra.mxu0 %v273
  %370 = vmatprep.subr.bf16.mxu0 0
  %371 = vmatpush2.bf16.msra.mxu0 %v272
  %372 = vmatprep.subr.bf16.mxu0 0
  %373 = vmatpush2.bf16.msra.mxu0 %v271
  %374 = vmatprep.subr.bf16.mxu0 0
  %375 = vmatpush2.bf16.msra.mxu0 %v270
  %376 = vmatprep.subr.bf16.mxu0 0
  %377 = vmatpush2.bf16.msra.mxu0 %v269
  %378 = vmatprep.subr.bf16.mxu0 0
  %379 = vmatpush2.bf16.msra.mxu0 %v268
  %380 = vmatprep.mubr.bf16.mxu0 %v111
  %381 = vmatmul.mubr.bf16.gmra.mxu0 %v110
  %v382 = vpop.f32.mrf.mxu0
  %v383 = vadd.f32 %v343, %v382
  %v384 = vpop.f32.mrf.mxu0
  %v385 = vpop.f32.mrf.mxu0
  %v386 = vpop.f32.mrf.mxu0
  %387 = vdwg.mxu0
  %388 = vst [vmem:[%s3] sm:$0x3] %v383
  // Predicated region
  $region14: #{_lambda_.7} parent=0 // pred_check
    _
  $region15: #{_lambda_.7} parent=0 // pred_check_branch
    %390 = sbr.rel (0) target = $region17
  $region16: #{_lambda_.7} parent=0 // pred_region
    _
  $region17: #{_lambda_.7} parent=0 // pred_fallthru
    _
  // Predicated region
  $region18: #{_lambda_.7} parent=0 // pred_check
    _
  $region19: #{_lambda_.7} parent=0 // pred_check_branch
    %392 = sbr.rel (0) target = $region21
  $region20: #{_lambda_.7} parent=0 // pred_region
    _
  $region21: #{_lambda_.7} parent=0 // pred_fallthru
    _

// kernel: _lambda_.5
$region0: #{_lambda_.5}
  #allocation0 [shape = 'u32[]', space=smem, size = 0x4, offset = 0x4, fixed_abs, tag = 'smem constant byte address 0x4 - core index']
  #allocation1 [shape = 'u32[144,128]{1,0:T(1,128)}', space=vmem, size = 0x12000, scoped, tag = 'internal scratch']
  #allocation2 [shape = 'bf16[1,10,10,128]{3,2,1,0:T(8,128)(2,1)}', space=vmem, size = 0xa000, scoped, tag = 'scratch operand']
  #allocation3 [shape = 'f32[1,8,8,128]{3,2,1,0:T(8,128)}', space=vmem, size = 0x8000, scoped, tag = 'scratch operand']
  %s0 = inlined_call_operand.vmem [shape: bf16[2,8,8,128], index: 0, kind: input, shape index: {}]
  %s1 = inlined_call_operand.vmem [shape: bf16[9,128,128], index: 1, kind: input, shape index: {}]
  %s2 = inlined_call_operand.vmem [shape: f32[1,128], index: 2, kind: input, shape index: {}]
  %s3 = inlined_call_operand.vmem [shape: f32[1,128], index: 3, kind: input, shape index: {}]
  %s4 = inlined_call_operand.vmem [shape: bf16[2,4,4,128], index: 4, kind: output, shape index: {}]
  %s5 = sld [smem:[#allocation0]]
  $region49: #{_lambda_.5} parent=0
    _
  %s7 = ssub.s32 1, %s5
  %s8 = scalar_select 0, %s7, %s5
  loop: start=0, step=1, limit=4
  $region2: #{_lambda_.5} parent=0 // loop_pre_header
    _
  $region3: #{_lambda_.5} parent=0 // loop_header
    %s10 = sphi 0, %s14
    %p11 = scmp.ge.s32.totalorder %s10, 4
    %s20 = sphi 0, %s22
    %s23 = sphi 0, %s20
    %s24 = sphi 0, %s23
    %s40 = sphi 0, %s24
    %s44 = sphi 0, %s44
    %s46 = sphi 0, %s44
    %s47 = sphi 0, %s46
    %s61 = sphi 0, %s47
    %s65 = sphi 0, %s65
    %s67 = sphi 0, %s65
    %s68 = sphi 0, %s67
    %s82 = sphi 0, %s68
    %s86 = sphi 0, %s86
    %s88 = sphi 0, %s86
    %s89 = sphi 0, %s88
    %s103 = sphi 0, %s89
    %s109 = sphi 0, %s111
    %s112 = sphi 0, %s109
    %s113 = sphi 0, %s112
    %s129 = sphi 0, %s113
  $region4: #{_lambda_.5} parent=0 // loop_header_branch
    %13 = sbr.rel (%p11) target = $region8
  $region5: #{_lambda_.5} parent=0 // loop_body
    %s15 = ssub.s32 %s10, 1
    %s16 = ssub.s32 %s10, 2
    %s17 = sadd.s32 %s10, 1
    %s18 = ssub.s32 %s10, %s17
    %p19 = scmp.eq.s32.totalorder %s18, 0
    %s21 = sadd.s32 %s20, 1
    %s22 = scalar_select %p19, %s20, %s21
    %p25 = pneg %p19
    %p26 = scmp.eq.s32.totalorder %s10, 1
    %p27 = por %p25, %p26
    %p28 = scmp.ne.s32.totalorder %s20, %s23
    %p29 = scmp.eq.s32.totalorder %s10, 0
    %p30 = por %p28, %p29
    %p31 = scmp.ne.s32.totalorder %s20, %s23
    %p32 = scmp.eq.s32.totalorder %s15, 1
    %p33 = por %p31, %p32
    %p34 = scmp.ne.s32.totalorder %s23, %s24
    %p35 = scmp.eq.s32.totalorder %s15, 0
    %p36 = por %p34, %p35
    %p37 = scmp.ne.s32.totalorder %s23, %s24
    %p38 = scmp.eq.s32.totalorder %s16, 1
    %p39 = por %p37, %p38
    %p41 = scmp.ne.s32.totalorder %s24, %s40
    %p42 = scmp.eq.s32.totalorder %s16, 0
    %p43 = por %p41, %p42
    %s45 = sadd.s32 %s44, 1
    %p48 = scmp.eq.s32.totalorder %s10, 1
    %p49 = scmp.ne.s32.totalorder %s44, %s46
    %p50 = scmp.eq.s32.totalorder %s10, 0
    %p51 = por %p49, %p50
    %p52 = scmp.ne.s32.totalorder %s44, %s46
    %p53 = scmp.eq.s32.totalorder %s15, 1
    %p54 = por %p52, %p53
    %p55 = scmp.ne.s32.totalorder %s46, %s47
    %p56 = scmp.eq.s32.totalorder %s15, 0
    %p57 = por %p55, %p56
    %p58 = scmp.ne.s32.totalorder %s46, %s47
    %p59 = scmp.eq.s32.totalorder %s16, 1
    %p60 = por %p58, %p59
    %p62 = scmp.ne.s32.totalorder %s47, %s61
    %p63 = scmp.eq.s32.totalorder %s16, 0
    %p64 = por %p62, %p63
    %s66 = sadd.s32 %s65, 1
    %p69 = scmp.eq.s32.totalorder %s10, 1
    %p70 = scmp.ne.s32.totalorder %s65, %s67
    %p71 = scmp.eq.s32.totalorder %s10, 0
    %p72 = por %p70, %p71
    %p73 = scmp.ne.s32.totalorder %s65, %s67
    %p74 = scmp.eq.s32.totalorder %s15, 1
    %p75 = por %p73, %p74
    %p76 = scmp.ne.s32.totalorder %s67, %s68
    %p77 = scmp.eq.s32.totalorder %s15, 0
    %p78 = por %p76, %p77
    %p79 = scmp.ne.s32.totalorder %s67, %s68
    %p80 = scmp.eq.s32.totalorder %s16, 1
    %p81 = por %p79, %p80
    %p83 = scmp.ne.s32.totalorder %s68, %s82
    %p84 = scmp.eq.s32.totalorder %s16, 0
    %p85 = por %p83, %p84
    %s87 = sadd.s32 %s86, 1
    %p90 = scmp.eq.s32.totalorder %s10, 1
    %p91 = scmp.ne.s32.totalorder %s86, %s88
    %p92 = scmp.eq.s32.totalorder %s10, 0
    %p93 = por %p91, %p92
    %p94 = scmp.ne.s32.totalorder %s86, %s88
    %p95 = scmp.eq.s32.totalorder %s15, 1
    %p96 = por %p94, %p95
    %p97 = scmp.ne.s32.totalorder %s88, %s89
    %p98 = scmp.eq.s32.totalorder %s15, 0
    %p99 = por %p97, %p98
    %p100 = scmp.ne.s32.totalorder %s88, %s89
    %p101 = scmp.eq.s32.totalorder %s16, 1
    %p102 = por %p100, %p101
    %p104 = scmp.ne.s32.totalorder %s89, %s103
    %p105 = scmp.eq.s32.totalorder %s16, 0
    %p106 = por %p104, %p105
    %s107 = ssub.s32 %s10, %s17
    %p108 = scmp.eq.s32.totalorder %s107, 0
    %s110 = sadd.s32 %s109, 1
    %s111 = scalar_select %p108, %s109, %s110
    %p114 = pneg %p108
    %p115 = scmp.eq.s32.totalorder %s10, 1
    %p116 = por %p114, %p115
    %p117 = scmp.ne.s32.totalorder %s109, %s112
    %p118 = scmp.eq.s32.totalorder %s10, 0
    %p119 = por %p117, %p118
    %p120 = scmp.ne.s32.totalorder %s109, %s112
    %p121 = scmp.eq.s32.totalorder %s15, 1
    %p122 = por %p120, %p121
    %p123 = scmp.ne.s32.totalorder %s112, %s113
    %p124 = scmp.eq.s32.totalorder %s15, 0
    %p125 = por %p123, %p124
    %p126 = scmp.ne.s32.totalorder %s112, %s113
    %p127 = scmp.eq.s32.totalorder %s16, 1
    %p128 = por %p126, %p127
    %p130 = scmp.ne.s32.totalorder %s113, %s129
    %p131 = scmp.eq.s32.totalorder %s16, 0
    %p132 = por %p130, %p131
    %p133 = scmp.le.s32.totalorder 1, %s10
    %p134 = scmp.lt.s32.totalorder %s10, 3
    %p135 = pnand %p133, %p134
    %p136 = pneg %p135
    // Predicated region
    $region9: #{_lambda_.5} parent=5 // pred_check
      _
    $region10: #{_lambda_.5} parent=5 // pred_check_branch
      %138 = sbr.rel (%p135) target = $region12
    $region11: #{_lambda_.5} parent=5 // pred_region
      %s139 = ssub.s32 %s10, 1
      // Predicated region
      $region13: #{_lambda_.5} parent=11 // pred_check
        %p140 = pneg %p57
      $region14: #{_lambda_.5} parent=11 // pred_check_branch
        %142 = sbr.rel (%p140) target = $region16
      $region15: #{_lambda_.5} parent=11 // pred_region
        _
      $region16: #{_lambda_.5} parent=11 // pred_fallthru
        _
      // Predicated region
      $region17: #{_lambda_.5} parent=11 // pred_check
        %p143 = pneg %p78
      $region18: #{_lambda_.5} parent=11 // pred_check_branch
        %145 = sbr.rel (%p143) target = $region20
      $region19: #{_lambda_.5} parent=11 // pred_region
        _
      $region20: #{_lambda_.5} parent=11 // pred_fallthru
        _
      // Predicated region
      $region21: #{_lambda_.5} parent=11 // pred_check
        %p146 = pneg %p99
      $region22: #{_lambda_.5} parent=11 // pred_check_branch
        %148 = sbr.rel (%p146) target = $region24
      $region23: #{_lambda_.5} parent=11 // pred_region
        _
      $region24: #{_lambda_.5} parent=11 // pred_fallthru
        _
    $region12: #{_lambda_.5} parent=5 // pred_fallthru
      _
    %p149 = scmp.lt.s32.totalorder %s10, 2
    // Predicated region
    $region25: #{_lambda_.5} parent=5 // pred_check
      %p150 = pneg %p149
    $region26: #{_lambda_.5} parent=5 // pred_check_branch
      %152 = sbr.rel (%p150) target = $region28
    $region27: #{_lambda_.5} parent=5 // pred_region
      // Predicated region
      $region29: #{_lambda_.5} parent=27 // pred_check
        %p153 = pneg %p30
      $region30: #{_lambda_.5} parent=27 // pred_check_branch
        %155 = sbr.rel (%p153) target = $region32
      $region31: #{_lambda_.5} parent=27 // pred_region
        %p156 = scmp.lt.s32.totalorder %s10, 1
        %s157 = scalar_select %p156, %s10, 1
        %s158 = smul.addr %s157, 8
        %s159 = smul.addr %s158, 4
        %s160 = scalar_lea.vmem %s0, %s159
      $region32: #{_lambda_.5} parent=27 // pred_fallthru
        _
    $region28: #{_lambda_.5} parent=5 // pred_fallthru
      _
    %p161 = scmp.le.s32.totalorder 1, %s10
    %p162 = scmp.lt.s32.totalorder %s10, 3
    %p163 = pnand %p161, %p162
    %p164 = pneg %p163
    // Predicated region
    $region33: #{_lambda_.5} parent=5 // pred_check
      _
    $region34: #{_lambda_.5} parent=5 // pred_check_branch
      %166 = sbr.rel (%p163) target = $region36
    $region35: #{_lambda_.5} parent=5 // pred_region
      %s167 = ssub.s32 %s10, 1
      %p168 = scmp.lt.s32.totalorder %s15, 1
      %s169 = scalar_select %p168, %s15, 1
      %s170 = smul.addr %s169, 8
      %s171 = smul.addr %s170, 4
      %s172 = scalar_lea.vmem %s0, %s171
      %p173 = pneg %p36
      %p174 = pneg %p33
      %p175 = pneg %p57
      %p176 = pneg %p54
      %p177 = pneg %p78
      %p178 = pneg %p75
      %p179 = pneg %p99
      %p180 = pneg %p96
      %p181 = pneg %p125
      %p182 = pneg %p122
      %p183 = scmp.lt.s32.totalorder %s15, 1
      %s184 = scalar_select %p183, %s15, 1
      %s185 = smul.addr %s184, 4
      %s186 = smul.addr %s185, 2
      %s187 = scalar_lea.vmem %s4, %s186
      %p188 = scmp.lt.s32.totalorder %s15, 1
      %s189 = scalar_select %p188, %s15, 1
      %s190 = smul.addr %s189, 8
      %s191 = smul.addr %s190, 4
      %s192 = scalar_lea.vmem %s0, %s191
      %p193 = scmp.lt.s32.totalorder %s15, 1
      %s194 = scalar_select %p193, %s15, 1
      %s195 = smul.addr %s194, 4
      %s196 = smul.addr %s195, 2
      %s197 = scalar_lea.vmem %s4, %s196
      %199 = vst [vmem:[#allocation2] sm:$0xf] 0
      %200 = vst [vmem:[#allocation2 + $0x4] sm:$0x1] 0
      %s201 = scalar_lea.vmem [#allocation2], 72
      %202 = vst [vmem:[%s201] sm:$0xf] 0
      %203 = vst [vmem:[%s201 + $0x4] sm:$0x1] 0
      %s204 = scalar_lea.vmem [#allocation2], 8
      %vm205 = vcmask 1040384
      %vm206 = vsmask.f32 256
      %vm207 = vmand %vm205, %vm206
      %v208 = vld [vmem:[%s204] sm:$0x1]
      %v209 = vsel %vm207, 0, %v208
      %210 = vst [vmem:[%s204] sm:$0x1] %v209
      %v211 = vld [vmem:[%s204 + $0x8] sm:$0x1]
      %v212 = vsel %vm207, 0, %v211
      %213 = vst [vmem:[%s204 + $0x8] sm:$0x1] %v212
      %v214 = vld [vmem:[%s204 + $0x10] sm:$0x1]
      %v215 = vsel %vm207, 0, %v214
      %216 = vst [vmem:[%s204 + $0x10] sm:$0x1] %v215
      %v217 = vld [vmem:[%s204 + $0x18] sm:$0x1]
      %v218 = vsel %vm207, 0, %v217
      %219 = vst [vmem:[%s204 + $0x18] sm:$0x1] %v218
      %v220 = vld [vmem:[%s204 + $0x20] sm:$0x1]
      %v221 = vsel %vm207, 0, %v220
      %222 = vst [vmem:[%s204 + $0x20] sm:$0x1] %v221
      %v223 = vld [vmem:[%s204 + $0x28] sm:$0x1]
      %v224 = vsel %vm207, 0, %v223
      %225 = vst [vmem:[%s204 + $0x28] sm:$0x1] %v224
      %v226 = vld [vmem:[%s204 + $0x30] sm:$0x1]
      %v227 = vsel %vm207, 0, %v226
      %228 = vst [vmem:[%s204 + $0x30] sm:$0x1] %v227
      %v229 = vld [vmem:[%s204 + $0x38] sm:$0x1]
      %v230 = vsel %vm207, 0, %v229
      %231 = vst [vmem:[%s204 + $0x38] sm:$0x1] %v230
      %vm232 = vsmask.f32 7938
      %vm233 = vmand %vm205, %vm232
      %v234 = vld [vmem:[%s204 + $0x4] sm:$0x1]
      %v235 = vsel %vm233, 0, %v234
      %236 = vst [vmem:[%s204 + $0x4] sm:$0x1] %v235
      %v237 = vld [vmem:[%s204 + $0xc] sm:$0x1]
      %v238 = vsel %vm233, 0, %v237
      %239 = vst [vmem:[%s204 + $0xc] sm:$0x1] %v238
      %v240 = vld [vmem:[%s204 + $0x14] sm:$0x1]
      %v241 = vsel %vm233, 0, %v240
      %242 = vst [vmem:[%s204 + $0x14] sm:$0x1] %v241
      %v243 = vld [vmem:[%s204 + $0x1c] sm:$0x1]
      %v244 = vsel %vm233, 0, %v243
      %245 = vst [vmem:[%s204 + $0x1c] sm:$0x1] %v244
      %v246 = vld [vmem:[%s204 + $0x24] sm:$0x1]
      %v247 = vsel %vm233, 0, %v246
      %248 = vst [vmem:[%s204 + $0x24] sm:$0x1] %v247
      %v249 = vld [vmem:[%s204 + $0x2c] sm:$0x1]
      %v250 = vsel %vm233, 0, %v249
      %251 = vst [vmem:[%s204 + $0x2c] sm:$0x1] %v250
      %v252 = vld [vmem:[%s204 + $0x34] sm:$0x1]
      %v253 = vsel %vm233, 0, %v252
      %254 = vst [vmem:[%s204 + $0x34] sm:$0x1] %v253
      %v255 = vld [vmem:[%s204 + $0x3c] sm:$0x1]
      %v256 = vsel %vm233, 0, %v255
      %257 = vst [vmem:[%s204 + $0x3c] sm:$0x1] %v256
      %v258 = vld [vmem:[%s192] sm:$0xf]
      %v259 = vld [vmem:[%s192 + $0x4] sm:$0xf]
      %v260 = vld [vmem:[%s192 + $0x8] sm:$0xf]
      %v261 = vld [vmem:[%s192 + $0xc] sm:$0xf]
      %v262 = vld [vmem:[%s192 + $0x10] sm:$0xf]
      %v263 = vld [vmem:[%s192 + $0x14] sm:$0xf]
      %v264 = vld [vmem:[%s192 + $0x18] sm:$0xf]
      %v265 = vld [vmem:[%s192 + $0x1c] sm:$0xf]
      %v267 = vshrl.u32 %v258, 16
      %v269 = vrot.slane %v267, 7
      %v270 = vshll.u32 %v258, 16
      %v272 = vor.u32 %v269, %v270
      %v273 = vrot.slane %v269, 4
      %v275 = vshrl.u32 %v259, 16
      %v277 = vrot.slane %v275, 7
      %v278 = vshll.u32 %v259, 16
      %v280 = vor.u32 %v277, %v278
      %v281 = vrot.slane %v277, 4
      %v283 = vshrl.u32 %v260, 16
      %v285 = vrot.slane %v283, 7
      %v286 = vshll.u32 %v260, 16
      %v288 = vor.u32 %v285, %v286
      %v289 = vrot.slane %v285, 4
      %v291 = vshrl.u32 %v261, 16
      %v293 = vrot.slane %v291, 7
      %v294 = vshll.u32 %v261, 16
      %v296 = vor.u32 %v293, %v294
      %v297 = vrot.slane %v293, 4
      %v299 = vshrl.u32 %v262, 16
      %v301 = vrot.slane %v299, 7
      %v302 = vshll.u32 %v262, 16
      %v304 = vor.u32 %v301, %v302
      %v305 = vrot.slane %v301, 4
      %v307 = vshrl.u32 %v263, 16
      %v309 = vrot.slane %v307, 7
      %v310 = vshll.u32 %v263, 16
      %v312 = vor.u32 %v309, %v310
      %v313 = vrot.slane %v309, 4
      %v315 = vshrl.u32 %v264, 16
      %v317 = vrot.slane %v315, 7
      %v318 = vshll.u32 %v264, 16
      %v320 = vor.u32 %v317, %v318
      %v321 = vrot.slane %v317, 4
      %v323 = vshrl.u32 %v265, 16
      %v325 = vrot.slane %v323, 7
      %v326 = vshll.u32 %v265, 16
      %v328 = vor.u32 %v325, %v326
      %v329 = vrot.slane %v325, 4
      %vm346 = vcmask 1043456
      %vm347 = vmand %vm346, %vm232
      %v348 = vld [vmem:[%s204] sm:$0xf]
      %v349 = vsel %vm347, %v272, %v348
      %350 = vst [vmem:[%s204] sm:$0xf] %v349
      %v351 = vld [vmem:[%s204 + $0x4] sm:$0x1]
      %v352 = vsel %vm207, %v273, %v351
      %353 = vst [vmem:[%s204 + $0x4] sm:$0x1] %v352
      %v354 = vld [vmem:[%s204 + $0x8] sm:$0xf]
      %v355 = vsel %vm347, %v280, %v354
      %356 = vst [vmem:[%s204 + $0x8] sm:$0xf] %v355
      %v357 = vld [vmem:[%s204 + $0xc] sm:$0x1]
      %v358 = vsel %vm207, %v281, %v357
      %359 = vst [vmem:[%s204 + $0xc] sm:$0x1] %v358
      %v360 = vld [vmem:[%s204 + $0x10] sm:$0xf]
      %v361 = vsel %vm347, %v288, %v360
      %362 = vst [vmem:[%s204 + $0x10] sm:$0xf] %v361
      %v363 = vld [vmem:[%s204 + $0x14] sm:$0x1]
      %v364 = vsel %vm207, %v289, %v363
      %365 = vst [vmem:[%s204 + $0x14] sm:$0x1] %v364
      %v366 = vld [vmem:[%s204 + $0x18] sm:$0xf]
      %v367 = vsel %vm347, %v296, %v366
      %368 = vst [vmem:[%s204 + $0x18] sm:$0xf] %v367
      %v369 = vld [vmem:[%s204 + $0x1c] sm:$0x1]
      %v370 = vsel %vm207, %v297, %v369
      %371 = vst [vmem:[%s204 + $0x1c] sm:$0x1] %v370
      %v372 = vld [vmem:[%s204 + $0x20] sm:$0xf]
      %v373 = vsel %vm347, %v304, %v372
      %374 = vst [vmem:[%s204 + $0x20] sm:$0xf] %v373
      %v375 = vld [vmem:[%s204 + $0x24] sm:$0x1]
      %v376 = vsel %vm207, %v305, %v375
      %377 = vst [vmem:[%s204 + $0x24] sm:$0x1] %v376
      %v378 = vld [vmem:[%s204 + $0x28] sm:$0xf]
      %v379 = vsel %vm347, %v312, %v378
      %380 = vst [vmem:[%s204 + $0x28] sm:$0xf] %v379
      %v381 = vld [vmem:[%s204 + $0x2c] sm:$0x1]
      %v382 = vsel %vm207, %v313, %v381
      %383 = vst [vmem:[%s204 + $0x2c] sm:$0x1] %v382
      %v384 = vld [vmem:[%s204 + $0x30] sm:$0xf]
      %v385 = vsel %vm347, %v320, %v384
      %386 = vst [vmem:[%s204 + $0x30] sm:$0xf] %v385
      %v387 = vld [vmem:[%s204 + $0x34] sm:$0x1]
      %v388 = vsel %vm207, %v321, %v387
      %389 = vst [vmem:[%s204 + $0x34] sm:$0x1] %v388
      %v390 = vld [vmem:[%s204 + $0x38] sm:$0xf]
      %v391 = vsel %vm347, %v328, %v390
      %392 = vst [vmem:[%s204 + $0x38] sm:$0xf] %v391
      %v393 = vld [vmem:[%s204 + $0x3c] sm:$0x1]
      %v394 = vsel %vm207, %v329, %v393
      %395 = vst [vmem:[%s204 + $0x3c] sm:$0x1] %v394
      %v396 = vld [vmem:[#allocation2] sm:$0xf]
      %v397 = vld [vmem:[#allocation2 + $0x8] sm:$0xf]
      %v398 = vld [vmem:[#allocation2 + $0x10] sm:$0xf]
      %v399 = vld [vmem:[#allocation2 + $0x18] sm:$0xf]
      %v400 = vld [vmem:[#allocation2 + $0x20] sm:$0xf]
      %v401 = vld [vmem:[#allocation2 + $0x28] sm:$0xf]
      %v402 = vld [vmem:[#allocation2 + $0x30] sm:$0xf]
      %v403 = vld [vmem:[#allocation2 + $0x38] sm:$0xf]
      %v404 = vld [vmem:[%s1] sm:$0xf]
      %v405 = vld [vmem:[%s1 + $0x4] sm:$0xf]
      %v406 = vld [vmem:[%s1 + $0x8] sm:$0xf]
      %v407 = vld [vmem:[%s1 + $0xc] sm:$0xf]
      %v408 = vld [vmem:[%s1 + $0x10] sm:$0xf]
      %v409 = vld [vmem:[%s1 + $0x14] sm:$0xf]
      %v410 = vld [vmem:[%s1 + $0x18] sm:$0xf]
      %v411 = vld [vmem:[%s1 + $0x1c] sm:$0xf]
      %v412 = vld [vmem:[%s1 + $0x20] sm:$0xf]
      %v413 = vld [vmem:[%s1 + $0x24] sm:$0xf]
      %v414 = vld [vmem:[%s1 + $0x28] sm:$0xf]
      %v415 = vld [vmem:[%s1 + $0x2c] sm:$0xf]
      %v416 = vld [vmem:[%s1 + $0x30] sm:$0xf]
      %v417 = vld [vmem:[%s1 + $0x34] sm:$0xf]
      %v418 = vld [vmem:[%s1 + $0x38] sm:$0xf]
      %v419 = vld [vmem:[%s1 + $0x3c] sm:$0xf]
      %v420 = vld [vmem:[#allocation2 + $0x4] sm:$0x1]
      %v421 = vld [vmem:[#allocation2 + $0xc] sm:$0x1]
      %v422 = vld [vmem:[#allocation2 + $0x14] sm:$0x1]
      %v423 = vld [vmem:[#allocation2 + $0x1c] sm:$0x1]
      %v424 = vld [vmem:[#allocation2 + $0x24] sm:$0x1]
      %v425 = vld [vmem:[#allocation2 + $0x2c] sm:$0x1]
      %v426 = vld [vmem:[#allocation2 + $0x34] sm:$0x1]
      %v427 = vld [vmem:[#allocation2 + $0x3c] sm:$0x1]
      %vm428 = vsmask.f32 3328
      %vm429 = vsmask.f32 7440
      %vm430 = vmor %vm428, %vm429
      %v432 = vshrl.u32 %v396, 16
      %v434 = vrot.slane %v432, 4
      %v435 = vshll.u32 %v396, 16
      %v437 = vrot.slane %v435, 5
      %v438 = vor.u32 %v434, %v437
      %v439 = vrot.slane %v438, 4
      %v441 = vshll.u32 %v420, 16
      %v443 = vrot.slane %v441, 5
      %v444 = vsel %vm430, %v439, %v443
      %v446 = vshrl.u32 %v397, 16
      %v448 = vrot.slane %v446, 4
      %v449 = vshll.u32 %v397, 16
      %v451 = vrot.slane %v449, 5
      %v452 = vor.u32 %v448, %v451
      %v453 = vrot.slane %v452, 4
      %v455 = vshll.u32 %v421, 16
      %v457 = vrot.slane %v455, 5
      %v458 = vsel %vm430, %v453, %v457
      %v460 = vshrl.u32 %v398, 16
      %v462 = vrot.slane %v460, 4
      %v463 = vshll.u32 %v398, 16
      %v465 = vrot.slane %v463, 5
      %v466 = vor.u32 %v462, %v465
      %v467 = vrot.slane %v466, 4
      %v469 = vshll.u32 %v422, 16
      %v471 = vrot.slane %v469, 5
      %v472 = vsel %vm430, %v467, %v471
      %v474 = vshrl.u32 %v399, 16
      %v476 = vrot.slane %v474, 4
      %v477 = vshll.u32 %v399, 16
      %v479 = vrot.slane %v477, 5
      %v480 = vor.u32 %v476, %v479
      %v481 = vrot.slane %v480, 4
      %v483 = vshll.u32 %v423, 16
      %v485 = vrot.slane %v483, 5
      %v486 = vsel %vm430, %v481, %v485
      %v488 = vshrl.u32 %v400, 16
      %v490 = vrot.slane %v488, 4
      %v491 = vshll.u32 %v400, 16
      %v493 = vrot.slane %v491, 5
      %v494 = vor.u32 %v490, %v493
      %v495 = vrot.slane %v494, 4
      %v497 = vshll.u32 %v424, 16
      %v499 = vrot.slane %v497, 5
      %v500 = vsel %vm430, %v495, %v499
      %v502 = vshrl.u32 %v401, 16
      %v504 = vrot.slane %v502, 4
      %v505 = vshll.u32 %v401, 16
      %v507 = vrot.slane %v505, 5
      %v508 = vor.u32 %v504, %v507
      %v509 = vrot.slane %v508, 4
      %v511 = vshll.u32 %v425, 16
      %v513 = vrot.slane %v511, 5
      %v514 = vsel %vm430, %v509, %v513
      %v516 = vshrl.u32 %v402, 16
      %v518 = vrot.slane %v516, 4
      %v519 = vshll.u32 %v402, 16
      %v521 = vrot.slane %v519, 5
      %v522 = vor.u32 %v518, %v521
      %v523 = vrot.slane %v522, 4
      %v525 = vshll.u32 %v426, 16
      %v527 = vrot.slane %v525, 5
      %v528 = vsel %vm430, %v523, %v527
      %v530 = vshrl.u32 %v403, 16
      %v532 = vrot.slane %v530, 4
      %v533 = vshll.u32 %v403, 16
      %v535 = vrot.slane %v533, 5
      %v536 = vor.u32 %v532, %v535
      %v537 = vrot.slane %v536, 4
      %v539 = vshll.u32 %v427, 16
      %v541 = vrot.slane %v539, 5
      %v542 = vsel %vm430, %v537, %v541
      %s543 = scalar_lea.vmem %s1, 64
      %v544 = vld [vmem:[%s543] sm:$0xf]
      %v545 = vld [vmem:[%s543 + $0x4] sm:$0xf]
      %v546 = vld [vmem:[%s543 + $0x8] sm:$0xf]
      %v547 = vld [vmem:[%s543 + $0xc] sm:$0xf]
      %v548 = vld [vmem:[%s543 + $0x10] sm:$0xf]
      %v549 = vld [vmem:[%s543 + $0x14] sm:$0xf]
      %v550 = vld [vmem:[%s543 + $0x18] sm:$0xf]
      %v551 = vld [vmem:[%s543 + $0x1c] sm:$0xf]
      %v552 = vld [vmem:[%s543 + $0x20] sm:$0xf]
      %v553 = vld [vmem:[%s543 + $0x24] sm:$0xf]
      %v554 = vld [vmem:[%s543 + $0x28] sm:$0xf]
      %v555 = vld [vmem:[%s543 + $0x2c] sm:$0xf]
      %v556 = vld [vmem:[%s543 + $0x30] sm:$0xf]
      %v557 = vld [vmem:[%s543 + $0x34] sm:$0xf]
      %v558 = vld [vmem:[%s543 + $0x38] sm:$0xf]
      %v559 = vld [vmem:[%s543 + $0x3c] sm:$0xf]
      %v560 = vunpack.c.l.b16 %v444
      %v561 = vunpack.c.l.b16 %v458
      %v562 = vunpack.c.l.b16 %v472
      %v563 = vunpack.c.l.b16 %v486
      %v564 = vunpack.c.l.b16 %v500
      %v565 = vunpack.c.l.b16 %v514
      %v566 = vunpack.c.l.b16 %v528
      %v567 = vunpack.c.l.b16 %v542
      %v568 = vpack.c.b16 %v561, %v560
      %v569 = vpack.c.b16 %v563, %v562
      %v570 = vpack.c.b16 %v565, %v564
      %v571 = vpack.c.b16 %v567, %v566
      %v592 = vunpack.c.l.b16 %v544
      %v593 = vunpack.c.l.b16 %v545
      %v594 = vunpack.c.l.b16 %v546
      %v595 = vunpack.c.l.b16 %v547
      %v596 = vunpack.c.l.b16 %v548
      %v597 = vunpack.c.l.b16 %v549
      %v598 = vunpack.c.l.b16 %v550
      %v599 = vunpack.c.l.b16 %v551
      %v600 = vunpack.c.l.b16 %v552
      %v601 = vunpack.c.l.b16 %v553
      %v602 = vunpack.c.l.b16 %v554
      %v603 = vunpack.c.l.b16 %v555
      %v604 = vunpack.c.l.b16 %v556
      %v605 = vunpack.c.l.b16 %v557
      %v606 = vunpack.c.l.b16 %v558
      %v607 = vunpack.c.l.b16 %v559
      %v608 = vpack.c.b16 %v593, %v592
      %v609 = vpack.c.b16 %v595, %v594
      %v610 = vpack.c.b16 %v597, %v596
      %v611 = vpack.c.b16 %v599, %v598
      %v612 = vpack.c.b16 %v601, %v600
      %v613 = vpack.c.b16 %v603, %v602
      %v614 = vpack.c.b16 %v605, %v604
      %v615 = vpack.c.b16 %v607, %v606
      %624 = vmatprep.subr.bf16.mxu0 0
      %625 = vmatpush1.bf16.msra.mxu0 %v615
      %626 = vmatprep.subr.bf16.mxu0 0
      %627 = vmatpush1.bf16.msra.mxu0 %v614
      %628 = vmatprep.subr.bf16.mxu0 0
      %629 = vmatpush1.bf16.msra.mxu0 %v613
      %630 = vmatprep.subr.bf16.mxu0 0
      %631 = vmatpush1.bf16.msra.mxu0 %v612
      %632 = vmatprep.subr.bf16.mxu0 0
      %633 = vmatpush1.bf16.msra.mxu0 %v611
      %634 = vmatprep.subr.bf16.mxu0 0
      %635 = vmatpush1.bf16.msra.mxu0 %v610
      %636 = vmatprep.subr.bf16.mxu0 0
      %637 = vmatpush1.bf16.msra.mxu0 %v609
      %638 = vmatprep.subr.bf16.mxu0 0
      %639 = vmatpush1.bf16.msra.mxu0 %v608
      %640 = vmatprep.subr.bf16.mxu0 0
      %641 = vmatpush2.bf16.msra.mxu0 0
      %642 = vmatprep.subr.bf16.mxu0 0
      %643 = vmatpush2.bf16.msra.mxu0 0
      %644 = vmatprep.subr.bf16.mxu0 0
      %645 = vmatpush2.bf16.msra.mxu0 0
      %646 = vmatprep.subr.bf16.mxu0 0
      %647 = vmatpush2.bf16.msra.mxu0 0
      %648 = vmatprep.subr.bf16.mxu0 0
      %649 = vmatpush2.bf16.msra.mxu0 0
      %650 = vmatprep.subr.bf16.mxu0 0
      %651 = vmatpush2.bf16.msra.mxu0 0
      %652 = vmatprep.subr.bf16.mxu0 0
      %653 = vmatpush2.bf16.msra.mxu0 0
      %654 = vmatprep.subr.bf16.mxu0 0
      %655 = vmatpush2.bf16.msra.mxu0 0
      %656 = vmatprep.mubr.bf16.mxu0 0
      %657 = vmatmul.mubr.bf16.gmra.mxu0 %v568
      %v658 = vpop.f32.mrf.mxu0
      %v659 = vadd.f32 0.0, %v658
      %v660 = vpop.f32.mrf.mxu0
      %v661 = vpop.f32.mrf.mxu0
      %v662 = vadd.f32 0.0, %v661
      %v663 = vpop.f32.mrf.mxu0
      %664 = vmatprep.mubr.bf16.mxu0 0
      %665 = vmatmul.mubr.bf16.gmra.mxu0 %v569
      %v666 = vpop.f32.mrf.mxu0
      %v667 = vadd.f32 0.0, %v666
      %v668 = vpop.f32.mrf.mxu0
      %v669 = vpop.f32.mrf.mxu0
      %v670 = vadd.f32 0.0, %v669
      %v671 = vpop.f32.mrf.mxu0
      %672 = vmatprep.mubr.bf16.mxu0 0
      %673 = vmatmul.mubr.bf16.gmra.mxu0 %v570
      %v674 = vpop.f32.mrf.mxu0
      %v675 = vadd.f32 0.0, %v674
      %v676 = vpop.f32.mrf.mxu0
      %v677 = vpop.f32.mrf.mxu0
      %v678 = vadd.f32 0.0, %v677
      %v679 = vpop.f32.mrf.mxu0
      %680 = vmatprep.mubr.bf16.mxu0 0
      %681 = vmatmul.mubr.bf16.gmra.mxu0 %v571
      %v682 = vpop.f32.mrf.mxu0
      %v683 = vadd.f32 0.0, %v682
      %v684 = vpop.f32.mrf.mxu0
      %v685 = vpop.f32.mrf.mxu0
      %v686 = vadd.f32 0.0, %v685
      %v687 = vpop.f32.mrf.mxu0
      %688 = vdwg.mxu0
      %v697 = vunpack.c.l.b16 %v396
      %v698 = vunpack.c.l.b16 %v397
      %v699 = vunpack.c.l.b16 %v398
      %v700 = vunpack.c.l.b16 %v399
      %v701 = vunpack.c.l.b16 %v400
      %v702 = vunpack.c.l.b16 %v401
      %v703 = vunpack.c.l.b16 %v402
      %v704 = vunpack.c.l.b16 %v403
      %v705 = vpack.c.b16 %v698, %v697
      %v706 = vpack.c.b16 %v700, %v699
      %v707 = vpack.c.b16 %v702, %v701
      %v708 = vpack.c.b16 %v704, %v703
      %v729 = vunpack.c.l.b16 %v404
      %v730 = vunpack.c.l.b16 %v405
      %v731 = vunpack.c.l.b16 %v406
      %v732 = vunpack.c.l.b16 %v407
      %v733 = vunpack.c.l.b16 %v408
      %v734 = vunpack.c.l.b16 %v409
      %v735 = vunpack.c.l.b16 %v410
      %v736 = vunpack.c.l.b16 %v411
      %v737 = vunpack.c.l.b16 %v412
      %v738 = vunpack.c.l.b16 %v413
      %v739 = vunpack.c.l.b16 %v414
      %v740 = vunpack.c.l.b16 %v415
      %v741 = vunpack.c.l.b16 %v416
      %v742 = vunpack.c.l.b16 %v417
      %v743 = vunpack.c.l.b16 %v418
      %v744 = vunpack.c.l.b16 %v419
      %v745 = vpack.c.b16 %v730, %v729
      %v746 = vpack.c.b16 %v732, %v731
      %v747 = vpack.c.b16 %v734, %v733
      %v748 = vpack.c.b16 %v736, %v735
      %v749 = vpack.c.b16 %v738, %v737
      %v750 = vpack.c.b16 %v740, %v739
      %v751 = vpack.c.b16 %v742, %v741
      %v752 = vpack.c.b16 %v744, %v743
      %761 = vmatprep.subr.bf16.mxu0 0
      %762 = vmatpush1.bf16.msra.mxu0 %v752
      %763 = vmatprep.subr.bf16.mxu0 0
      %764 = vmatpush1.bf16.msra.mxu0 %v751
      %765 = vmatprep.subr.bf16.mxu0 0
      %766 = vmatpush1.bf16.msra.mxu0 %v750
      %767 = vmatprep.subr.bf16.mxu0 0
      %768 = vmatpush1.bf16.msra.mxu0 %v749
      %769 = vmatprep.subr.bf16.mxu0 0
      %770 = vmatpush1.bf16.msra.mxu0 %v748
      %771 = vmatprep.subr.bf16.mxu0 0
      %772 = vmatpush1.bf16.msra.mxu0 %v747
      %773 = vmatprep.subr.bf16.mxu0 0
      %774 = vmatpush1.bf16.msra.mxu0 %v746
      %775 = vmatprep.subr.bf16.mxu0 0
      %776 = vmatpush1.bf16.msra.mxu0 %v745
      %777 = vmatprep.subr.bf16.mxu0 0
      %778 = vmatpush2.bf16.msra.mxu0 0
      %779 = vmatprep.subr.bf16.mxu0 0
      %780 = vmatpush2.bf16.msra.mxu0 0
      %781 = vmatprep.subr.bf16.mxu0 0
      %782 = vmatpush2.bf16.msra.mxu0 0
      %783 = vmatprep.subr.bf16.mxu0 0
      %784 = vmatpush2.bf16.msra.mxu0 0
      %785 = vmatprep.subr.bf16.mxu0 0
      %786 = vmatpush2.bf16.msra.mxu0 0
      %787 = vmatprep.subr.bf16.mxu0 0
      %788 = vmatpush2.bf16.msra.mxu0 0
      %789 = vmatprep.subr.bf16.mxu0 0
      %790 = vmatpush2.bf16.msra.mxu0 0
      %791 = vmatprep.subr.bf16.mxu0 0
      %792 = vmatpush2.bf16.msra.mxu0 0
      %793 = vmatprep.mubr.bf16.mxu0 0
      %794 = vmatmul.mubr.bf16.gmra.mxu0 %v705
      %v795 = vpop.f32.mrf.mxu0
      %v796 = vadd.f32 %v659, %v795
      %v797 = vpop.f32.mrf.mxu0
      %v798 = vpop.f32.mrf.mxu0
      %v799 = vadd.f32 %v662, %v798
      %v800 = vpop.f32.mrf.mxu0
      %801 = vmatprep.mubr.bf16.mxu0 0
      %802 = vmatmul.mubr.bf16.gmra.mxu0 %v706
      %v803 = vpop.f32.mrf.mxu0
      %v804 = vadd.f32 %v667, %v803
      %v805 = vpop.f32.mrf.mxu0
      %v806 = vpop.f32.mrf.mxu0
      %v807 = vadd.f32 %v670, %v806
      %v808 = vpop.f32.mrf.mxu0
      %809 = vmatprep.mubr.bf16.mxu0 0
      %810 = vmatmul.mubr.bf16.gmra.mxu0 %v707
      %v811 = vpop.f32.mrf.mxu0
      %v812 = vadd.f32 %v675, %v811
      %v813 = vpop.f32.mrf.mxu0
      %v814 = vpop.f32.mrf.mxu0
      %v815 = vadd.f32 %v678, %v814
      %v816 = vpop.f32.mrf.mxu0
      %817 = vmatprep.mubr.bf16.mxu0 0
      %818 = vmatmul.mubr.bf16.gmra.mxu0 %v708
      %v819 = vpop.f32.mrf.mxu0
      %v820 = vadd.f32 %v683, %v819
      %v821 = vpop.f32.mrf.mxu0
      %v822 = vpop.f32.mrf.mxu0
      %v823 = vadd.f32 %v686, %v822
      %v824 = vpop.f32.mrf.mxu0
      %825 = vdwg.mxu0
      %v826 = vld [vmem:[#allocation2] sm:$0xe]
      %v827 = vld [vmem:[#allocation2 + $0x8] sm:$0xe]
      %v828 = vld [vmem:[#allocation2 + $0x10] sm:$0xe]
      %v829 = vld [vmem:[#allocation2 + $0x18] sm:$0xe]
      %v830 = vld [vmem:[#allocation2 + $0x20] sm:$0xe]
      %v831 = vld [vmem:[#allocation2 + $0x28] sm:$0xe]
      %v832 = vld [vmem:[#allocation2 + $0x30] sm:$0xe]
      %v833 = vld [vmem:[#allocation2 + $0x38] sm:$0xe]
      %vm850 = vcmask 1042432
      %vm851 = vcmask 1046532
      %vm852 = vmor %vm850, %vm851
      %v853 = vrot.slane %v826, 5
      %v854 = vrot.slane %v853, 4
      %v855 = vrot.slane %v420, 5
      %v856 = vsel %vm852, %v854, %v855
      %v857 = vrot.slane %v827, 5
      %v858 = vrot.slane %v857, 4
      %v859 = vrot.slane %v421, 5
      %v860 = vsel %vm852, %v858, %v859
      %v861 = vrot.slane %v828, 5
      %v862 = vrot.slane %v861, 4
      %v863 = vrot.slane %v422, 5
      %v864 = vsel %vm852, %v862, %v863
      %v865 = vrot.slane %v829, 5
      %v866 = vrot.slane %v865, 4
      %v867 = vrot.slane %v423, 5
      %v868 = vsel %vm852, %v866, %v867
      %v869 = vrot.slane %v830, 5
      %v870 = vrot.slane %v869, 4
      %v871 = vrot.slane %v424, 5
      %v872 = vsel %vm852, %v870, %v871
      %v873 = vrot.slane %v831, 5
      %v874 = vrot.slane %v873, 4
      %v875 = vrot.slane %v425, 5
      %v876 = vsel %vm852, %v874, %v875
      %v877 = vrot.slane %v832, 5
      %v878 = vrot.slane %v877, 4
      %v879 = vrot.slane %v426, 5
      %v880 = vsel %vm852, %v878, %v879
      %v881 = vrot.slane %v833, 5
      %v882 = vrot.slane %v881, 4
      %v883 = vrot.slane %v427, 5
      %v884 = vsel %vm852, %v882, %v883
      %s885 = scalar_lea.vmem %s1, 128
      %v886 = vld [vmem:[%s885] sm:$0xf]
      %v887 = vld [vmem:[%s885 + $0x4] sm:$0xf]
      %v888 = vld [vmem:[%s885 + $0x8] sm:$0xf]
      %v889 = vld [vmem:[%s885 + $0xc] sm:$0xf]
      %v890 = vld [vmem:[%s885 + $0x10] sm:$0xf]
      %v891 = vld [vmem:[%s885 + $0x14] sm:$0xf]
      %v892 = vld [vmem:[%s885 + $0x18] sm:$0xf]
      %v893 = vld [vmem:[%s885 + $0x1c] sm:$0xf]
      %v894 = vld [vmem:[%s885 + $0x20] sm:$0xf]
      %v895 = vld [vmem:[%s885 + $0x24] sm:$0xf]
      %v896 = vld [vmem:[%s885 + $0x28] sm:$0xf]
      %v897 = vld [vmem:[%s885 + $0x2c] sm:$0xf]
      %v898 = vld [vmem:[%s885 + $0x30] sm:$0xf]
      %v899 = vld [vmem:[%s885 + $0x34] sm:$0xf]
      %v900 = vld [vmem:[%s885 + $0x38] sm:$0xf]
      %v901 = vld [vmem:[%s885 + $0x3c] sm:$0xf]
      %v902 = vunpack.c.l.b16 %v856
      %v903 = vunpack.c.l.b16 %v860
      %v904 = vunpack.c.l.b16 %v864
      %v905 = vunpack.c.l.b16 %v868
      %v906 = vunpack.c.l.b16 %v872
      %v907 = vunpack.c.l.b16 %v876
      %v908 = vunpack.c.l.b16 %v880
      %v909 = vunpack.c.l.b16 %v884
      %v910 = vpack.c.b16 %v903, %v902
      %v911 = vpack.c.b16 %v905, %v904
      %v912 = vpack.c.b16 %v907, %v906
      %v913 = vpack.c.b16 %v909, %v908
      %v934 = vunpack.c.l.b16 %v886
      %v935 = vunpack.c.l.b16 %v887
      %v936 = vunpack.c.l.b16 %v888
      %v937 = vunpack.c.l.b16 %v889
      %v938 = vunpack.c.l.b16 %v890
      %v939 = vunpack.c.l.b16 %v891
      %v940 = vunpack.c.l.b16 %v892
      %v941 = vunpack.c.l.b16 %v893
      %v942 = vunpack.c.l.b16 %v894
      %v943 = vunpack.c.l.b16 %v895
      %v944 = vunpack.c.l.b16 %v896
      %v945 = vunpack.c.l.b16 %v897
      %v946 = vunpack.c.l.b16 %v898
      %v947 = vunpack.c.l.b16 %v899
      %v948 = vunpack.c.l.b16 %v900
      %v949 = vunpack.c.l.b16 %v901
      %v950 = vpack.c.b16 %v935, %v934
      %v951 = vpack.c.b16 %v937, %v936
      %v952 = vpack.c.b16 %v939, %v938
      %v953 = vpack.c.b16 %v941, %v940
      %v954 = vpack.c.b16 %v943, %v942
      %v955 = vpack.c.b16 %v945, %v944
      %v956 = vpack.c.b16 %v947, %v946
      %v957 = vpack.c.b16 %v949, %v948
      %966 = vmatprep.subr.bf16.mxu0 0
      %967 = vmatpush1.bf16.msra.mxu0 %v957
      %968 = vmatprep.subr.bf16.mxu0 0
      %969 = vmatpush1.bf16.msra.mxu0 %v956
      %970 = vmatprep.subr.bf16.mxu0 0
      %971 = vmatpush1.bf16.msra.mxu0 %v955
      %972 = vmatprep.subr.bf16.mxu0 0
      %973 = vmatpush1.bf16.msra.mxu0 %v954
      %974 = vmatprep.subr.bf16.mxu0 0
      %975 = vmatpush1.bf16.msra.mxu0 %v953
      %976 = vmatprep.subr.bf16.mxu0 0
      %977 = vmatpush1.bf16.msra.mxu0 %v952
      %978 = vmatprep.subr.bf16.mxu0 0
      %979 = vmatpush1.bf16.msra.mxu0 %v951
      %980 = vmatprep.subr.bf16.mxu0 0
      %981 = vmatpush1.bf16.msra.mxu0 %v950
      %982 = vmatprep.subr.bf16.mxu0 0
      %983 = vmatpush2.bf16.msra.mxu0 0
      %984 = vmatprep.subr.bf16.mxu0 0
      %985 = vmatpush2.bf16.msra.mxu0 0
      %986 = vmatprep.subr.bf16.mxu0 0
      %987 = vmatpush2.bf16.msra.mxu0 0
      %988 = vmatprep.subr.bf16.mxu0 0
      %989 = vmatpush2.bf16.msra.mxu0 0
      %990 = vmatprep.subr.bf16.mxu0 0
      %991 = vmatpush2.bf16.msra.mxu0 0
      %992 = vmatprep.subr.bf16.mxu0 0
      %993 = vmatpush2.bf16.msra.mxu0 0
      %994 = vmatprep.subr.bf16.mxu0 0
      %995 = vmatpush2.bf16.msra.mxu0 0
      %996 = vmatprep.subr.bf16.mxu0 0
      %997 = vmatpush2.bf16.msra.mxu0 0
      %998 = vmatprep.mubr.bf16.mxu0 0
      %999 = vmatmul.mubr.bf16.gmra.mxu0 %v910
      %v1000 = vpop.f32.mrf.mxu0
      %v1001 = vadd.f32 0.0, %v1000
      %v1002 = vpop.f32.mrf.mxu0
      %v1003 = vpop.f32.mrf.mxu0
      %v1004 = vadd.f32 0.0, %v1003
      %v1005 = vpop.f32.mrf.mxu0
      %1006 = vmatprep.mubr.bf16.mxu0 0
      %1007 = vmatmul.mubr.bf16.gmra.mxu0 %v911
      %v1008 = vpop.f32.mrf.mxu0
      %v1009 = vadd.f32 0.0, %v1008
      %v1010 = vpop.f32.mrf.mxu0
      %v1011 = vpop.f32.mrf.mxu0
      %v1012 = vadd.f32 0.0, %v1011
      %v1013 = vpop.f32.mrf.mxu0
      %1014 = vmatprep.mubr.bf16.mxu0 0
      %1015 = vmatmul.mubr.bf16.gmra.mxu0 %v912
      %v1016 = vpop.f32.mrf.mxu0
      %v1017 = vadd.f32 0.0, %v1016
      %v1018 = vpop.f32.mrf.mxu0
      %v1019 = vpop.f32.mrf.mxu0
      %v1020 = vadd.f32 0.0, %v1019
      %v1021 = vpop.f32.mrf.mxu0
      %1022 = vmatprep.mubr.bf16.mxu0 0
      %1023 = vmatmul.mubr.bf16.gmra.mxu0 %v913
      %v1024 = vpop.f32.mrf.mxu0
      %v1025 = vadd.f32 0.0, %v1024
      %v1026 = vpop.f32.mrf.mxu0
      %v1027 = vpop.f32.mrf.mxu0
      %v1028 = vadd.f32 0.0, %v1027
      %v1029 = vpop.f32.mrf.mxu0
      %1030 = vdwg.mxu0
      %v1031 = vadd.f32 %v796, %v1001
      %v1032 = vadd.f32 %v799, %v1004
      %v1033 = vadd.f32 %v804, %v1009
      %v1034 = vadd.f32 %v807, %v1012
      %v1035 = vadd.f32 %v812, %v1017
      %v1036 = vadd.f32 %v815, %v1020
      %v1037 = vadd.f32 %v820, %v1025
      %v1038 = vadd.f32 %v823, %v1028
      %v1039 = vld [vmem:[%s204] sm:$0xf]
      %v1040 = vld [vmem:[%s204 + $0x8] sm:$0xf]
      %v1041 = vld [vmem:[%s204 + $0x10] sm:$0xf]
      %v1042 = vld [vmem:[%s204 + $0x18] sm:$0xf]
      %v1043 = vld [vmem:[%s204 + $0x20] sm:$0xf]
      %v1044 = vld [vmem:[%s204 + $0x28] sm:$0xf]
      %v1045 = vld [vmem:[%s204 + $0x30] sm:$0xf]
      %v1046 = vld [vmem:[%s204 + $0x38] sm:$0xf]
      %s1047 = scalar_lea.vmem %s1, 192
      %v1048 = vld [vmem:[%s1047] sm:$0xf]
      %v1049 = vld [vmem:[%s1047 + $0x4] sm:$0xf]
      %v1050 = vld [vmem:[%s1047 + $0x8] sm:$0xf]
      %v1051 = vld [vmem:[%s1047 + $0xc] sm:$0xf]
      %v1052 = vld [vmem:[%s1047 + $0x10] sm:$0xf]
      %v1053 = vld [vmem:[%s1047 + $0x14] sm:$0xf]
      %v1054 = vld [vmem:[%s1047 + $0x18] sm:$0xf]
      %v1055 = vld [vmem:[%s1047 + $0x1c] sm:$0xf]
      %v1056 = vld [vmem:[%s1047 + $0x20] sm:$0xf]
      %v1057 = vld [vmem:[%s1047 + $0x24] sm:$0xf]
      %v1058 = vld [vmem:[%s1047 + $0x28] sm:$0xf]
      %v1059 = vld [vmem:[%s1047 + $0x2c] sm:$0xf]
      %v1060 = vld [vmem:[%s1047 + $0x30] sm:$0xf]
      %v1061 = vld [vmem:[%s1047 + $0x34] sm:$0xf]
      %v1062 = vld [vmem:[%s1047 + $0x38] sm:$0xf]
      %v1063 = vld [vmem:[%s1047 + $0x3c] sm:$0xf]
      %v1072 = vunpack.c.l.b16 %v1039
      %v1073 = vunpack.c.l.b16 %v1040
      %v1074 = vunpack.c.l.b16 %v1041
      %v1075 = vunpack.c.l.b16 %v1042
      %v1076 = vunpack.c.l.b16 %v1043
      %v1077 = vunpack.c.l.b16 %v1044
      %v1078 = vunpack.c.l.b16 %v1045
      %v1079 = vunpack.c.l.b16 %v1046
      %v1080 = vpack.c.b16 %v1073, %v1072
      %v1081 = vpack.c.b16 %v1075, %v1074
      %v1082 = vpack.c.b16 %v1077, %v1076
      %v1083 = vpack.c.b16 %v1079, %v1078
      %v1104 = vunpack.c.l.b16 %v1048
      %v1105 = vunpack.c.l.b16 %v1049
      %v1106 = vunpack.c.l.b16 %v1050
      %v1107 = vunpack.c.l.b16 %v1051
      %v1108 = vunpack.c.l.b16 %v1052
      %v1109 = vunpack.c.l.b16 %v1053
      %v1110 = vunpack.c.l.b16 %v1054
      %v1111 = vunpack.c.l.b16 %v1055
      %v1112 = vunpack.c.l.b16 %v1056
      %v1113 = vunpack.c.l.b16 %v1057
      %v1114 = vunpack.c.l.b16 %v1058
      %v1115 = vunpack.c.l.b16 %v1059
      %v1116 = vunpack.c.l.b16 %v1060
      %v1117 = vunpack.c.l.b16 %v1061
      %v1118 = vunpack.c.l.b16 %v1062
      %v1119 = vunpack.c.l.b16 %v1063
      %v1120 = vpack.c.b16 %v1105, %v1104
      %v1121 = vpack.c.b16 %v1107, %v1106
      %v1122 = vpack.c.b16 %v1109, %v1108
      %v1123 = vpack.c.b16 %v1111, %v1110
      %v1124 = vpack.c.b16 %v1113, %v1112
      %v1125 = vpack.c.b16 %v1115, %v1114
      %v1126 = vpack.c.b16 %v1117, %v1116
      %v1127 = vpack.c.b16 %v1119, %v1118
      %1136 = vmatprep.subr.bf16.mxu0 0
      %1137 = vmatpush1.bf16.msra.mxu0 %v1127
      %1138 = vmatprep.subr.bf16.mxu0 0
      %1139 = vmatpush1.bf16.msra.mxu0 %v1126
      %1140 = vmatprep.subr.bf16.mxu0 0
      %1141 = vmatpush1.bf16.msra.mxu0 %v1125
      %1142 = vmatprep.subr.bf16.mxu0 0
      %1143 = vmatpush1.bf16.msra.mxu0 %v1124
      %1144 = vmatprep.subr.bf16.mxu0 0
      %1145 = vmatpush1.bf16.msra.mxu0 %v1123
      %1146 = vmatprep.subr.bf16.mxu0 0
      %1147 = vmatpush1.bf16.msra.mxu0 %v1122
      %1148 = vmatprep.subr.bf16.mxu0 0
      %1149 = vmatpush1.bf16.msra.mxu0 %v1121
      %1150 = vmatprep.subr.bf16.mxu0 0
      %1151 = vmatpush1.bf16.msra.mxu0 %v1120
      %1152 = vmatprep.subr.bf16.mxu0 0
      %1153 = vmatpush2.bf16.msra.mxu0 0
      %1154 = vmatprep.subr.bf16.mxu0 0
      %1155 = vmatpush2.bf16.msra.mxu0 0
      %1156 = vmatprep.subr.bf16.mxu0 0
      %1157 = vmatpush2.bf16.msra.mxu0 0
      %1158 = vmatprep.subr.bf16.mxu0 0
      %1159 = vmatpush2.bf16.msra.mxu0 0
      %1160 = vmatprep.subr.bf16.mxu0 0
      %1161 = vmatpush2.bf16.msra.mxu0 0
      %1162 = vmatprep.subr.bf16.mxu0 0
      %1163 = vmatpush2.bf16.msra.mxu0 0
      %1164 = vmatprep.subr.bf16.mxu0 0
      %1165 = vmatpush2.bf16.msra.mxu0 0
      %1166 = vmatprep.subr.bf16.mxu0 0
      %1167 = vmatpush2.bf16.msra.mxu0 0
      %1168 = vmatprep.mubr.bf16.mxu0 0
      %1169 = vmatmul.mubr.bf16.gmra.mxu0 %v1080
      %v1170 = vpop.f32.mrf.mxu0
      %v1171 = vadd.f32 0.0, %v1170
      %v1172 = vpop.f32.mrf.mxu0
      %v1173 = vpop.f32.mrf.mxu0
      %v1174 = vadd.f32 0.0, %v1173
      %v1175 = vpop.f32.mrf.mxu0
      %1176 = vmatprep.mubr.bf16.mxu0 0
      %1177 = vmatmul.mubr.bf16.gmra.mxu0 %v1081
      %v1178 = vpop.f32.mrf.mxu0
      %v1179 = vadd.f32 0.0, %v1178
      %v1180 = vpop.f32.mrf.mxu0
      %v1181 = vpop.f32.mrf.mxu0
      %v1182 = vadd.f32 0.0, %v1181
      %v1183 = vpop.f32.mrf.mxu0
      %1184 = vmatprep.mubr.bf16.mxu0 0
      %1185 = vmatmul.mubr.bf16.gmra.mxu0 %v1082
      %v1186 = vpop.f32.mrf.mxu0
      %v1187 = vadd.f32 0.0, %v1186
      %v1188 = vpop.f32.mrf.mxu0
      %v1189 = vpop.f32.mrf.mxu0
      %v1190 = vadd.f32 0.0, %v1189
      %v1191 = vpop.f32.mrf.mxu0
      %1192 = vmatprep.mubr.bf16.mxu0 0
      %1193 = vmatmul.mubr.bf16.gmra.mxu0 %v1083
      %v1194 = vpop.f32.mrf.mxu0
      %v1195 = vadd.f32 0.0, %v1194
      %v1196 = vpop.f32.mrf.mxu0
      %v1197 = vpop.f32.mrf.mxu0
      %v1198 = vadd.f32 0.0, %v1197
      %v1199 = vpop.f32.mrf.mxu0
      %1200 = vdwg.mxu0
      %v1201 = vadd.f32 %v1031, %v1171
      %v1202 = vadd.f32 %v1032, %v1174
      %v1203 = vadd.f32 %v1033, %v1179
      %v1204 = vadd.f32 %v1034, %v1182
      %v1205 = vadd.f32 %v1035, %v1187
      %v1206 = vadd.f32 %v1036, %v1190
      %v1207 = vadd.f32 %v1037, %v1195
      %v1208 = vadd.f32 %v1038, %v1198
      %v1209 = vld [vmem:[%s204] sm:$0xf]
      %v1210 = vld [vmem:[%s204 + $0x4] sm:$0x1]
      %v1211 = vld [vmem:[%s204 + $0x8] sm:$0xf]
      %v1212 = vld [vmem:[%s204 + $0xc] sm:$0x1]
      %v1213 = vld [vmem:[%s204 + $0x10] sm:$0xf]
      %v1214 = vld [vmem:[%s204 + $0x14] sm:$0x1]
      %v1215 = vld [vmem:[%s204 + $0x18] sm:$0xf]
      %v1216 = vld [vmem:[%s204 + $0x1c] sm:$0x1]
      %v1217 = vld [vmem:[%s204 + $0x20] sm:$0xf]
      %v1218 = vld [vmem:[%s204 + $0x24] sm:$0x1]
      %v1219 = vld [vmem:[%s204 + $0x28] sm:$0xf]
      %v1220 = vld [vmem:[%s204 + $0x2c] sm:$0x1]
      %v1221 = vld [vmem:[%s204 + $0x30] sm:$0xf]
      %v1222 = vld [vmem:[%s204 + $0x34] sm:$0x1]
      %v1223 = vld [vmem:[%s204 + $0x38] sm:$0xf]
      %v1224 = vld [vmem:[%s204 + $0x3c] sm:$0x1]
      %v1226 = vshrl.u32 %v1209, 16
      %v1228 = vrot.slane %v1226, 4
      %v1229 = vshll.u32 %v1209, 16
      %v1231 = vrot.slane %v1229, 5
      %v1232 = vor.u32 %v1228, %v1231
      %v1233 = vrot.slane %v1232, 4
      %v1235 = vshll.u32 %v1210, 16
      %v1237 = vrot.slane %v1235, 5
      %v1238 = vsel %vm430, %v1233, %v1237
      %v1240 = vshrl.u32 %v1211, 16
      %v1242 = vrot.slane %v1240, 4
      %v1243 = vshll.u32 %v1211, 16
      %v1245 = vrot.slane %v1243, 5
      %v1246 = vor.u32 %v1242, %v1245
      %v1247 = vrot.slane %v1246, 4
      %v1249 = vshll.u32 %v1212, 16
      %v1251 = vrot.slane %v1249, 5
      %v1252 = vsel %vm430, %v1247, %v1251
      %v1254 = vshrl.u32 %v1213, 16
      %v1256 = vrot.slane %v1254, 4
      %v1257 = vshll.u32 %v1213, 16
      %v1259 = vrot.slane %v1257, 5
      %v1260 = vor.u32 %v1256, %v1259
      %v1261 = vrot.slane %v1260, 4
      %v1263 = vshll.u32 %v1214, 16
      %v1265 = vrot.slane %v1263, 5
      %v1266 = vsel %vm430, %v1261, %v1265
      %v1268 = vshrl.u32 %v1215, 16
      %v1270 = vrot.slane %v1268, 4
      %v1271 = vshll.u32 %v1215, 16
      %v1273 = vrot.slane %v1271, 5
      %v1274 = vor.u32 %v1270, %v1273
      %v1275 = vrot.slane %v1274, 4
      %v1277 = vshll.u32 %v1216, 16
      %v1279 = vrot.slane %v1277, 5
      %v1280 = vsel %vm430, %v1275, %v1279
      %v1282 = vshrl.u32 %v1217, 16
      %v1284 = vrot.slane %v1282, 4
      %v1285 = vshll.u32 %v1217, 16
      %v1287 = vrot.slane %v1285, 5
      %v1288 = vor.u32 %v1284, %v1287
      %v1289 = vrot.slane %v1288, 4
      %v1291 = vshll.u32 %v1218, 16
      %v1293 = vrot.slane %v1291, 5
      %v1294 = vsel %vm430, %v1289, %v1293
      %v1296 = vshrl.u32 %v1219, 16
      %v1298 = vrot.slane %v1296, 4
      %v1299 = vshll.u32 %v1219, 16
      %v1301 = vrot.slane %v1299, 5
      %v1302 = vor.u32 %v1298, %v1301
      %v1303 = vrot.slane %v1302, 4
      %v1305 = vshll.u32 %v1220, 16
      %v1307 = vrot.slane %v1305, 5
      %v1308 = vsel %vm430, %v1303, %v1307
      %v1310 = vshrl.u32 %v1221, 16
      %v1312 = vrot.slane %v1310, 4
      %v1313 = vshll.u32 %v1221, 16
      %v1315 = vrot.slane %v1313, 5
      %v1316 = vor.u32 %v1312, %v1315
      %v1317 = vrot.slane %v1316, 4
      %v1319 = vshll.u32 %v1222, 16
      %v1321 = vrot.slane %v1319, 5
      %v1322 = vsel %vm430, %v1317, %v1321
      %v1324 = vshrl.u32 %v1223, 16
      %v1326 = vrot.slane %v1324, 4
      %v1327 = vshll.u32 %v1223, 16
      %v1329 = vrot.slane %v1327, 5
      %v1330 = vor.u32 %v1326, %v1329
      %v1331 = vrot.slane %v1330, 4
      %v1333 = vshll.u32 %v1224, 16
      %v1335 = vrot.slane %v1333, 5
      %v1336 = vsel %vm430, %v1331, %v1335
      %s1337 = scalar_lea.vmem %s1, 256
      %v1338 = vld [vmem:[%s1337] sm:$0xf]
      %v1339 = vld [vmem:[%s1337 + $0x4] sm:$0xf]
      %v1340 = vld [vmem:[%s1337 + $0x8] sm:$0xf]
      %v1341 = vld [vmem:[%s1337 + $0xc] sm:$0xf]
      %v1342 = vld [vmem:[%s1337 + $0x10] sm:$0xf]
      %v1343 = vld [vmem:[%s1337 + $0x14] sm:$0xf]
      %v1344 = vld [vmem:[%s1337 + $0x18] sm:$0xf]
      %v1345 = vld [vmem:[%s1337 + $0x1c] sm:$0xf]
      %v1346 = vld [vmem:[%s1337 + $0x20] sm:$0xf]
      %v1347 = vld [vmem:[%s1337 + $0x24] sm:$0xf]
      %v1348 = vld [vmem:[%s1337 + $0x28] sm:$0xf]
      %v1349 = vld [vmem:[%s1337 + $0x2c] sm:$0xf]
      %v1350 = vld [vmem:[%s1337 + $0x30] sm:$0xf]
      %v1351 = vld [vmem:[%s1337 + $0x34] sm:$0xf]
      %v1352 = vld [vmem:[%s1337 + $0x38] sm:$0xf]
      %v1353 = vld [vmem:[%s1337 + $0x3c] sm:$0xf]
      %v1354 = vunpack.c.l.b16 %v1238
      %v1355 = vunpack.c.l.b16 %v1252
      %v1356 = vunpack.c.l.b16 %v1266
      %v1357 = vunpack.c.l.b16 %v1280
      %v1358 = vunpack.c.l.b16 %v1294
      %v1359 = vunpack.c.l.b16 %v1308
      %v1360 = vunpack.c.l.b16 %v1322
      %v1361 = vunpack.c.l.b16 %v1336
      %v1362 = vpack.c.b16 %v1355, %v1354
      %v1363 = vpack.c.b16 %v1357, %v1356
      %v1364 = vpack.c.b16 %v1359, %v1358
      %v1365 = vpack.c.b16 %v1361, %v1360
      %v1386 = vunpack.c.l.b16 %v1338
      %v1387 = vunpack.c.l.b16 %v1339
      %v1388 = vunpack.c.l.b16 %v1340
      %v1389 = vunpack.c.l.b16 %v1341
      %v1390 = vunpack.c.l.b16 %v1342
      %v1391 = vunpack.c.l.b16 %v1343
      %v1392 = vunpack.c.l.b16 %v1344
      %v1393 = vunpack.c.l.b16 %v1345
      %v1394 = vunpack.c.l.b16 %v1346
      %v1395 = vunpack.c.l.b16 %v1347
      %v1396 = vunpack.c.l.b16 %v1348
      %v1397 = vunpack.c.l.b16 %v1349
      %v1398 = vunpack.c.l.b16 %v1350
      %v1399 = vunpack.c.l.b16 %v1351
      %v1400 = vunpack.c.l.b16 %v1352
      %v1401 = vunpack.c.l.b16 %v1353
      %v1402 = vpack.c.b16 %v1387, %v1386
      %v1403 = vpack.c.b16 %v1389, %v1388
      %v1404 = vpack.c.b16 %v1391, %v1390
      %v1405 = vpack.c.b16 %v1393, %v1392
      %v1406 = vpack.c.b16 %v1395, %v1394
      %v1407 = vpack.c.b16 %v1397, %v1396
      %v1408 = vpack.c.b16 %v1399, %v1398
      %v1409 = vpack.c.b16 %v1401, %v1400
      %1418 = vmatprep.subr.bf16.mxu0 0
      %1419 = vmatpush1.bf16.msra.mxu0 %v1409
      %1420 = vmatprep.subr.bf16.mxu0 0
      %1421 = vmatpush1.bf16.msra.mxu0 %v1408
      %1422 = vmatprep.subr.bf16.mxu0 0
      %1423 = vmatpush1.bf16.msra.mxu0 %v1407
      %1424 = vmatprep.subr.bf16.mxu0 0
      %1425 = vmatpush1.bf16.msra.mxu0 %v1406
      %1426 = vmatprep.subr.bf16.mxu0 0
      %1427 = vmatpush1.bf16.msra.mxu0 %v1405
      %1428 = vmatprep.subr.bf16.mxu0 0
      %1429 = vmatpush1.bf16.msra.mxu0 %v1404
      %1430 = vmatprep.subr.bf16.mxu0 0
      %1431 = vmatpush1.bf16.msra.mxu0 %v1403
      %1432 = vmatprep.subr.bf16.mxu0 0
      %1433 = vmatpush1.bf16.msra.mxu0 %v1402
      %1434 = vmatprep.subr.bf16.mxu0 0
      %1435 = vmatpush2.bf16.msra.mxu0 0
      %1436 = vmatprep.subr.bf16.mxu0 0
      %1437 = vmatpush2.bf16.msra.mxu0 0
      %1438 = vmatprep.subr.bf16.mxu0 0
      %1439 = vmatpush2.bf16.msra.mxu0 0
      %1440 = vmatprep.subr.bf16.mxu0 0
      %1441 = vmatpush2.bf16.msra.mxu0 0
      %1442 = vmatprep.subr.bf16.mxu0 0
      %1443 = vmatpush2.bf16.msra.mxu0 0
      %1444 = vmatprep.subr.bf16.mxu0 0
      %1445 = vmatpush2.bf16.msra.mxu0 0
      %1446 = vmatprep.subr.bf16.mxu0 0
      %1447 = vmatpush2.bf16.msra.mxu0 0
      %1448 = vmatprep.subr.bf16.mxu0 0
      %1449 = vmatpush2.bf16.msra.mxu0 0
      %1450 = vmatprep.mubr.bf16.mxu0 0
      %1451 = vmatmul.mubr.bf16.gmra.mxu0 %v1362
      %v1452 = vpop.f32.mrf.mxu0
      %v1453 = vadd.f32 0.0, %v1452
      %v1454 = vpop.f32.mrf.mxu0
      %v1455 = vpop.f32.mrf.mxu0
      %v1456 = vadd.f32 0.0, %v1455
      %v1457 = vpop.f32.mrf.mxu0
      %1458 = vmatprep.mubr.bf16.mxu0 0
      %1459 = vmatmul.mubr.bf16.gmra.mxu0 %v1363
      %v1460 = vpop.f32.mrf.mxu0
      %v1461 = vadd.f32 0.0, %v1460
      %v1462 = vpop.f32.mrf.mxu0
      %v1463 = vpop.f32.mrf.mxu0
      %v1464 = vadd.f32 0.0, %v1463
      %v1465 = vpop.f32.mrf.mxu0
      %1466 = vmatprep.mubr.bf16.mxu0 0
      %1467 = vmatmul.mubr.bf16.gmra.mxu0 %v1364
      %v1468 = vpop.f32.mrf.mxu0
      %v1469 = vadd.f32 0.0, %v1468
      %v1470 = vpop.f32.mrf.mxu0
      %v1471 = vpop.f32.mrf.mxu0
      %v1472 = vadd.f32 0.0, %v1471
      %v1473 = vpop.f32.mrf.mxu0
      %1474 = vmatprep.mubr.bf16.mxu0 0
      %1475 = vmatmul.mubr.bf16.gmra.mxu0 %v1365
      %v1476 = vpop.f32.mrf.mxu0
      %v1477 = vadd.f32 0.0, %v1476
      %v1478 = vpop.f32.mrf.mxu0
      %v1479 = vpop.f32.mrf.mxu0
      %v1480 = vadd.f32 0.0, %v1479
      %v1481 = vpop.f32.mrf.mxu0
      %1482 = vdwg.mxu0
      %v1483 = vadd.f32 %v1201, %v1453
      %v1484 = vadd.f32 %v1202, %v1456
      %v1485 = vadd.f32 %v1203, %v1461
      %v1486 = vadd.f32 %v1204, %v1464
      %v1487 = vadd.f32 %v1205, %v1469
      %v1488 = vadd.f32 %v1206, %v1472
      %v1489 = vadd.f32 %v1207, %v1477
      %v1490 = vadd.f32 %v1208, %v1480
      %v1491 = vld [vmem:[%s204] sm:$0xe]
      %v1492 = vld [vmem:[%s204 + $0x8] sm:$0xe]
      %v1493 = vld [vmem:[%s204 + $0x10] sm:$0xe]
      %v1494 = vld [vmem:[%s204 + $0x18] sm:$0xe]
      %v1495 = vld [vmem:[%s204 + $0x20] sm:$0xe]
      %v1496 = vld [vmem:[%s204 + $0x28] sm:$0xe]
      %v1497 = vld [vmem:[%s204 + $0x30] sm:$0xe]
      %v1498 = vld [vmem:[%s204 + $0x38] sm:$0xe]
      %v1515 = vrot.slane %v1491, 5
      %v1516 = vrot.slane %v1515, 4
      %v1517 = vrot.slane %v1210, 5
      %v1518 = vsel %vm852, %v1516, %v1517
      %v1519 = vrot.slane %v1492, 5
      %v1520 = vrot.slane %v1519, 4
      %v1521 = vrot.slane %v1212, 5
      %v1522 = vsel %vm852, %v1520, %v1521
      %v1523 = vrot.slane %v1493, 5
      %v1524 = vrot.slane %v1523, 4
      %v1525 = vrot.slane %v1214, 5
      %v1526 = vsel %vm852, %v1524, %v1525
      %v1527 = vrot.slane %v1494, 5
      %v1528 = vrot.slane %v1527, 4
      %v1529 = vrot.slane %v1216, 5
      %v1530 = vsel %vm852, %v1528, %v1529
      %v1531 = vrot.slane %v1495, 5
      %v1532 = vrot.slane %v1531, 4
      %v1533 = vrot.slane %v1218, 5
      %v1534 = vsel %vm852, %v1532, %v1533
      %v1535 = vrot.slane %v1496, 5
      %v1536 = vrot.slane %v1535, 4
      %v1537 = vrot.slane %v1220, 5
      %v1538 = vsel %vm852, %v1536, %v1537
      %v1539 = vrot.slane %v1497, 5
      %v1540 = vrot.slane %v1539, 4
      %v1541 = vrot.slane %v1222, 5
      %v1542 = vsel %vm852, %v1540, %v1541
      %v1543 = vrot.slane %v1498, 5
      %v1544 = vrot.slane %v1543, 4
      %v1545 = vrot.slane %v1224, 5
      %v1546 = vsel %vm852, %v1544, %v1545
      %s1547 = scalar_lea.vmem %s1, 320
      %v1548 = vld [vmem:[%s1547] sm:$0xf]
      %v1549 = vld [vmem:[%s1547 + $0x4] sm:$0xf]
      %v1550 = vld [vmem:[%s1547 + $0x8] sm:$0xf]
      %v1551 = vld [vmem:[%s1547 + $0xc] sm:$0xf]
      %v1552 = vld [vmem:[%s1547 + $0x10] sm:$0xf]
      %v1553 = vld [vmem:[%s1547 + $0x14] sm:$0xf]
      %v1554 = vld [vmem:[%s1547 + $0x18] sm:$0xf]
      %v1555 = vld [vmem:[%s1547 + $0x1c] sm:$0xf]
      %v1556 = vld [vmem:[%s1547 + $0x20] sm:$0xf]
      %v1557 = vld [vmem:[%s1547 + $0x24] sm:$0xf]
      %v1558 = vld [vmem:[%s1547 + $0x28] sm:$0xf]
      %v1559 = vld [vmem:[%s1547 + $0x2c] sm:$0xf]
      %v1560 = vld [vmem:[%s1547 + $0x30] sm:$0xf]
      %v1561 = vld [vmem:[%s1547 + $0x34] sm:$0xf]
      %v1562 = vld [vmem:[%s1547 + $0x38] sm:$0xf]
      %v1563 = vld [vmem:[%s1547 + $0x3c] sm:$0xf]
      %v1564 = vunpack.c.l.b16 %v1518
      %v1565 = vunpack.c.l.b16 %v1522
      %v1566 = vunpack.c.l.b16 %v1526
      %v1567 = vunpack.c.l.b16 %v1530
      %v1568 = vunpack.c.l.b16 %v1534
      %v1569 = vunpack.c.l.b16 %v1538
      %v1570 = vunpack.c.l.b16 %v1542
      %v1571 = vunpack.c.l.b16 %v1546
      %v1572 = vpack.c.b16 %v1565, %v1564
      %v1573 = vpack.c.b16 %v1567, %v1566
      %v1574 = vpack.c.b16 %v1569, %v1568
      %v1575 = vpack.c.b16 %v1571, %v1570
      %v1596 = vunpack.c.l.b16 %v1548
      %v1597 = vunpack.c.l.b16 %v1549
      %v1598 = vunpack.c.l.b16 %v1550
      %v1599 = vunpack.c.l.b16 %v1551
      %v1600 = vunpack.c.l.b16 %v1552
      %v1601 = vunpack.c.l.b16 %v1553
      %v1602 = vunpack.c.l.b16 %v1554
      %v1603 = vunpack.c.l.b16 %v1555
      %v1604 = vunpack.c.l.b16 %v1556
      %v1605 = vunpack.c.l.b16 %v1557
      %v1606 = vunpack.c.l.b16 %v1558
      %v1607 = vunpack.c.l.b16 %v1559
      %v1608 = vunpack.c.l.b16 %v1560
      %v1609 = vunpack.c.l.b16 %v1561
      %v1610 = vunpack.c.l.b16 %v1562
      %v1611 = vunpack.c.l.b16 %v1563
      %v1612 = vpack.c.b16 %v1597, %v1596
      %v1613 = vpack.c.b16 %v1599, %v1598
      %v1614 = vpack.c.b16 %v1601, %v1600
      %v1615 = vpack.c.b16 %v1603, %v1602
      %v1616 = vpack.c.b16 %v1605, %v1604
      %v1617 = vpack.c.b16 %v1607, %v1606
      %v1618 = vpack.c.b16 %v1609, %v1608
      %v1619 = vpack.c.b16 %v1611, %v1610
      %1628 = vmatprep.subr.bf16.mxu0 0
      %1629 = vmatpush1.bf16.msra.mxu0 %v1619
      %1630 = vmatprep.subr.bf16.mxu0 0
      %1631 = vmatpush1.bf16.msra.mxu0 %v1618
      %1632 = vmatprep.subr.bf16.mxu0 0
      %1633 = vmatpush1.bf16.msra.mxu0 %v1617
      %1634 = vmatprep.subr.bf16.mxu0 0
      %1635 = vmatpush1.bf16.msra.mxu0 %v1616
      %1636 = vmatprep.subr.bf16.mxu0 0
      %1637 = vmatpush1.bf16.msra.mxu0 %v1615
      %1638 = vmatprep.subr.bf16.mxu0 0
      %1639 = vmatpush1.bf16.msra.mxu0 %v1614
      %1640 = vmatprep.subr.bf16.mxu0 0
      %1641 = vmatpush1.bf16.msra.mxu0 %v1613
      %1642 = vmatprep.subr.bf16.mxu0 0
      %1643 = vmatpush1.bf16.msra.mxu0 %v1612
      %1644 = vmatprep.subr.bf16.mxu0 0
      %1645 = vmatpush2.bf16.msra.mxu0 0
      %1646 = vmatprep.subr.bf16.mxu0 0
      %1647 = vmatpush2.bf16.msra.mxu0 0
      %1648 = vmatprep.subr.bf16.mxu0 0
      %1649 = vmatpush2.bf16.msra.mxu0 0
      %1650 = vmatprep.subr.bf16.mxu0 0
      %1651 = vmatpush2.bf16.msra.mxu0 0
      %1652 = vmatprep.subr.bf16.mxu0 0
      %1653 = vmatpush2.bf16.msra.mxu0 0
      %1654 = vmatprep.subr.bf16.mxu0 0
      %1655 = vmatpush2.bf16.msra.mxu0 0
      %1656 = vmatprep.subr.bf16.mxu0 0
      %1657 = vmatpush2.bf16.msra.mxu0 0
      %1658 = vmatprep.subr.bf16.mxu0 0
      %1659 = vmatpush2.bf16.msra.mxu0 0
      %1660 = vmatprep.mubr.bf16.mxu0 0
      %1661 = vmatmul.mubr.bf16.gmra.mxu0 %v1572
      %v1662 = vpop.f32.mrf.mxu0
      %v1663 = vadd.f32 0.0, %v1662
      %v1664 = vpop.f32.mrf.mxu0
      %v1665 = vpop.f32.mrf.mxu0
      %v1666 = vadd.f32 0.0, %v1665
      %v1667 = vpop.f32.mrf.mxu0
      %1668 = vmatprep.mubr.bf16.mxu0 0
      %1669 = vmatmul.mubr.bf16.gmra.mxu0 %v1573
      %v1670 = vpop.f32.mrf.mxu0
      %v1671 = vadd.f32 0.0, %v1670
      %v1672 = vpop.f32.mrf.mxu0
      %v1673 = vpop.f32.mrf.mxu0
      %v1674 = vadd.f32 0.0, %v1673
      %v1675 = vpop.f32.mrf.mxu0
      %1676 = vmatprep.mubr.bf16.mxu0 0
      %1677 = vmatmul.mubr.bf16.gmra.mxu0 %v1574
      %v1678 = vpop.f32.mrf.mxu0
      %v1679 = vadd.f32 0.0, %v1678
      %v1680 = vpop.f32.mrf.mxu0
      %v1681 = vpop.f32.mrf.mxu0
      %v1682 = vadd.f32 0.0, %v1681
      %v1683 = vpop.f32.mrf.mxu0
      %1684 = vmatprep.mubr.bf16.mxu0 0
      %1685 = vmatmul.mubr.bf16.gmra.mxu0 %v1575
      %v1686 = vpop.f32.mrf.mxu0
      %v1687 = vadd.f32 0.0, %v1686
      %v1688 = vpop.f32.mrf.mxu0
      %v1689 = vpop.f32.mrf.mxu0
      %v1690 = vadd.f32 0.0, %v1689
      %v1691 = vpop.f32.mrf.mxu0
      %1692 = vdwg.mxu0
      %v1693 = vadd.f32 %v1483, %v1663
      %v1694 = vadd.f32 %v1484, %v1666
      %v1695 = vadd.f32 %v1485, %v1671
      %v1696 = vadd.f32 %v1486, %v1674
      %v1697 = vadd.f32 %v1487, %v1679
      %v1698 = vadd.f32 %v1488, %v1682
      %v1699 = vadd.f32 %v1489, %v1687
      %v1700 = vadd.f32 %v1490, %v1690
      %s1701 = scalar_lea.vmem [#allocation2], 16
      %v1702 = vld [vmem:[%s1701] sm:$0xf]
      %v1703 = vld [vmem:[%s1701 + $0x8] sm:$0xf]
      %v1704 = vld [vmem:[%s1701 + $0x10] sm:$0xf]
      %v1705 = vld [vmem:[%s1701 + $0x18] sm:$0xf]
      %v1706 = vld [vmem:[%s1701 + $0x20] sm:$0xf]
      %v1707 = vld [vmem:[%s1701 + $0x28] sm:$0xf]
      %v1708 = vld [vmem:[%s1701 + $0x30] sm:$0xf]
      %v1709 = vld [vmem:[%s1701 + $0x38] sm:$0xf]
      %s1710 = scalar_lea.vmem %s1, 384
      %v1711 = vld [vmem:[%s1710] sm:$0xf]
      %v1712 = vld [vmem:[%s1710 + $0x4] sm:$0xf]
      %v1713 = vld [vmem:[%s1710 + $0x8] sm:$0xf]
      %v1714 = vld [vmem:[%s1710 + $0xc] sm:$0xf]
      %v1715 = vld [vmem:[%s1710 + $0x10] sm:$0xf]
      %v1716 = vld [vmem:[%s1710 + $0x14] sm:$0xf]
      %v1717 = vld [vmem:[%s1710 + $0x18] sm:$0xf]
      %v1718 = vld [vmem:[%s1710 + $0x1c] sm:$0xf]
      %v1719 = vld [vmem:[%s1710 + $0x20] sm:$0xf]
      %v1720 = vld [vmem:[%s1710 + $0x24] sm:$0xf]
      %v1721 = vld [vmem:[%s1710 + $0x28] sm:$0xf]
      %v1722 = vld [vmem:[%s1710 + $0x2c] sm:$0xf]
      %v1723 = vld [vmem:[%s1710 + $0x30] sm:$0xf]
      %v1724 = vld [vmem:[%s1710 + $0x34] sm:$0xf]
      %v1725 = vld [vmem:[%s1710 + $0x38] sm:$0xf]
      %v1726 = vld [vmem:[%s1710 + $0x3c] sm:$0xf]
      %v1735 = vunpack.c.l.b16 %v1702
      %v1736 = vunpack.c.l.b16 %v1703
      %v1737 = vunpack.c.l.b16 %v1704
      %v1738 = vunpack.c.l.b16 %v1705
      %v1739 = vunpack.c.l.b16 %v1706
      %v1740 = vunpack.c.l.b16 %v1707
      %v1741 = vunpack.c.l.b16 %v1708
      %v1742 = vunpack.c.l.b16 %v1709
      %v1743 = vpack.c.b16 %v1736, %v1735
      %v1744 = vpack.c.b16 %v1738, %v1737
      %v1745 = vpack.c.b16 %v1740, %v1739
      %v1746 = vpack.c.b16 %v1742, %v1741
      %v1767 = vunpack.c.l.b16 %v1711
      %v1768 = vunpack.c.l.b16 %v1712
      %v1769 = vunpack.c.l.b16 %v1713
      %v1770 = vunpack.c.l.b16 %v1714
      %v1771 = vunpack.c.l.b16 %v1715
      %v1772 = vunpack.c.l.b16 %v1716
      %v1773 = vunpack.c.l.b16 %v1717
      %v1774 = vunpack.c.l.b16 %v1718
      %v1775 = vunpack.c.l.b16 %v1719
      %v1776 = vunpack.c.l.b16 %v1720
      %v1777 = vunpack.c.l.b16 %v1721
      %v1778 = vunpack.c.l.b16 %v1722
      %v1779 = vunpack.c.l.b16 %v1723
      %v1780 = vunpack.c.l.b16 %v1724
      %v1781 = vunpack.c.l.b16 %v1725
      %v1782 = vunpack.c.l.b16 %v1726
      %v1783 = vpack.c.b16 %v1768, %v1767
      %v1784 = vpack.c.b16 %v1770, %v1769
      %v1785 = vpack.c.b16 %v1772, %v1771
      %v1786 = vpack.c.b16 %v1774, %v1773
      %v1787 = vpack.c.b16 %v1776, %v1775
      %v1788 = vpack.c.b16 %v1778, %v1777
      %v1789 = vpack.c.b16 %v1780, %v1779
      %v1790 = vpack.c.b16 %v1782, %v1781
      %1799 = vmatprep.subr.bf16.mxu0 0
      %1800 = vmatpush1.bf16.msra.mxu0 %v1790
      %1801 = vmatprep.subr.bf16.mxu0 0
      %1802 = vmatpush1.bf16.msra.mxu0 %v1789
      %1803 = vmatprep.subr.bf16.mxu0 0
      %1804 = vmatpush1.bf16.msra.mxu0 %v1788
      %1805 = vmatprep.subr.bf16.mxu0 0
      %1806 = vmatpush1.bf16.msra.mxu0 %v1787
      %1807 = vmatprep.subr.bf16.mxu0 0
      %1808 = vmatpush1.bf16.msra.mxu0 %v1786
      %1809 = vmatprep.subr.bf16.mxu0 0
      %1810 = vmatpush1.bf16.msra.mxu0 %v1785
      %1811 = vmatprep.subr.bf16.mxu0 0
      %1812 = vmatpush1.bf16.msra.mxu0 %v1784
      %1813 = vmatprep.subr.bf16.mxu0 0
      %1814 = vmatpush1.bf16.msra.mxu0 %v1783
      %1815 = vmatprep.subr.bf16.mxu0 0
      %1816 = vmatpush2.bf16.msra.mxu0 0
      %1817 = vmatprep.subr.bf16.mxu0 0
      %1818 = vmatpush2.bf16.msra.mxu0 0
      %1819 = vmatprep.subr.bf16.mxu0 0
      %1820 = vmatpush2.bf16.msra.mxu0 0
      %1821 = vmatprep.subr.bf16.mxu0 0
      %1822 = vmatpush2.bf16.msra.mxu0 0
      %1823 = vmatprep.subr.bf16.mxu0 0
      %1824 = vmatpush2.bf16.msra.mxu0 0
      %1825 = vmatprep.subr.bf16.mxu0 0
      %1826 = vmatpush2.bf16.msra.mxu0 0
      %1827 = vmatprep.subr.bf16.mxu0 0
      %1828 = vmatpush2.bf16.msra.mxu0 0
      %1829 = vmatprep.subr.bf16.mxu0 0
      %1830 = vmatpush2.bf16.msra.mxu0 0
      %1831 = vmatprep.mubr.bf16.mxu0 0
      %1832 = vmatmul.mubr.bf16.gmra.mxu0 %v1743
      %v1833 = vpop.f32.mrf.mxu0
      %v1834 = vadd.f32 0.0, %v1833
      %v1835 = vpop.f32.mrf.mxu0
      %v1836 = vpop.f32.mrf.mxu0
      %v1837 = vadd.f32 0.0, %v1836
      %v1838 = vpop.f32.mrf.mxu0
      %1839 = vmatprep.mubr.bf16.mxu0 0
      %1840 = vmatmul.mubr.bf16.gmra.mxu0 %v1744
      %v1841 = vpop.f32.mrf.mxu0
      %v1842 = vadd.f32 0.0, %v1841
      %v1843 = vpop.f32.mrf.mxu0
      %v1844 = vpop.f32.mrf.mxu0
      %v1845 = vadd.f32 0.0, %v1844
      %v1846 = vpop.f32.mrf.mxu0
      %1847 = vmatprep.mubr.bf16.mxu0 0
      %1848 = vmatmul.mubr.bf16.gmra.mxu0 %v1745
      %v1849 = vpop.f32.mrf.mxu0
      %v1850 = vadd.f32 0.0, %v1849
      %v1851 = vpop.f32.mrf.mxu0
      %v1852 = vpop.f32.mrf.mxu0
      %v1853 = vadd.f32 0.0, %v1852
      %v1854 = vpop.f32.mrf.mxu0
      %1855 = vmatprep.mubr.bf16.mxu0 0
      %1856 = vmatmul.mubr.bf16.gmra.mxu0 %v1746
      %v1857 = vpop.f32.mrf.mxu0
      %v1858 = vadd.f32 0.0, %v1857
      %v1859 = vpop.f32.mrf.mxu0
      %v1860 = vpop.f32.mrf.mxu0
      %v1861 = vadd.f32 0.0, %v1860
      %v1862 = vpop.f32.mrf.mxu0
      %1863 = vdwg.mxu0
      %v1864 = vadd.f32 %v1693, %v1834
      %v1865 = vadd.f32 %v1694, %v1837
      %v1866 = vadd.f32 %v1695, %v1842
      %v1867 = vadd.f32 %v1696, %v1845
      %v1868 = vadd.f32 %v1697, %v1850
      %v1869 = vadd.f32 %v1698, %v1853
      %v1870 = vadd.f32 %v1699, %v1858
      %v1871 = vadd.f32 %v1700, %v1861
      %v1872 = vld [vmem:[%s1701] sm:$0xf]
      %v1873 = vld [vmem:[%s1701 + $0x4] sm:$0x1]
      %v1874 = vld [vmem:[%s1701 + $0x8] sm:$0xf]
      %v1875 = vld [vmem:[%s1701 + $0xc] sm:$0x1]
      %v1876 = vld [vmem:[%s1701 + $0x10] sm:$0xf]
      %v1877 = vld [vmem:[%s1701 + $0x14] sm:$0x1]
      %v1878 = vld [vmem:[%s1701 + $0x18] sm:$0xf]
      %v1879 = vld [vmem:[%s1701 + $0x1c] sm:$0x1]
      %v1880 = vld [vmem:[%s1701 + $0x20] sm:$0xf]
      %v1881 = vld [vmem:[%s1701 + $0x24] sm:$0x1]
      %v1882 = vld [vmem:[%s1701 + $0x28] sm:$0xf]
      %v1883 = vld [vmem:[%s1701 + $0x2c] sm:$0x1]
      %v1884 = vld [vmem:[%s1701 + $0x30] sm:$0xf]
      %v1885 = vld [vmem:[%s1701 + $0x34] sm:$0x1]
      %v1886 = vld [vmem:[%s1701 + $0x38] sm:$0xf]
      %v1887 = vld [vmem:[%s1701 + $0x3c] sm:$0x1]
      %v1889 = vshrl.u32 %v1872, 16
      %v1891 = vrot.slane %v1889, 4
      %v1892 = vshll.u32 %v1872, 16
      %v1894 = vrot.slane %v1892, 5
      %v1895 = vor.u32 %v1891, %v1894
      %v1896 = vrot.slane %v1895, 4
      %v1898 = vshll.u32 %v1873, 16
      %v1900 = vrot.slane %v1898, 5
      %v1901 = vsel %vm430, %v1896, %v1900
      %v1903 = vshrl.u32 %v1874, 16
      %v1905 = vrot.slane %v1903, 4
      %v1906 = vshll.u32 %v1874, 16
      %v1908 = vrot.slane %v1906, 5
      %v1909 = vor.u32 %v1905, %v1908
      %v1910 = vrot.slane %v1909, 4
      %v1912 = vshll.u32 %v1875, 16
      %v1914 = vrot.slane %v1912, 5
      %v1915 = vsel %vm430, %v1910, %v1914
      %v1917 = vshrl.u32 %v1876, 16
      %v1919 = vrot.slane %v1917, 4
      %v1920 = vshll.u32 %v1876, 16
      %v1922 = vrot.slane %v1920, 5
      %v1923 = vor.u32 %v1919, %v1922
      %v1924 = vrot.slane %v1923, 4
      %v1926 = vshll.u32 %v1877, 16
      %v1928 = vrot.slane %v1926, 5
      %v1929 = vsel %vm430, %v1924, %v1928
      %v1931 = vshrl.u32 %v1878, 16
      %v1933 = vrot.slane %v1931, 4
      %v1934 = vshll.u32 %v1878, 16
      %v1936 = vrot.slane %v1934, 5
      %v1937 = vor.u32 %v1933, %v1936
      %v1938 = vrot.slane %v1937, 4
      %v1940 = vshll.u32 %v1879, 16
      %v1942 = vrot.slane %v1940, 5
      %v1943 = vsel %vm430, %v1938, %v1942
      %v1945 = vshrl.u32 %v1880, 16
      %v1947 = vrot.slane %v1945, 4
      %v1948 = vshll.u32 %v1880, 16
      %v1950 = vrot.slane %v1948, 5
      %v1951 = vor.u32 %v1947, %v1950
      %v1952 = vrot.slane %v1951, 4
      %v1954 = vshll.u32 %v1881, 16
      %v1956 = vrot.slane %v1954, 5
      %v1957 = vsel %vm430, %v1952, %v1956
      %v1959 = vshrl.u32 %v1882, 16
      %v1961 = vrot.slane %v1959, 4
      %v1962 = vshll.u32 %v1882, 16
      %v1964 = vrot.slane %v1962, 5
      %v1965 = vor.u32 %v1961, %v1964
      %v1966 = vrot.slane %v1965, 4
      %v1968 = vshll.u32 %v1883, 16
      %v1970 = vrot.slane %v1968, 5
      %v1971 = vsel %vm430, %v1966, %v1970
      %v1973 = vshrl.u32 %v1884, 16
      %v1975 = vrot.slane %v1973, 4
      %v1976 = vshll.u32 %v1884, 16
      %v1978 = vrot.slane %v1976, 5
      %v1979 = vor.u32 %v1975, %v1978
      %v1980 = vrot.slane %v1979, 4
      %v1982 = vshll.u32 %v1885, 16
      %v1984 = vrot.slane %v1982, 5
      %v1985 = vsel %vm430, %v1980, %v1984
      %v1987 = vshrl.u32 %v1886, 16
      %v1989 = vrot.slane %v1987, 4
      %v1990 = vshll.u32 %v1886, 16
      %v1992 = vrot.slane %v1990, 5
      %v1993 = vor.u32 %v1989, %v1992
      %v1994 = vrot.slane %v1993, 4
      %v1996 = vshll.u32 %v1887, 16
      %v1998 = vrot.slane %v1996, 5
      %v1999 = vsel %vm430, %v1994, %v1998
      %s2000 = scalar_lea.vmem %s1, 448
      %v2001 = vld [vmem:[%s2000] sm:$0xf]
      %v2002 = vld [vmem:[%s2000 + $0x4] sm:$0xf]
      %v2003 = vld [vmem:[%s2000 + $0x8] sm:$0xf]
      %v2004 = vld [vmem:[%s2000 + $0xc] sm:$0xf]
      %v2005 = vld [vmem:[%s2000 + $0x10] sm:$0xf]
      %v2006 = vld [vmem:[%s2000 + $0x14] sm:$0xf]
      %v2007 = vld [vmem:[%s2000 + $0x18] sm:$0xf]
      %v2008 = vld [vmem:[%s2000 + $0x1c] sm:$0xf]
      %v2009 = vld [vmem:[%s2000 + $0x20] sm:$0xf]
      %v2010 = vld [vmem:[%s2000 + $0x24] sm:$0xf]
      %v2011 = vld [vmem:[%s2000 + $0x28] sm:$0xf]
      %v2012 = vld [vmem:[%s2000 + $0x2c] sm:$0xf]
      %v2013 = vld [vmem:[%s2000 + $0x30] sm:$0xf]
      %v2014 = vld [vmem:[%s2000 + $0x34] sm:$0xf]
      %v2015 = vld [vmem:[%s2000 + $0x38] sm:$0xf]
      %v2016 = vld [vmem:[%s2000 + $0x3c] sm:$0xf]
      %v2017 = vunpack.c.l.b16 %v1901
      %v2018 = vunpack.c.l.b16 %v1915
      %v2019 = vunpack.c.l.b16 %v1929
      %v2020 = vunpack.c.l.b16 %v1943
      %v2021 = vunpack.c.l.b16 %v1957
      %v2022 = vunpack.c.l.b16 %v1971
      %v2023 = vunpack.c.l.b16 %v1985
      %v2024 = vunpack.c.l.b16 %v1999
      %v2025 = vpack.c.b16 %v2018, %v2017
      %v2026 = vpack.c.b16 %v2020, %v2019
      %v2027 = vpack.c.b16 %v2022, %v2021
      %v2028 = vpack.c.b16 %v2024, %v2023
      %v2049 = vunpack.c.l.b16 %v2001
      %v2050 = vunpack.c.l.b16 %v2002
      %v2051 = vunpack.c.l.b16 %v2003
      %v2052 = vunpack.c.l.b16 %v2004
      %v2053 = vunpack.c.l.b16 %v2005
      %v2054 = vunpack.c.l.b16 %v2006
      %v2055 = vunpack.c.l.b16 %v2007
      %v2056 = vunpack.c.l.b16 %v2008
      %v2057 = vunpack.c.l.b16 %v2009
      %v2058 = vunpack.c.l.b16 %v2010
      %v2059 = vunpack.c.l.b16 %v2011
      %v2060 = vunpack.c.l.b16 %v2012
      %v2061 = vunpack.c.l.b16 %v2013
      %v2062 = vunpack.c.l.b16 %v2014
      %v2063 = vunpack.c.l.b16 %v2015
      %v2064 = vunpack.c.l.b16 %v2016
      %v2065 = vpack.c.b16 %v2050, %v2049
      %v2066 = vpack.c.b16 %v2052, %v2051
      %v2067 = vpack.c.b16 %v2054, %v2053
      %v2068 = vpack.c.b16 %v2056, %v2055
      %v2069 = vpack.c.b16 %v2058, %v2057
      %v2070 = vpack.c.b16 %v2060, %v2059
      %v2071 = vpack.c.b16 %v2062, %v2061
      %v2072 = vpack.c.b16 %v2064, %v2063
      %2081 = vmatprep.subr.bf16.mxu0 0
      %2082 = vmatpush1.bf16.msra.mxu0 %v2072
      %2083 = vmatprep.subr.bf16.mxu0 0
      %2084 = vmatpush1.bf16.msra.mxu0 %v2071
      %2085 = vmatprep.subr.bf16.mxu0 0
      %2086 = vmatpush1.bf16.msra.mxu0 %v2070
      %2087 = vmatprep.subr.bf16.mxu0 0
      %2088 = vmatpush1.bf16.msra.mxu0 %v2069
      %2089 = vmatprep.subr.bf16.mxu0 0
      %2090 = vmatpush1.bf16.msra.mxu0 %v2068
      %2091 = vmatprep.subr.bf16.mxu0 0
      %2092 = vmatpush1.bf16.msra.mxu0 %v2067
      %2093 = vmatprep.subr.bf16.mxu0 0
      %2094 = vmatpush1.bf16.msra.mxu0 %v2066
      %2095 = vmatprep.subr.bf16.mxu0 0
      %2096 = vmatpush1.bf16.msra.mxu0 %v2065
      %2097 = vmatprep.subr.bf16.mxu0 0
      %2098 = vmatpush2.bf16.msra.mxu0 0
      %2099 = vmatprep.subr.bf16.mxu0 0
      %2100 = vmatpush2.bf16.msra.mxu0 0
      %2101 = vmatprep.subr.bf16.mxu0 0
      %2102 = vmatpush2.bf16.msra.mxu0 0
      %2103 = vmatprep.subr.bf16.mxu0 0
      %2104 = vmatpush2.bf16.msra.mxu0 0
      %2105 = vmatprep.subr.bf16.mxu0 0
      %2106 = vmatpush2.bf16.msra.mxu0 0
      %2107 = vmatprep.subr.bf16.mxu0 0
      %2108 = vmatpush2.bf16.msra.mxu0 0
      %2109 = vmatprep.subr.bf16.mxu0 0
      %2110 = vmatpush2.bf16.msra.mxu0 0
      %2111 = vmatprep.subr.bf16.mxu0 0
      %2112 = vmatpush2.bf16.msra.mxu0 0
      %2113 = vmatprep.mubr.bf16.mxu0 0
      %2114 = vmatmul.mubr.bf16.gmra.mxu0 %v2025
      %v2115 = vpop.f32.mrf.mxu0
      %v2116 = vadd.f32 0.0, %v2115
      %v2117 = vpop.f32.mrf.mxu0
      %v2118 = vpop.f32.mrf.mxu0
      %v2119 = vadd.f32 0.0, %v2118
      %v2120 = vpop.f32.mrf.mxu0
      %2121 = vmatprep.mubr.bf16.mxu0 0
      %2122 = vmatmul.mubr.bf16.gmra.mxu0 %v2026
      %v2123 = vpop.f32.mrf.mxu0
      %v2124 = vadd.f32 0.0, %v2123
      %v2125 = vpop.f32.mrf.mxu0
      %v2126 = vpop.f32.mrf.mxu0
      %v2127 = vadd.f32 0.0, %v2126
      %v2128 = vpop.f32.mrf.mxu0
      %2129 = vmatprep.mubr.bf16.mxu0 0
      %2130 = vmatmul.mubr.bf16.gmra.mxu0 %v2027
      %v2131 = vpop.f32.mrf.mxu0
      %v2132 = vadd.f32 0.0, %v2131
      %v2133 = vpop.f32.mrf.mxu0
      %v2134 = vpop.f32.mrf.mxu0
      %v2135 = vadd.f32 0.0, %v2134
      %v2136 = vpop.f32.mrf.mxu0
      %2137 = vmatprep.mubr.bf16.mxu0 0
      %2138 = vmatmul.mubr.bf16.gmra.mxu0 %v2028
      %v2139 = vpop.f32.mrf.mxu0
      %v2140 = vadd.f32 0.0, %v2139
      %v2141 = vpop.f32.mrf.mxu0
      %v2142 = vpop.f32.mrf.mxu0
      %v2143 = vadd.f32 0.0, %v2142
      %v2144 = vpop.f32.mrf.mxu0
      %2145 = vdwg.mxu0
      %v2146 = vadd.f32 %v1864, %v2116
      %v2147 = vadd.f32 %v1865, %v2119
      %v2148 = vadd.f32 %v1866, %v2124
      %v2149 = vadd.f32 %v1867, %v2127
      %v2150 = vadd.f32 %v1868, %v2132
      %v2151 = vadd.f32 %v1869, %v2135
      %v2152 = vadd.f32 %v1870, %v2140
      %v2153 = vadd.f32 %v1871, %v2143
      %v2154 = vld [vmem:[%s1701] sm:$0xe]
      %v2155 = vld [vmem:[%s1701 + $0x8] sm:$0xe]
      %v2156 = vld [vmem:[%s1701 + $0x10] sm:$0xe]
      %v2157 = vld [vmem:[%s1701 + $0x18] sm:$0xe]
      %v2158 = vld [vmem:[%s1701 + $0x20] sm:$0xe]
      %v2159 = vld [vmem:[%s1701 + $0x28] sm:$0xe]
      %v2160 = vld [vmem:[%s1701 + $0x30] sm:$0xe]
      %v2161 = vld [vmem:[%s1701 + $0x38] sm:$0xe]
      %v2178 = vrot.slane %v2154, 5
      %v2179 = vrot.slane %v2178, 4
      %v2180 = vrot.slane %v1873, 5
      %v2181 = vsel %vm852, %v2179, %v2180
      %v2182 = vrot.slane %v2155, 5
      %v2183 = vrot.slane %v2182, 4
      %v2184 = vrot.slane %v1875, 5
      %v2185 = vsel %vm852, %v2183, %v2184
      %v2186 = vrot.slane %v2156, 5
      %v2187 = vrot.slane %v2186, 4
      %v2188 = vrot.slane %v1877, 5
      %v2189 = vsel %vm852, %v2187, %v2188
      %v2190 = vrot.slane %v2157, 5
      %v2191 = vrot.slane %v2190, 4
      %v2192 = vrot.slane %v1879, 5
      %v2193 = vsel %vm852, %v2191, %v2192
      %v2194 = vrot.slane %v2158, 5
      %v2195 = vrot.slane %v2194, 4
      %v2196 = vrot.slane %v1881, 5
      %v2197 = vsel %vm852, %v2195, %v2196
      %v2198 = vrot.slane %v2159, 5
      %v2199 = vrot.slane %v2198, 4
      %v2200 = vrot.slane %v1883, 5
      %v2201 = vsel %vm852, %v2199, %v2200
      %v2202 = vrot.slane %v2160, 5
      %v2203 = vrot.slane %v2202, 4
      %v2204 = vrot.slane %v1885, 5
      %v2205 = vsel %vm852, %v2203, %v2204
      %v2206 = vrot.slane %v2161, 5
      %v2207 = vrot.slane %v2206, 4
      %v2208 = vrot.slane %v1887, 5
      %v2209 = vsel %vm852, %v2207, %v2208
      %s2210 = scalar_lea.vmem %s1, 512
      %v2211 = vld [vmem:[%s2210] sm:$0xf]
      %v2212 = vld [vmem:[%s2210 + $0x4] sm:$0xf]
      %v2213 = vld [vmem:[%s2210 + $0x8] sm:$0xf]
      %v2214 = vld [vmem:[%s2210 + $0xc] sm:$0xf]
      %v2215 = vld [vmem:[%s2210 + $0x10] sm:$0xf]
      %v2216 = vld [vmem:[%s2210 + $0x14] sm:$0xf]
      %v2217 = vld [vmem:[%s2210 + $0x18] sm:$0xf]
      %v2218 = vld [vmem:[%s2210 + $0x1c] sm:$0xf]
      %v2219 = vld [vmem:[%s2210 + $0x20] sm:$0xf]
      %v2220 = vld [vmem:[%s2210 + $0x24] sm:$0xf]
      %v2221 = vld [vmem:[%s2210 + $0x28] sm:$0xf]
      %v2222 = vld [vmem:[%s2210 + $0x2c] sm:$0xf]
      %v2223 = vld [vmem:[%s2210 + $0x30] sm:$0xf]
      %v2224 = vld [vmem:[%s2210 + $0x34] sm:$0xf]
      %v2225 = vld [vmem:[%s2210 + $0x38] sm:$0xf]
      %v2226 = vld [vmem:[%s2210 + $0x3c] sm:$0xf]
      %v2227 = vunpack.c.l.b16 %v2181
      %v2228 = vunpack.c.l.b16 %v2185
      %v2229 = vunpack.c.l.b16 %v2189
      %v2230 = vunpack.c.l.b16 %v2193
      %v2231 = vunpack.c.l.b16 %v2197
      %v2232 = vunpack.c.l.b16 %v2201
      %v2233 = vunpack.c.l.b16 %v2205
      %v2234 = vunpack.c.l.b16 %v2209
      %v2235 = vpack.c.b16 %v2228, %v2227
      %v2236 = vpack.c.b16 %v2230, %v2229
      %v2237 = vpack.c.b16 %v2232, %v2231
      %v2238 = vpack.c.b16 %v2234, %v2233
      %v2259 = vunpack.c.l.b16 %v2211
      %v2260 = vunpack.c.l.b16 %v2212
      %v2261 = vunpack.c.l.b16 %v2213
      %v2262 = vunpack.c.l.b16 %v2214
      %v2263 = vunpack.c.l.b16 %v2215
      %v2264 = vunpack.c.l.b16 %v2216
      %v2265 = vunpack.c.l.b16 %v2217
      %v2266 = vunpack.c.l.b16 %v2218
      %v2267 = vunpack.c.l.b16 %v2219
      %v2268 = vunpack.c.l.b16 %v2220
      %v2269 = vunpack.c.l.b16 %v2221
      %v2270 = vunpack.c.l.b16 %v2222
      %v2271 = vunpack.c.l.b16 %v2223
      %v2272 = vunpack.c.l.b16 %v2224
      %v2273 = vunpack.c.l.b16 %v2225
      %v2274 = vunpack.c.l.b16 %v2226
      %v2275 = vpack.c.b16 %v2260, %v2259
      %v2276 = vpack.c.b16 %v2262, %v2261
      %v2277 = vpack.c.b16 %v2264, %v2263
      %v2278 = vpack.c.b16 %v2266, %v2265
      %v2279 = vpack.c.b16 %v2268, %v2267
      %v2280 = vpack.c.b16 %v2270, %v2269
      %v2281 = vpack.c.b16 %v2272, %v2271
      %v2282 = vpack.c.b16 %v2274, %v2273
      %2291 = vmatprep.subr.bf16.mxu0 0
      %2292 = vmatpush1.bf16.msra.mxu0 %v2282
      %2293 = vmatprep.subr.bf16.mxu0 0
      %2294 = vmatpush1.bf16.msra.mxu0 %v2281
      %2295 = vmatprep.subr.bf16.mxu0 0
      %2296 = vmatpush1.bf16.msra.mxu0 %v2280
      %2297 = vmatprep.subr.bf16.mxu0 0
      %2298 = vmatpush1.bf16.msra.mxu0 %v2279
      %2299 = vmatprep.subr.bf16.mxu0 0
      %2300 = vmatpush1.bf16.msra.mxu0 %v2278
      %2301 = vmatprep.subr.bf16.mxu0 0
      %2302 = vmatpush1.bf16.msra.mxu0 %v2277
      %2303 = vmatprep.subr.bf16.mxu0 0
      %2304 = vmatpush1.bf16.msra.mxu0 %v2276
      %2305 = vmatprep.subr.bf16.mxu0 0
      %2306 = vmatpush1.bf16.msra.mxu0 %v2275
      %2307 = vmatprep.subr.bf16.mxu0 0
      %2308 = vmatpush2.bf16.msra.mxu0 0
      %2309 = vmatprep.subr.bf16.mxu0 0
      %2310 = vmatpush2.bf16.msra.mxu0 0
      %2311 = vmatprep.subr.bf16.mxu0 0
      %2312 = vmatpush2.bf16.msra.mxu0 0
      %2313 = vmatprep.subr.bf16.mxu0 0
      %2314 = vmatpush2.bf16.msra.mxu0 0
      %2315 = vmatprep.subr.bf16.mxu0 0
      %2316 = vmatpush2.bf16.msra.mxu0 0
      %2317 = vmatprep.subr.bf16.mxu0 0
      %2318 = vmatpush2.bf16.msra.mxu0 0
      %2319 = vmatprep.subr.bf16.mxu0 0
      %2320 = vmatpush2.bf16.msra.mxu0 0
      %2321 = vmatprep.subr.bf16.mxu0 0
      %2322 = vmatpush2.bf16.msra.mxu0 0
      %2323 = vmatprep.mubr.bf16.mxu0 0
      %2324 = vmatmul.mubr.bf16.gmra.mxu0 %v2235
      %v2325 = vpop.f32.mrf.mxu0
      %v2326 = vadd.f32 0.0, %v2325
      %v2327 = vpop.f32.mrf.mxu0
      %v2328 = vpop.f32.mrf.mxu0
      %v2329 = vadd.f32 0.0, %v2328
      %v2330 = vpop.f32.mrf.mxu0
      %2331 = vmatprep.mubr.bf16.mxu0 0
      %2332 = vmatmul.mubr.bf16.gmra.mxu0 %v2236
      %v2333 = vpop.f32.mrf.mxu0
      %v2334 = vadd.f32 0.0, %v2333
      %v2335 = vpop.f32.mrf.mxu0
      %v2336 = vpop.f32.mrf.mxu0
      %v2337 = vadd.f32 0.0, %v2336
      %v2338 = vpop.f32.mrf.mxu0
      %2339 = vmatprep.mubr.bf16.mxu0 0
      %2340 = vmatmul.mubr.bf16.gmra.mxu0 %v2237
      %v2341 = vpop.f32.mrf.mxu0
      %v2342 = vadd.f32 0.0, %v2341
      %v2343 = vpop.f32.mrf.mxu0
      %v2344 = vpop.f32.mrf.mxu0
      %v2345 = vadd.f32 0.0, %v2344
      %v2346 = vpop.f32.mrf.mxu0
      %2347 = vmatprep.mubr.bf16.mxu0 0
      %2348 = vmatmul.mubr.bf16.gmra.mxu0 %v2238
      %v2349 = vpop.f32.mrf.mxu0
      %v2350 = vadd.f32 0.0, %v2349
      %v2351 = vpop.f32.mrf.mxu0
      %v2352 = vpop.f32.mrf.mxu0
      %v2353 = vadd.f32 0.0, %v2352
      %v2354 = vpop.f32.mrf.mxu0
      %2355 = vdwg.mxu0
      %v2356 = vadd.f32 %v2146, %v2326
      %v2357 = vadd.f32 %v2147, %v2329
      %v2358 = vadd.f32 %v2148, %v2334
      %v2359 = vadd.f32 %v2149, %v2337
      %v2360 = vadd.f32 %v2150, %v2342
      %v2361 = vadd.f32 %v2151, %v2345
      %v2362 = vadd.f32 %v2152, %v2350
      %v2363 = vadd.f32 %v2153, %v2353
      %v2364 = vadd.f32 %v2356, %v2357
      %v2365 = vadd.f32 %v2364, %v2358
      %v2366 = vadd.f32 %v2365, %v2359
      %v2367 = vadd.f32 %v2366, %v2360
      %v2368 = vadd.f32 %v2367, %v2361
      %v2369 = vadd.f32 %v2368, %v2362
      %v2370 = vadd.f32 %v2369, %v2363
      %v2371 = vrot.slane %v2370, 4
      %v2372 = vadd.f32 %v2370, %v2371
      %v2373 = vrot.slane %v2372, 2
      %v2374 = vadd.f32 %v2372, %v2373
      %v2375 = vrot.slane %v2374, 1
      %v2376 = vadd.f32 %v2374, %v2375
      %v2377 = vmul.f32 %v2356, %v2356
      %v2378 = vmul.f32 %v2357, %v2357
      %v2379 = vmul.f32 %v2358, %v2358
      %v2380 = vmul.f32 %v2359, %v2359
      %v2381 = vmul.f32 %v2360, %v2360
      %v2382 = vmul.f32 %v2361, %v2361
      %v2383 = vmul.f32 %v2362, %v2362
      %v2384 = vmul.f32 %v2363, %v2363
      %v2385 = vadd.f32 %v2377, %v2378
      %v2386 = vadd.f32 %v2385, %v2379
      %v2387 = vadd.f32 %v2386, %v2380
      %v2388 = vadd.f32 %v2387, %v2381
      %v2389 = vadd.f32 %v2388, %v2382
      %v2390 = vadd.f32 %v2389, %v2383
      %v2391 = vadd.f32 %v2390, %v2384
      %v2392 = vrot.slane %v2391, 4
      %v2393 = vadd.f32 %v2391, %v2392
      %v2394 = vrot.slane %v2393, 2
      %v2395 = vadd.f32 %v2393, %v2394
      %v2396 = vrot.slane %v2395, 1
      %v2397 = vadd.f32 %v2395, %v2396
      %v2398 = vmul.f32 %v2376, 0.015625
      %v2399 = vmul.f32 %v2397, 0.015625
      %v2400 = vmul.f32 %v2398, %v2398
      %v2401 = vsub.f32 %v2399, %v2400
      %v2402 = vmax.f32 %v2401, 0.0
      %v2403 = vsub.f32 %v2356, %v2398
      %v2404 = vsub.f32 %v2357, %v2398
      %v2405 = vsub.f32 %v2358, %v2398
      %v2406 = vsub.f32 %v2359, %v2398
      %v2407 = vsub.f32 %v2360, %v2398
      %v2408 = vsub.f32 %v2361, %v2398
      %v2409 = vsub.f32 %v2362, %v2398
      %v2410 = vsub.f32 %v2363, %v2398
      %v2411 = vadd.f32 %v2402, 1e-05
      %v2412 = vrsqrt.pop %v2411
      %v2413 = vmul.f32 %v2403, %v2412
      %v2414 = vmul.f32 %v2404, %v2412
      %v2415 = vmul.f32 %v2405, %v2412
      %v2416 = vmul.f32 %v2406, %v2412
      %v2417 = vmul.f32 %v2407, %v2412
      %v2418 = vmul.f32 %v2408, %v2412
      %v2419 = vmul.f32 %v2409, %v2412
      %v2420 = vmul.f32 %v2410, %v2412
      %v2421 = vld [vmem:[%s2] sm:$0x1]
      %v2423 = vlaneseq
      %v2424 = vshrl.u32 %v2423, 7
      %v2425 = vsub.s32 0, %v2424
      %v2426 = vrot.slane %v2421, %v2425
      %v2428 = vmul.f32 %v2413, %v2426
      %v2429 = vmul.f32 %v2414, %v2426
      %v2430 = vmul.f32 %v2415, %v2426
      %v2431 = vmul.f32 %v2416, %v2426
      %v2432 = vmul.f32 %v2417, %v2426
      %v2433 = vmul.f32 %v2418, %v2426
      %v2434 = vmul.f32 %v2419, %v2426
      %v2435 = vmul.f32 %v2420, %v2426
      %v2436 = vld [vmem:[%s3] sm:$0x1]
      %v2438 = vlaneseq
      %v2439 = vshrl.u32 %v2438, 7
      %v2440 = vsub.s32 0, %v2439
      %v2441 = vrot.slane %v2436, %v2440
      %v2443 = vadd.f32 %v2428, %v2441
      %v2444 = vadd.f32 %v2429, %v2441
      %v2445 = vadd.f32 %v2430, %v2441
      %v2446 = vadd.f32 %v2431, %v2441
      %v2447 = vadd.f32 %v2432, %v2441
      %v2448 = vadd.f32 %v2433, %v2441
      %v2449 = vadd.f32 %v2434, %v2441
      %v2450 = vadd.f32 %v2435, %v2441
      %vm2451 = vcmp.gt.f32.partialorder %v2443, 0.0
      %vm2452 = vcmp.gt.f32.partialorder %v2444, 0.0
      %vm2453 = vcmp.gt.f32.partialorder %v2445, 0.0
      %vm2454 = vcmp.gt.f32.partialorder %v2446, 0.0
      %vm2455 = vcmp.gt.f32.partialorder %v2447, 0.0
      %vm2456 = vcmp.gt.f32.partialorder %v2448, 0.0
      %vm2457 = vcmp.gt.f32.partialorder %v2449, 0.0
      %vm2458 = vcmp.gt.f32.partialorder %v2450, 0.0
      %v2459 = vmul.f32 %v2443, 0.01
      %v2460 = vmul.f32 %v2444, 0.01
      %v2461 = vmul.f32 %v2445, 0.01
      %v2462 = vmul.f32 %v2446, 0.01
      %v2463 = vmul.f32 %v2447, 0.01
      %v2464 = vmul.f32 %v2448, 0.01
      %v2465 = vmul.f32 %v2449, 0.01
      %v2466 = vmul.f32 %v2450, 0.01
      %v2467 = vsel %vm2451, %v2443, %v2459
      %v2468 = vsel %vm2452, %v2444, %v2460
      %v2469 = vsel %vm2453, %v2445, %v2461
      %v2470 = vsel %vm2454, %v2446, %v2462
      %v2471 = vsel %vm2455, %v2447, %v2463
      %v2472 = vsel %vm2456, %v2448, %v2464
      %v2473 = vsel %vm2457, %v2449, %v2465
      %v2474 = vsel %vm2458, %v2450, %v2466
      %2475 = vst [vmem:[#allocation3] sm:$0xff] %v2467
      %2476 = vst [vmem:[#allocation3 + $0x8] sm:$0xff] %v2468
      %2477 = vst [vmem:[#allocation3 + $0x10] sm:$0xff] %v2469
      %2478 = vst [vmem:[#allocation3 + $0x18] sm:$0xff] %v2470
      %2479 = vst [vmem:[#allocation3 + $0x20] sm:$0xff] %v2471
      %2480 = vst [vmem:[#allocation3 + $0x28] sm:$0xff] %v2472
      %2481 = vst [vmem:[#allocation3 + $0x30] sm:$0xff] %v2473
      %2482 = vst [vmem:[#allocation3 + $0x38] sm:$0xff] %v2474
      %v2483 = vld [vmem:[#allocation3] ss:$2 sm:$0xf]
      %s2484 = scalar_lea.vmem [#allocation3], 8
      %v2485 = vld [vmem:[%s2484] ss:$2 sm:$0xf]
      %s2486 = scalar_lea.vmem [#allocation3], 16
      %v2487 = vld [vmem:[%s2486] ss:$2 sm:$0xf]
      %s2488 = scalar_lea.vmem [#allocation3], 24
      %v2489 = vld [vmem:[%s2488] ss:$2 sm:$0xf]
      %s2490 = scalar_lea.vmem [#allocation3], 32
      %v2491 = vld [vmem:[%s2490] ss:$2 sm:$0xf]
      %s2492 = scalar_lea.vmem [#allocation3], 40
      %v2493 = vld [vmem:[%s2492] ss:$2 sm:$0xf]
      %s2494 = scalar_lea.vmem [#allocation3], 48
      %v2495 = vld [vmem:[%s2494] ss:$2 sm:$0xf]
      %s2496 = scalar_lea.vmem [#allocation3], 56
      %v2497 = vld [vmem:[%s2496] ss:$2 sm:$0xf]
      %s2498 = scalar_lea.vmem [#allocation3], 1
      %v2499 = vld [vmem:[%s2498] ss:$2 sm:$0xf]
      %s2500 = scalar_lea.vmem [#allocation3], 9
      %v2501 = vld [vmem:[%s2500] ss:$2 sm:$0xf]
      %s2502 = scalar_lea.vmem [#allocation3], 17
      %v2503 = vld [vmem:[%s2502] ss:$2 sm:$0xf]
      %s2504 = scalar_lea.vmem [#allocation3], 25
      %v2505 = vld [vmem:[%s2504] ss:$2 sm:$0xf]
      %s2506 = scalar_lea.vmem [#allocation3], 33
      %v2507 = vld [vmem:[%s2506] ss:$2 sm:$0xf]
      %s2508 = scalar_lea.vmem [#allocation3], 41
      %v2509 = vld [vmem:[%s2508] ss:$2 sm:$0xf]
      %s2510 = scalar_lea.vmem [#allocation3], 49
      %v2511 = vld [vmem:[%s2510] ss:$2 sm:$0xf]
      %s2512 = scalar_lea.vmem [#allocation3], 57
      %v2513 = vld [vmem:[%s2512] ss:$2 sm:$0xf]
      %v2514 = vadd.f32 %v2483, %v2499
      %v2515 = vadd.f32 %v2485, %v2501
      %v2516 = vadd.f32 %v2487, %v2503
      %v2517 = vadd.f32 %v2489, %v2505
      %v2518 = vadd.f32 %v2491, %v2507
      %v2519 = vadd.f32 %v2493, %v2509
      %v2520 = vadd.f32 %v2495, %v2511
      %v2521 = vadd.f32 %v2497, %v2513
      %v2522 = vadd.f32 %v2514, %v2515
      %v2523 = vadd.f32 %v2516, %v2517
      %v2524 = vadd.f32 %v2518, %v2519
      %v2525 = vadd.f32 %v2520, %v2521
      %v2526 = vmul.f32 %v2522, 0.25
      %v2527 = vmul.f32 %v2523, 0.25
      %v2528 = vmul.f32 %v2524, 0.25
      %v2529 = vmul.f32 %v2525, 0.25
      %v2530 = vpack.c.bf16 %v2526, %v2526
      %v2531 = vpack.c.bf16 %v2527, %v2527
      %v2532 = vpack.c.bf16 %v2528, %v2528
      %v2533 = vpack.c.bf16 %v2529, %v2529
      %2534 = vst [vmem:[%s197] sm:$0x3] %v2530
      %2535 = vst [vmem:[%s197 + $0x2] sm:$0x3] %v2531
      %2536 = vst [vmem:[%s197 + $0x4] sm:$0x3] %v2532
      %2537 = vst [vmem:[%s197 + $0x6] sm:$0x3] %v2533
      %p2538 = scmp.lt.s32.totalorder %s15, 1
      %s2539 = scalar_select %p2538, %s15, 1
      %s2540 = smul.addr %s2539, 4
      %s2541 = smul.addr %s2540, 2
      %s2542 = scalar_lea.vmem %s4, %s2541
      // Predicated region
      $region37: #{_lambda_.5} parent=35 // pred_check
        %p2543 = pneg %p122
      $region38: #{_lambda_.5} parent=35 // pred_check_branch
        %2545 = sbr.rel (%p2543) target = $region40
      $region39: #{_lambda_.5} parent=35 // pred_region
        _
      $region40: #{_lambda_.5} parent=35 // pred_fallthru
        _
    $region36: #{_lambda_.5} parent=5 // pred_fallthru
      _
    %p2546 = scmp.le.s32.totalorder 2, %s10
    // Predicated region
    $region41: #{_lambda_.5} parent=5 // pred_check
      %p2547 = pneg %p2546
    $region42: #{_lambda_.5} parent=5 // pred_check_branch
      %2549 = sbr.rel (%p2547) target = $region44
    $region43: #{_lambda_.5} parent=5 // pred_region
      %s2550 = ssub.s32 %s10, 2
      // Predicated region
      $region45: #{_lambda_.5} parent=43 // pred_check
        %p2551 = pneg %p128
      $region46: #{_lambda_.5} parent=43 // pred_check_branch
        %2553 = sbr.rel (%p2551) target = $region48
      $region47: #{_lambda_.5} parent=43 // pred_region
        %p2554 = scmp.lt.s32.totalorder %s16, 1
        %s2555 = scalar_select %p2554, %s16, 1
        %s2556 = smul.addr %s2555, 4
        %s2557 = smul.addr %s2556, 2
        %s2558 = scalar_lea.vmem %s4, %s2557
      $region48: #{_lambda_.5} parent=43 // pred_fallthru
        _
    $region44: #{_lambda_.5} parent=5 // pred_fallthru
      _
  $region6: #{_lambda_.5} parent=0 // loop_footer
    %s14 = sadd.s32 1, %s10
  $region7: #{_lambda_.5} parent=0 // loop_footer_branch
    %9 = sbr.rel target = $region3
  $region8: #{_lambda_.5} parent=0 // loop_exit
    _

// kernel: _lambda_.6
$region0: #{_lambda_.6}
  #allocation0 [shape = 'u32[]', space=smem, size = 0x4, offset = 0x4, fixed_abs, tag = 'smem constant byte address 0x4 - core index']
  #allocation1 [shape = 'u32[144,128]{1,0:T(1,128)}', space=vmem, size = 0x12000, scoped, tag = 'internal scratch']
  #allocation2 [shape = 'bf16[1,6,6,128]{3,2,1,0:T(8,128)(2,1)}', space=vmem, size = 0x3000, scoped, tag = 'scratch operand']
  #allocation3 [shape = 'f32[1,4,4,128]{3,2,1,0:T(4,128)}', space=vmem, size = 0x2000, scoped, tag = 'scratch operand']
  %s0 = inlined_call_operand.vmem [shape: bf16[2,4,4,128], index: 0, kind: input, shape index: {}]
  %s1 = inlined_call_operand.vmem [shape: bf16[9,128,128], index: 1, kind: input, shape index: {}]
  %s2 = inlined_call_operand.vmem [shape: f32[1,128], index: 2, kind: input, shape index: {}]
  %s3 = inlined_call_operand.vmem [shape: f32[1,128], index: 3, kind: input, shape index: {}]
  %s4 = inlined_call_operand.vmem [shape: bf16[2,2,2,128], index: 4, kind: output, shape index: {}]
  %s5 = sld [smem:[#allocation0]]
  $region49: #{_lambda_.6} parent=0
    _
  %s7 = ssub.s32 1, %s5
  %s8 = scalar_select 0, %s7, %s5
  loop: start=0, step=1, limit=4
  $region2: #{_lambda_.6} parent=0 // loop_pre_header
    _
  $region3: #{_lambda_.6} parent=0 // loop_header
    %s10 = sphi 0, %s14
    %p11 = scmp.ge.s32.totalorder %s10, 4
    %s20 = sphi 0, %s22
    %s23 = sphi 0, %s20
    %s24 = sphi 0, %s23
    %s40 = sphi 0, %s24
    %s44 = sphi 0, %s44
    %s46 = sphi 0, %s44
    %s47 = sphi 0, %s46
    %s61 = sphi 0, %s47
    %s65 = sphi 0, %s65
    %s67 = sphi 0, %s65
    %s68 = sphi 0, %s67
    %s82 = sphi 0, %s68
    %s86 = sphi 0, %s86
    %s88 = sphi 0, %s86
    %s89 = sphi 0, %s88
    %s103 = sphi 0, %s89
    %s109 = sphi 0, %s111
    %s112 = sphi 0, %s109
    %s113 = sphi 0, %s112
    %s129 = sphi 0, %s113
  $region4: #{_lambda_.6} parent=0 // loop_header_branch
    %13 = sbr.rel (%p11) target = $region8
  $region5: #{_lambda_.6} parent=0 // loop_body
    %s15 = ssub.s32 %s10, 1
    %s16 = ssub.s32 %s10, 2
    %s17 = sadd.s32 %s10, 1
    %s18 = ssub.s32 %s10, %s17
    %p19 = scmp.eq.s32.totalorder %s18, 0
    %s21 = sadd.s32 %s20, 1
    %s22 = scalar_select %p19, %s20, %s21
    %p25 = pneg %p19
    %p26 = scmp.eq.s32.totalorder %s10, 1
    %p27 = por %p25, %p26
    %p28 = scmp.ne.s32.totalorder %s20, %s23
    %p29 = scmp.eq.s32.totalorder %s10, 0
    %p30 = por %p28, %p29
    %p31 = scmp.ne.s32.totalorder %s20, %s23
    %p32 = scmp.eq.s32.totalorder %s15, 1
    %p33 = por %p31, %p32
    %p34 = scmp.ne.s32.totalorder %s23, %s24
    %p35 = scmp.eq.s32.totalorder %s15, 0
    %p36 = por %p34, %p35
    %p37 = scmp.ne.s32.totalorder %s23, %s24
    %p38 = scmp.eq.s32.totalorder %s16, 1
    %p39 = por %p37, %p38
    %p41 = scmp.ne.s32.totalorder %s24, %s40
    %p42 = scmp.eq.s32.totalorder %s16, 0
    %p43 = por %p41, %p42
    %s45 = sadd.s32 %s44, 1
    %p48 = scmp.eq.s32.totalorder %s10, 1
    %p49 = scmp.ne.s32.totalorder %s44, %s46
    %p50 = scmp.eq.s32.totalorder %s10, 0
    %p51 = por %p49, %p50
    %p52 = scmp.ne.s32.totalorder %s44, %s46
    %p53 = scmp.eq.s32.totalorder %s15, 1
    %p54 = por %p52, %p53
    %p55 = scmp.ne.s32.totalorder %s46, %s47
    %p56 = scmp.eq.s32.totalorder %s15, 0
    %p57 = por %p55, %p56
    %p58 = scmp.ne.s32.totalorder %s46, %s47
    %p59 = scmp.eq.s32.totalorder %s16, 1
    %p60 = por %p58, %p59
    %p62 = scmp.ne.s32.totalorder %s47, %s61
    %p63 = scmp.eq.s32.totalorder %s16, 0
    %p64 = por %p62, %p63
    %s66 = sadd.s32 %s65, 1
    %p69 = scmp.eq.s32.totalorder %s10, 1
    %p70 = scmp.ne.s32.totalorder %s65, %s67
    %p71 = scmp.eq.s32.totalorder %s10, 0
    %p72 = por %p70, %p71
    %p73 = scmp.ne.s32.totalorder %s65, %s67
    %p74 = scmp.eq.s32.totalorder %s15, 1
    %p75 = por %p73, %p74
    %p76 = scmp.ne.s32.totalorder %s67, %s68
    %p77 = scmp.eq.s32.totalorder %s15, 0
    %p78 = por %p76, %p77
    %p79 = scmp.ne.s32.totalorder %s67, %s68
    %p80 = scmp.eq.s32.totalorder %s16, 1
    %p81 = por %p79, %p80
    %p83 = scmp.ne.s32.totalorder %s68, %s82
    %p84 = scmp.eq.s32.totalorder %s16, 0
    %p85 = por %p83, %p84
    %s87 = sadd.s32 %s86, 1
    %p90 = scmp.eq.s32.totalorder %s10, 1
    %p91 = scmp.ne.s32.totalorder %s86, %s88
    %p92 = scmp.eq.s32.totalorder %s10, 0
    %p93 = por %p91, %p92
    %p94 = scmp.ne.s32.totalorder %s86, %s88
    %p95 = scmp.eq.s32.totalorder %s15, 1
    %p96 = por %p94, %p95
    %p97 = scmp.ne.s32.totalorder %s88, %s89
    %p98 = scmp.eq.s32.totalorder %s15, 0
    %p99 = por %p97, %p98
    %p100 = scmp.ne.s32.totalorder %s88, %s89
    %p101 = scmp.eq.s32.totalorder %s16, 1
    %p102 = por %p100, %p101
    %p104 = scmp.ne.s32.totalorder %s89, %s103
    %p105 = scmp.eq.s32.totalorder %s16, 0
    %p106 = por %p104, %p105
    %s107 = ssub.s32 %s10, %s17
    %p108 = scmp.eq.s32.totalorder %s107, 0
    %s110 = sadd.s32 %s109, 1
    %s111 = scalar_select %p108, %s109, %s110
    %p114 = pneg %p108
    %p115 = scmp.eq.s32.totalorder %s10, 1
    %p116 = por %p114, %p115
    %p117 = scmp.ne.s32.totalorder %s109, %s112
    %p118 = scmp.eq.s32.totalorder %s10, 0
    %p119 = por %p117, %p118
    %p120 = scmp.ne.s32.totalorder %s109, %s112
    %p121 = scmp.eq.s32.totalorder %s15, 1
    %p122 = por %p120, %p121
    %p123 = scmp.ne.s32.totalorder %s112, %s113
    %p124 = scmp.eq.s32.totalorder %s15, 0
    %p125 = por %p123, %p124
    %p126 = scmp.ne.s32.totalorder %s112, %s113
    %p127 = scmp.eq.s32.totalorder %s16, 1
    %p128 = por %p126, %p127
    %p130 = scmp.ne.s32.totalorder %s113, %s129
    %p131 = scmp.eq.s32.totalorder %s16, 0
    %p132 = por %p130, %p131
    %p133 = scmp.le.s32.totalorder 1, %s10
    %p134 = scmp.lt.s32.totalorder %s10, 3
    %p135 = pnand %p133, %p134
    %p136 = pneg %p135
    // Predicated region
    $region9: #{_lambda_.6} parent=5 // pred_check
      _
    $region10: #{_lambda_.6} parent=5 // pred_check_branch
      %138 = sbr.rel (%p135) target = $region12
    $region11: #{_lambda_.6} parent=5 // pred_region
      %s139 = ssub.s32 %s10, 1
      // Predicated region
      $region13: #{_lambda_.6} parent=11 // pred_check
        %p140 = pneg %p57
      $region14: #{_lambda_.6} parent=11 // pred_check_branch
        %142 = sbr.rel (%p140) target = $region16
      $region15: #{_lambda_.6} parent=11 // pred_region
        _
      $region16: #{_lambda_.6} parent=11 // pred_fallthru
        _
      // Predicated region
      $region17: #{_lambda_.6} parent=11 // pred_check
        %p143 = pneg %p78
      $region18: #{_lambda_.6} parent=11 // pred_check_branch
        %145 = sbr.rel (%p143) target = $region20
      $region19: #{_lambda_.6} parent=11 // pred_region
        _
      $region20: #{_lambda_.6} parent=11 // pred_fallthru
        _
      // Predicated region
      $region21: #{_lambda_.6} parent=11 // pred_check
        %p146 = pneg %p99
      $region22: #{_lambda_.6} parent=11 // pred_check_branch
        %148 = sbr.rel (%p146) target = $region24
      $region23: #{_lambda_.6} parent=11 // pred_region
        _
      $region24: #{_lambda_.6} parent=11 // pred_fallthru
        _
    $region12: #{_lambda_.6} parent=5 // pred_fallthru
      _
    %p149 = scmp.lt.s32.totalorder %s10, 2
    // Predicated region
    $region25: #{_lambda_.6} parent=5 // pred_check
      %p150 = pneg %p149
    $region26: #{_lambda_.6} parent=5 // pred_check_branch
      %152 = sbr.rel (%p150) target = $region28
    $region27: #{_lambda_.6} parent=5 // pred_region
      // Predicated region
      $region29: #{_lambda_.6} parent=27 // pred_check
        %p153 = pneg %p30
      $region30: #{_lambda_.6} parent=27 // pred_check_branch
        %155 = sbr.rel (%p153) target = $region32
      $region31: #{_lambda_.6} parent=27 // pred_region
        %p156 = scmp.lt.s32.totalorder %s10, 1
        %s157 = scalar_select %p156, %s10, 1
        %s158 = smul.addr %s157, 4
        %s159 = smul.addr %s158, 2
        %s160 = scalar_lea.vmem %s0, %s159
      $region32: #{_lambda_.6} parent=27 // pred_fallthru
        _
    $region28: #{_lambda_.6} parent=5 // pred_fallthru
      _
    %p161 = scmp.le.s32.totalorder 1, %s10
    %p162 = scmp.lt.s32.totalorder %s10, 3
    %p163 = pnand %p161, %p162
    %p164 = pneg %p163
    // Predicated region
    $region33: #{_lambda_.6} parent=5 // pred_check
      _
    $region34: #{_lambda_.6} parent=5 // pred_check_branch
      %166 = sbr.rel (%p163) target = $region36
    $region35: #{_lambda_.6} parent=5 // pred_region
      %s167 = ssub.s32 %s10, 1
      %p168 = scmp.lt.s32.totalorder %s15, 1
      %s169 = scalar_select %p168, %s15, 1
      %s170 = smul.addr %s169, 4
      %s171 = smul.addr %s170, 2
      %s172 = scalar_lea.vmem %s0, %s171
      %p173 = pneg %p36
      %p174 = pneg %p33
      %p175 = pneg %p57
      %p176 = pneg %p54
      %p177 = pneg %p78
      %p178 = pneg %p75
      %p179 = pneg %p99
      %p180 = pneg %p96
      %p181 = pneg %p125
      %p182 = pneg %p122
      %p183 = scmp.lt.s32.totalorder %s15, 1
      %s184 = scalar_select %p183, %s15, 1
      %s185 = smul.addr %s184, 2
      %s186 = scalar_lea.vmem %s4, %s185
      %p187 = scmp.lt.s32.totalorder %s15, 1
      %s188 = scalar_select %p187, %s15, 1
      %s189 = smul.addr %s188, 4
      %s190 = smul.addr %s189, 2
      %s191 = scalar_lea.vmem %s0, %s190
      %p192 = scmp.lt.s32.totalorder %s15, 1
      %s193 = scalar_select %p192, %s15, 1
      %s194 = smul.addr %s193, 2
      %s195 = scalar_lea.vmem %s4, %s194
      %197 = vst [vmem:[#allocation2] sm:$0x7] 0
      %s198 = scalar_lea.vmem [#allocation2], 20
      %199 = vst [vmem:[%s198] sm:$0x7] 0
      %s200 = scalar_lea.vmem [#allocation2], 4
      %vm201 = vcmask 1040384
      %vm202 = vsmask.f32 256
      %vm203 = vmand %vm201, %vm202
      %v204 = vld [vmem:[%s200] sm:$0x1]
      %v205 = vsel %vm203, 0, %v204
      %206 = vst [vmem:[%s200] sm:$0x1] %v205
      %v207 = vld [vmem:[%s200 + $0x4] sm:$0x1]
      %v208 = vsel %vm203, 0, %v207
      %209 = vst [vmem:[%s200 + $0x4] sm:$0x1] %v208
      %v210 = vld [vmem:[%s200 + $0x8] sm:$0x1]
      %v211 = vsel %vm203, 0, %v210
      %212 = vst [vmem:[%s200 + $0x8] sm:$0x1] %v211
      %v213 = vld [vmem:[%s200 + $0xc] sm:$0x1]
      %v214 = vsel %vm203, 0, %v213
      %215 = vst [vmem:[%s200 + $0xc] sm:$0x1] %v214
      %vm216 = vcmask 1042434
      %vm217 = vsmask.f32 7946
      %vm218 = vmand %vm216, %vm217
      %v219 = vld [vmem:[%s200] sm:$0x4]
      %v220 = vsel %vm218, 0, %v219
      %221 = vst [vmem:[%s200] sm:$0x4] %v220
      %v222 = vld [vmem:[%s200 + $0x4] sm:$0x4]
      %v223 = vsel %vm218, 0, %v222
      %224 = vst [vmem:[%s200 + $0x4] sm:$0x4] %v223
      %v225 = vld [vmem:[%s200 + $0x8] sm:$0x4]
      %v226 = vsel %vm218, 0, %v225
      %227 = vst [vmem:[%s200 + $0x8] sm:$0x4] %v226
      %v228 = vld [vmem:[%s200 + $0xc] sm:$0x4]
      %v229 = vsel %vm218, 0, %v228
      %230 = vst [vmem:[%s200 + $0xc] sm:$0x4] %v229
      %v231 = vld [vmem:[%s191] sm:$0x3]
      %v232 = vld [vmem:[%s191 + $0x2] sm:$0x3]
      %v233 = vld [vmem:[%s191 + $0x4] sm:$0x3]
      %v234 = vld [vmem:[%s191 + $0x6] sm:$0x3]
      %v240 = vunpack.c.l.s4 1983009808
      %v241 = vunpack.c.0.s8 %v240
      %v242 = vlaneseq
      %v243 = vshrl.u32 %v242, 7
      %v244 = vsub.s32 %v241, %v243
      %v245 = vrot.slane %v231, %v244
      %v247 = vunpack.c.l.s4 1983009808
      %v248 = vunpack.c.0.s8 %v247
      %v249 = vlaneseq
      %v250 = vshrl.u32 %v249, 7
      %v251 = vsub.s32 %v248, %v250
      %v252 = vrot.slane %v232, %v251
      %v254 = vunpack.c.l.s4 1983009808
      %v255 = vunpack.c.0.s8 %v254
      %v256 = vlaneseq
      %v257 = vshrl.u32 %v256, 7
      %v258 = vsub.s32 %v255, %v257
      %v259 = vrot.slane %v233, %v258
      %v261 = vunpack.c.l.s4 1983009808
      %v262 = vunpack.c.0.s8 %v261
      %v263 = vlaneseq
      %v264 = vshrl.u32 %v263, 7
      %v265 = vsub.s32 %v262, %v264
      %v266 = vrot.slane %v234, %v265
      %v268 = vshrl.u32 %v245, 16
      %v270 = vrot.slane %v268, 7
      %v271 = vshll.u32 %v245, 16
      %v273 = vor.u32 %v270, %v271
      %v275 = vshrl.u32 %v252, 16
      %v277 = vrot.slane %v275, 7
      %v278 = vshll.u32 %v252, 16
      %v280 = vor.u32 %v277, %v278
      %v282 = vshrl.u32 %v259, 16
      %v284 = vrot.slane %v282, 7
      %v285 = vshll.u32 %v259, 16
      %v287 = vor.u32 %v284, %v285
      %v289 = vshrl.u32 %v266, 16
      %v291 = vrot.slane %v289, 7
      %v292 = vshll.u32 %v266, 16
      %v294 = vor.u32 %v291, %v292
      %vm299 = vcmask 1042432
      %vm300 = vsmask.f32 2306
      %vm301 = vmand %vm299, %vm300
      %v302 = vld [vmem:[%s200] sm:$0x7]
      %v303 = vsel %vm301, %v273, %v302
      %304 = vst [vmem:[%s200] sm:$0x7] %v303
      %v305 = vld [vmem:[%s200 + $0x4] sm:$0x7]
      %v306 = vsel %vm301, %v280, %v305
      %307 = vst [vmem:[%s200 + $0x4] sm:$0x7] %v306
      %v308 = vld [vmem:[%s200 + $0x8] sm:$0x7]
      %v309 = vsel %vm301, %v287, %v308
      %310 = vst [vmem:[%s200 + $0x8] sm:$0x7] %v309
      %v311 = vld [vmem:[%s200 + $0xc] sm:$0x7]
      %v312 = vsel %vm301, %v294, %v311
      %313 = vst [vmem:[%s200 + $0xc] sm:$0x7] %v312
      %v314 = vld [vmem:[#allocation2] sm:$0x3]
      %v315 = vld [vmem:[#allocation2 + $0x4] sm:$0x3]
      %v316 = vld [vmem:[#allocation2 + $0x8] sm:$0x3]
      %v317 = vld [vmem:[#allocation2 + $0xc] sm:$0x3]
      %v318 = vld [vmem:[%s1] sm:$0xf]
      %v319 = vld [vmem:[%s1 + $0x4] sm:$0xf]
      %v320 = vld [vmem:[%s1 + $0x8] sm:$0xf]
      %v321 = vld [vmem:[%s1 + $0xc] sm:$0xf]
      %v322 = vld [vmem:[%s1 + $0x10] sm:$0xf]
      %v323 = vld [vmem:[%s1 + $0x14] sm:$0xf]
      %v324 = vld [vmem:[%s1 + $0x18] sm:$0xf]
      %v325 = vld [vmem:[%s1 + $0x1c] sm:$0xf]
      %v326 = vld [vmem:[%s1 + $0x20] sm:$0xf]
      %v327 = vld [vmem:[%s1 + $0x24] sm:$0xf]
      %v328 = vld [vmem:[%s1 + $0x28] sm:$0xf]
      %v329 = vld [vmem:[%s1 + $0x2c] sm:$0xf]
      %v330 = vld [vmem:[%s1 + $0x30] sm:$0xf]
      %v331 = vld [vmem:[%s1 + $0x34] sm:$0xf]
      %v332 = vld [vmem:[%s1 + $0x38] sm:$0xf]
      %v333 = vld [vmem:[%s1 + $0x3c] sm:$0xf]
      %v334 = vld [vmem:[#allocation2] sm:$0x7]
      %v335 = vld [vmem:[#allocation2 + $0x4] sm:$0x7]
      %v336 = vld [vmem:[#allocation2 + $0x8] sm:$0x7]
      %v337 = vld [vmem:[#allocation2 + $0xc] sm:$0x7]
      %v343 = vunpack.c.l.s4 1983009808
      %v344 = vunpack.c.0.s8 %v343
      %v345 = vlaneseq
      %v346 = vshrl.u32 %v345, 7
      %v347 = vsub.s32 %v344, %v346
      %v348 = vrot.slane %v334, %v347
      %v349 = vcombine.high %v348, %v348
      %v351 = vunpack.c.l.s4 1983009808
      %v352 = vunpack.c.0.s8 %v351
      %v353 = vlaneseq
      %v354 = vshrl.u32 %v353, 7
      %v355 = vsub.s32 %v352, %v354
      %v356 = vrot.slane %v335, %v355
      %v357 = vcombine.high %v356, %v356
      %v359 = vunpack.c.l.s4 1983009808
      %v360 = vunpack.c.0.s8 %v359
      %v361 = vlaneseq
      %v362 = vshrl.u32 %v361, 7
      %v363 = vsub.s32 %v360, %v362
      %v364 = vrot.slane %v336, %v363
      %v365 = vcombine.high %v364, %v364
      %v367 = vunpack.c.l.s4 1983009808
      %v368 = vunpack.c.0.s8 %v367
      %v369 = vlaneseq
      %v370 = vshrl.u32 %v369, 7
      %v371 = vsub.s32 %v368, %v370
      %v372 = vrot.slane %v337, %v371
      %v373 = vcombine.high %v372, %v372
      %vm374 = vsmask.f32 1280
      %vm375 = vsmask.f32 3336
      %vm376 = vmor %vm374, %vm375
      %vm377 = vsmask.f32 5392
      %vm378 = vmor %vm376, %vm377
      %vm379 = vsmask.f32 7448
      %vm380 = vmor %vm378, %vm379
      %v382 = vshrl.u32 %v348, 16
      %v384 = vrot.slane %v382, 6
      %v385 = vshll.u32 %v348, 16
      %v387 = vrot.slane %v385, 7
      %v388 = vor.u32 %v384, %v387
      %v389 = vrot.slane %v388, 2
      %v391 = vshll.u32 %v349, 16
      %v393 = vrot.slane %v391, 7
      %v394 = vsel %vm380, %v389, %v393
      %v396 = vshrl.u32 %v356, 16
      %v398 = vrot.slane %v396, 6
      %v399 = vshll.u32 %v356, 16
      %v401 = vrot.slane %v399, 7
      %v402 = vor.u32 %v398, %v401
      %v403 = vrot.slane %v402, 2
      %v405 = vshll.u32 %v357, 16
      %v407 = vrot.slane %v405, 7
      %v408 = vsel %vm380, %v403, %v407
      %v410 = vshrl.u32 %v364, 16
      %v412 = vrot.slane %v410, 6
      %v413 = vshll.u32 %v364, 16
      %v415 = vrot.slane %v413, 7
      %v416 = vor.u32 %v412, %v415
      %v417 = vrot.slane %v416, 2
      %v419 = vshll.u32 %v365, 16
      %v421 = vrot.slane %v419, 7
      %v422 = vsel %vm380, %v417, %v421
      %v424 = vshrl.u32 %v372, 16
      %v426 = vrot.slane %v424, 6
      %v427 = vshll.u32 %v372, 16
      %v429 = vrot.slane %v427, 7
      %v430 = vor.u32 %v426, %v429
      %v431 = vrot.slane %v430, 2
      %v433 = vshll.u32 %v373, 16
      %v435 = vrot.slane %v433, 7
      %v436 = vsel %vm380, %v431, %v435
      %s437 = scalar_lea.vmem %s1, 64
      %v438 = vld [vmem:[%s437] sm:$0xf]
      %v439 = vld [vmem:[%s437 + $0x4] sm:$0xf]
      %v440 = vld [vmem:[%s437 + $0x8] sm:$0xf]
      %v441 = vld [vmem:[%s437 + $0xc] sm:$0xf]
      %v442 = vld [vmem:[%s437 + $0x10] sm:$0xf]
      %v443 = vld [vmem:[%s437 + $0x14] sm:$0xf]
      %v444 = vld [vmem:[%s437 + $0x18] sm:$0xf]
      %v445 = vld [vmem:[%s437 + $0x1c] sm:$0xf]
      %v446 = vld [vmem:[%s437 + $0x20] sm:$0xf]
      %v447 = vld [vmem:[%s437 + $0x24] sm:$0xf]
      %v448 = vld [vmem:[%s437 + $0x28] sm:$0xf]
      %v449 = vld [vmem:[%s437 + $0x2c] sm:$0xf]
      %v450 = vld [vmem:[%s437 + $0x30] sm:$0xf]
      %v451 = vld [vmem:[%s437 + $0x34] sm:$0xf]
      %v452 = vld [vmem:[%s437 + $0x38] sm:$0xf]
      %v453 = vld [vmem:[%s437 + $0x3c] sm:$0xf]
      %v454 = vcombine.low %v394, %v408
      %v455 = vcombine.low %v422, %v436
      %v457 = vunpack.c.l.s4 1983009808
      %v458 = vunpack.c.0.s8 %v457
      %v459 = vlaneseq
      %v460 = vshrl.u32 %v459, 7
      %v461 = vsub.s32 %v458, %v460
      %v462 = vrot.slane %v454, %v461
      %v464 = vunpack.c.l.s4 1983009808
      %v465 = vunpack.c.0.s8 %v464
      %v466 = vlaneseq
      %v467 = vshrl.u32 %v466, 7
      %v468 = vsub.s32 %v465, %v467
      %v469 = vrot.slane %v455, %v468
      %v470 = vcombine.low %v462, %v469
      %v488 = vunpack.c.l.b16 %v438
      %v489 = vunpack.c.l.b16 %v439
      %v490 = vunpack.c.l.b16 %v440
      %v491 = vunpack.c.l.b16 %v441
      %v492 = vunpack.c.l.b16 %v442
      %v493 = vunpack.c.l.b16 %v443
      %v494 = vunpack.c.l.b16 %v444
      %v495 = vunpack.c.l.b16 %v445
      %v496 = vunpack.c.l.b16 %v446
      %v497 = vunpack.c.l.b16 %v447
      %v498 = vunpack.c.l.b16 %v448
      %v499 = vunpack.c.l.b16 %v449
      %v500 = vunpack.c.l.b16 %v450
      %v501 = vunpack.c.l.b16 %v451
      %v502 = vunpack.c.l.b16 %v452
      %v503 = vunpack.c.l.b16 %v453
      %v504 = vpack.c.b16 %v489, %v488
      %v505 = vpack.c.b16 %v491, %v490
      %v506 = vpack.c.b16 %v493, %v492
      %v507 = vpack.c.b16 %v495, %v494
      %v508 = vpack.c.b16 %v497, %v496
      %v509 = vpack.c.b16 %v499, %v498
      %v510 = vpack.c.b16 %v501, %v500
      %v511 = vpack.c.b16 %v503, %v502
      %520 = vmatprep.subr.bf16.mxu0 0
      %521 = vmatpush1.bf16.msra.mxu0 %v511
      %522 = vmatprep.subr.bf16.mxu0 0
      %523 = vmatpush1.bf16.msra.mxu0 %v510
      %524 = vmatprep.subr.bf16.mxu0 0
      %525 = vmatpush1.bf16.msra.mxu0 %v509
      %526 = vmatprep.subr.bf16.mxu0 0
      %527 = vmatpush1.bf16.msra.mxu0 %v508
      %528 = vmatprep.subr.bf16.mxu0 0
      %529 = vmatpush1.bf16.msra.mxu0 %v507
      %530 = vmatprep.subr.bf16.mxu0 0
      %531 = vmatpush1.bf16.msra.mxu0 %v506
      %532 = vmatprep.subr.bf16.mxu0 0
      %533 = vmatpush1.bf16.msra.mxu0 %v505
      %534 = vmatprep.subr.bf16.mxu0 0
      %535 = vmatpush1.bf16.msra.mxu0 %v504
      %536 = vmatprep.subr.bf16.mxu0 0
      %537 = vmatpush2.bf16.msra.mxu0 0
      %538 = vmatprep.subr.bf16.mxu0 0
      %539 = vmatpush2.bf16.msra.mxu0 0
      %540 = vmatprep.subr.bf16.mxu0 0
      %541 = vmatpush2.bf16.msra.mxu0 0
      %542 = vmatprep.subr.bf16.mxu0 0
      %543 = vmatpush2.bf16.msra.mxu0 0
      %544 = vmatprep.subr.bf16.mxu0 0
      %545 = vmatpush2.bf16.msra.mxu0 0
      %546 = vmatprep.subr.bf16.mxu0 0
      %547 = vmatpush2.bf16.msra.mxu0 0
      %548 = vmatprep.subr.bf16.mxu0 0
      %549 = vmatpush2.bf16.msra.mxu0 0
      %550 = vmatprep.subr.bf16.mxu0 0
      %551 = vmatpush2.bf16.msra.mxu0 0
      %552 = vmatprep.mubr.bf16.mxu0 0
      %553 = vmatmul.mubr.bf16.gmra.mxu0 %v470
      %v554 = vpop.f32.mrf.mxu0
      %v555 = vadd.f32 0.0, %v554
      %v556 = vpop.f32.mrf.mxu0
      %v557 = vpop.f32.mrf.mxu0
      %v558 = vadd.f32 0.0, %v557
      %v559 = vpop.f32.mrf.mxu0
      %560 = vdwg.mxu0
      %v565 = vcombine.low %v314, %v315
      %v566 = vcombine.low %v316, %v317
      %v568 = vunpack.c.l.s4 1983009808
      %v569 = vunpack.c.0.s8 %v568
      %v570 = vlaneseq
      %v571 = vshrl.u32 %v570, 7
      %v572 = vsub.s32 %v569, %v571
      %v573 = vrot.slane %v565, %v572
      %v575 = vunpack.c.l.s4 1983009808
      %v576 = vunpack.c.0.s8 %v575
      %v577 = vlaneseq
      %v578 = vshrl.u32 %v577, 7
      %v579 = vsub.s32 %v576, %v578
      %v580 = vrot.slane %v566, %v579
      %v581 = vcombine.low %v573, %v580
      %v599 = vunpack.c.l.b16 %v318
      %v600 = vunpack.c.l.b16 %v319
      %v601 = vunpack.c.l.b16 %v320
      %v602 = vunpack.c.l.b16 %v321
      %v603 = vunpack.c.l.b16 %v322
      %v604 = vunpack.c.l.b16 %v323
      %v605 = vunpack.c.l.b16 %v324
      %v606 = vunpack.c.l.b16 %v325
      %v607 = vunpack.c.l.b16 %v326
      %v608 = vunpack.c.l.b16 %v327
      %v609 = vunpack.c.l.b16 %v328
      %v610 = vunpack.c.l.b16 %v329
      %v611 = vunpack.c.l.b16 %v330
      %v612 = vunpack.c.l.b16 %v331
      %v613 = vunpack.c.l.b16 %v332
      %v614 = vunpack.c.l.b16 %v333
      %v615 = vpack.c.b16 %v600, %v599
      %v616 = vpack.c.b16 %v602, %v601
      %v617 = vpack.c.b16 %v604, %v603
      %v618 = vpack.c.b16 %v606, %v605
      %v619 = vpack.c.b16 %v608, %v607
      %v620 = vpack.c.b16 %v610, %v609
      %v621 = vpack.c.b16 %v612, %v611
      %v622 = vpack.c.b16 %v614, %v613
      %631 = vmatprep.subr.bf16.mxu0 0
      %632 = vmatpush1.bf16.msra.mxu0 %v622
      %633 = vmatprep.subr.bf16.mxu0 0
      %634 = vmatpush1.bf16.msra.mxu0 %v621
      %635 = vmatprep.subr.bf16.mxu0 0
      %636 = vmatpush1.bf16.msra.mxu0 %v620
      %637 = vmatprep.subr.bf16.mxu0 0
      %638 = vmatpush1.bf16.msra.mxu0 %v619
      %639 = vmatprep.subr.bf16.mxu0 0
      %640 = vmatpush1.bf16.msra.mxu0 %v618
      %641 = vmatprep.subr.bf16.mxu0 0
      %642 = vmatpush1.bf16.msra.mxu0 %v617
      %643 = vmatprep.subr.bf16.mxu0 0
      %644 = vmatpush1.bf16.msra.mxu0 %v616
      %645 = vmatprep.subr.bf16.mxu0 0
      %646 = vmatpush1.bf16.msra.mxu0 %v615
      %647 = vmatprep.subr.bf16.mxu0 0
      %648 = vmatpush2.bf16.msra.mxu0 0
      %649 = vmatprep.subr.bf16.mxu0 0
      %650 = vmatpush2.bf16.msra.mxu0 0
      %651 = vmatprep.subr.bf16.mxu0 0
      %652 = vmatpush2.bf16.msra.mxu0 0
      %653 = vmatprep.subr.bf16.mxu0 0
      %654 = vmatpush2.bf16.msra.mxu0 0
      %655 = vmatprep.subr.bf16.mxu0 0
      %656 = vmatpush2.bf16.msra.mxu0 0
      %657 = vmatprep.subr.bf16.mxu0 0
      %658 = vmatpush2.bf16.msra.mxu0 0
      %659 = vmatprep.subr.bf16.mxu0 0
      %660 = vmatpush2.bf16.msra.mxu0 0
      %661 = vmatprep.subr.bf16.mxu0 0
      %662 = vmatpush2.bf16.msra.mxu0 0
      %663 = vmatprep.mubr.bf16.mxu0 0
      %664 = vmatmul.mubr.bf16.gmra.mxu0 %v581
      %v665 = vpop.f32.mrf.mxu0
      %v666 = vadd.f32 %v555, %v665
      %v667 = vpop.f32.mrf.mxu0
      %v668 = vpop.f32.mrf.mxu0
      %v669 = vadd.f32 %v558, %v668
      %v670 = vpop.f32.mrf.mxu0
      %671 = vdwg.mxu0
      %v672 = vld [vmem:[#allocation2] sm:$0x6]
      %v673 = vld [vmem:[#allocation2 + $0x4] sm:$0x6]
      %v674 = vld [vmem:[#allocation2 + $0x8] sm:$0x6]
      %v675 = vld [vmem:[#allocation2 + $0xc] sm:$0x6]
      %v681 = vunpack.c.l.s4 1983009808
      %v682 = vunpack.c.0.s8 %v681
      %v683 = vlaneseq
      %v684 = vshrl.u32 %v683, 7
      %v685 = vsub.s32 %v682, %v684
      %v686 = vrot.slane %v672, %v685
      %v687 = vcombine.high %v686, %v686
      %v689 = vunpack.c.l.s4 1983009808
      %v690 = vunpack.c.0.s8 %v689
      %v691 = vlaneseq
      %v692 = vshrl.u32 %v691, 7
      %v693 = vsub.s32 %v690, %v692
      %v694 = vrot.slane %v673, %v693
      %v695 = vcombine.high %v694, %v694
      %v697 = vunpack.c.l.s4 1983009808
      %v698 = vunpack.c.0.s8 %v697
      %v699 = vlaneseq
      %v700 = vshrl.u32 %v699, 7
      %v701 = vsub.s32 %v698, %v700
      %v702 = vrot.slane %v674, %v701
      %v703 = vcombine.high %v702, %v702
      %v705 = vunpack.c.l.s4 1983009808
      %v706 = vunpack.c.0.s8 %v705
      %v707 = vlaneseq
      %v708 = vshrl.u32 %v707, 7
      %v709 = vsub.s32 %v706, %v708
      %v710 = vrot.slane %v675, %v709
      %v711 = vcombine.high %v710, %v710
      %vm712 = vmor %vm201, %vm216
      %vm713 = vcmask 1044484
      %vm714 = vmor %vm712, %vm713
      %vm715 = vcmask 1046534
      %vm716 = vmor %vm714, %vm715
      %v717 = vrot.slane %v686, 7
      %v718 = vrot.slane %v717, 2
      %v719 = vrot.slane %v687, 7
      %v720 = vsel %vm716, %v718, %v719
      %v721 = vrot.slane %v694, 7
      %v722 = vrot.slane %v721, 2
      %v723 = vrot.slane %v695, 7
      %v724 = vsel %vm716, %v722, %v723
      %v725 = vrot.slane %v702, 7
      %v726 = vrot.slane %v725, 2
      %v727 = vrot.slane %v703, 7
      %v728 = vsel %vm716, %v726, %v727
      %v729 = vrot.slane %v710, 7
      %v730 = vrot.slane %v729, 2
      %v731 = vrot.slane %v711, 7
      %v732 = vsel %vm716, %v730, %v731
      %s733 = scalar_lea.vmem %s1, 128
      %v734 = vld [vmem:[%s733] sm:$0xf]
      %v735 = vld [vmem:[%s733 + $0x4] sm:$0xf]
      %v736 = vld [vmem:[%s733 + $0x8] sm:$0xf]
      %v737 = vld [vmem:[%s733 + $0xc] sm:$0xf]
      %v738 = vld [vmem:[%s733 + $0x10] sm:$0xf]
      %v739 = vld [vmem:[%s733 + $0x14] sm:$0xf]
      %v740 = vld [vmem:[%s733 + $0x18] sm:$0xf]
      %v741 = vld [vmem:[%s733 + $0x1c] sm:$0xf]
      %v742 = vld [vmem:[%s733 + $0x20] sm:$0xf]
      %v743 = vld [vmem:[%s733 + $0x24] sm:$0xf]
      %v744 = vld [vmem:[%s733 + $0x28] sm:$0xf]
      %v745 = vld [vmem:[%s733 + $0x2c] sm:$0xf]
      %v746 = vld [vmem:[%s733 + $0x30] sm:$0xf]
      %v747 = vld [vmem:[%s733 + $0x34] sm:$0xf]
      %v748 = vld [vmem:[%s733 + $0x38] sm:$0xf]
      %v749 = vld [vmem:[%s733 + $0x3c] sm:$0xf]
      %v750 = vcombine.low %v720, %v724
      %v751 = vcombine.low %v728, %v732
      %v753 = vunpack.c.l.s4 1983009808
      %v754 = vunpack.c.0.s8 %v753
      %v755 = vlaneseq
      %v756 = vshrl.u32 %v755, 7
      %v757 = vsub.s32 %v754, %v756
      %v758 = vrot.slane %v750, %v757
      %v760 = vunpack.c.l.s4 1983009808
      %v761 = vunpack.c.0.s8 %v760
      %v762 = vlaneseq
      %v763 = vshrl.u32 %v762, 7
      %v764 = vsub.s32 %v761, %v763
      %v765 = vrot.slane %v751, %v764
      %v766 = vcombine.low %v758, %v765
      %v784 = vunpack.c.l.b16 %v734
      %v785 = vunpack.c.l.b16 %v735
      %v786 = vunpack.c.l.b16 %v736
      %v787 = vunpack.c.l.b16 %v737
      %v788 = vunpack.c.l.b16 %v738
      %v789 = vunpack.c.l.b16 %v739
      %v790 = vunpack.c.l.b16 %v740
      %v791 = vunpack.c.l.b16 %v741
      %v792 = vunpack.c.l.b16 %v742
      %v793 = vunpack.c.l.b16 %v743
      %v794 = vunpack.c.l.b16 %v744
      %v795 = vunpack.c.l.b16 %v745
      %v796 = vunpack.c.l.b16 %v746
      %v797 = vunpack.c.l.b16 %v747
      %v798 = vunpack.c.l.b16 %v748
      %v799 = vunpack.c.l.b16 %v749
      %v800 = vpack.c.b16 %v785, %v784
      %v801 = vpack.c.b16 %v787, %v786
      %v802 = vpack.c.b16 %v789, %v788
      %v803 = vpack.c.b16 %v791, %v790
      %v804 = vpack.c.b16 %v793, %v792
      %v805 = vpack.c.b16 %v795, %v794
      %v806 = vpack.c.b16 %v797, %v796
      %v807 = vpack.c.b16 %v799, %v798
      %816 = vmatprep.subr.bf16.mxu0 0
      %817 = vmatpush1.bf16.msra.mxu0 %v807
      %818 = vmatprep.subr.bf16.mxu0 0
      %819 = vmatpush1.bf16.msra.mxu0 %v806
      %820 = vmatprep.subr.bf16.mxu0 0
      %821 = vmatpush1.bf16.msra.mxu0 %v805
      %822 = vmatprep.subr.bf16.mxu0 0
      %823 = vmatpush1.bf16.msra.mxu0 %v804
      %824 = vmatprep.subr.bf16.mxu0 0
      %825 = vmatpush1.bf16.msra.mxu0 %v803
      %826 = vmatprep.subr.bf16.mxu0 0
      %827 = vmatpush1.bf16.msra.mxu0 %v802
      %828 = vmatprep.subr.bf16.mxu0 0
      %829 = vmatpush1.bf16.msra.mxu0 %v801
      %830 = vmatprep.subr.bf16.mxu0 0
      %831 = vmatpush1.bf16.msra.mxu0 %v800
      %832 = vmatprep.subr.bf16.mxu0 0
      %833 = vmatpush2.bf16.msra.mxu0 0
      %834 = vmatprep.subr.bf16.mxu0 0
      %835 = vmatpush2.bf16.msra.mxu0 0
      %836 = vmatprep.subr.bf16.mxu0 0
      %837 = vmatpush2.bf16.msra.mxu0 0
      %838 = vmatprep.subr.bf16.mxu0 0
      %839 = vmatpush2.bf16.msra.mxu0 0
      %840 = vmatprep.subr.bf16.mxu0 0
      %841 = vmatpush2.bf16.msra.mxu0 0
      %842 = vmatprep.subr.bf16.mxu0 0
      %843 = vmatpush2.bf16.msra.mxu0 0
      %844 = vmatprep.subr.bf16.mxu0 0
      %845 = vmatpush2.bf16.msra.mxu0 0
      %846 = vmatprep.subr.bf16.mxu0 0
      %847 = vmatpush2.bf16.msra.mxu0 0
      %848 = vmatprep.mubr.bf16.mxu0 0
      %849 = vmatmul.mubr.bf16.gmra.mxu0 %v766
      %v850 = vpop.f32.mrf.mxu0
      %v851 = vadd.f32 0.0, %v850
      %v852 = vpop.f32.mrf.mxu0
      %v853 = vpop.f32.mrf.mxu0
      %v854 = vadd.f32 0.0, %v853
      %v855 = vpop.f32.mrf.mxu0
      %856 = vdwg.mxu0
      %v857 = vadd.f32 %v666, %v851
      %v858 = vadd.f32 %v669, %v854
      %v859 = vld [vmem:[%s200] sm:$0x3]
      %v860 = vld [vmem:[%s200 + $0x4] sm:$0x3]
      %v861 = vld [vmem:[%s200 + $0x8] sm:$0x3]
      %v862 = vld [vmem:[%s200 + $0xc] sm:$0x3]
      %s863 = scalar_lea.vmem %s1, 192
      %v864 = vld [vmem:[%s863] sm:$0xf]
      %v865 = vld [vmem:[%s863 + $0x4] sm:$0xf]
      %v866 = vld [vmem:[%s863 + $0x8] sm:$0xf]
      %v867 = vld [vmem:[%s863 + $0xc] sm:$0xf]
      %v868 = vld [vmem:[%s863 + $0x10] sm:$0xf]
      %v869 = vld [vmem:[%s863 + $0x14] sm:$0xf]
      %v870 = vld [vmem:[%s863 + $0x18] sm:$0xf]
      %v871 = vld [vmem:[%s863 + $0x1c] sm:$0xf]
      %v872 = vld [vmem:[%s863 + $0x20] sm:$0xf]
      %v873 = vld [vmem:[%s863 + $0x24] sm:$0xf]
      %v874 = vld [vmem:[%s863 + $0x28] sm:$0xf]
      %v875 = vld [vmem:[%s863 + $0x2c] sm:$0xf]
      %v876 = vld [vmem:[%s863 + $0x30] sm:$0xf]
      %v877 = vld [vmem:[%s863 + $0x34] sm:$0xf]
      %v878 = vld [vmem:[%s863 + $0x38] sm:$0xf]
      %v879 = vld [vmem:[%s863 + $0x3c] sm:$0xf]
      %v884 = vcombine.low %v859, %v860
      %v885 = vcombine.low %v861, %v862
      %v887 = vunpack.c.l.s4 1983009808
      %v888 = vunpack.c.0.s8 %v887
      %v889 = vlaneseq
      %v890 = vshrl.u32 %v889, 7
      %v891 = vsub.s32 %v888, %v890
      %v892 = vrot.slane %v884, %v891
      %v894 = vunpack.c.l.s4 1983009808
      %v895 = vunpack.c.0.s8 %v894
      %v896 = vlaneseq
      %v897 = vshrl.u32 %v896, 7
      %v898 = vsub.s32 %v895, %v897
      %v899 = vrot.slane %v885, %v898
      %v900 = vcombine.low %v892, %v899
      %v918 = vunpack.c.l.b16 %v864
      %v919 = vunpack.c.l.b16 %v865
      %v920 = vunpack.c.l.b16 %v866
      %v921 = vunpack.c.l.b16 %v867
      %v922 = vunpack.c.l.b16 %v868
      %v923 = vunpack.c.l.b16 %v869
      %v924 = vunpack.c.l.b16 %v870
      %v925 = vunpack.c.l.b16 %v871
      %v926 = vunpack.c.l.b16 %v872
      %v927 = vunpack.c.l.b16 %v873
      %v928 = vunpack.c.l.b16 %v874
      %v929 = vunpack.c.l.b16 %v875
      %v930 = vunpack.c.l.b16 %v876
      %v931 = vunpack.c.l.b16 %v877
      %v932 = vunpack.c.l.b16 %v878
      %v933 = vunpack.c.l.b16 %v879
      %v934 = vpack.c.b16 %v919, %v918
      %v935 = vpack.c.b16 %v921, %v920
      %v936 = vpack.c.b16 %v923, %v922
      %v937 = vpack.c.b16 %v925, %v924
      %v938 = vpack.c.b16 %v927, %v926
      %v939 = vpack.c.b16 %v929, %v928
      %v940 = vpack.c.b16 %v931, %v930
      %v941 = vpack.c.b16 %v933, %v932
      %950 = vmatprep.subr.bf16.mxu0 0
      %951 = vmatpush1.bf16.msra.mxu0 %v941
      %952 = vmatprep.subr.bf16.mxu0 0
      %953 = vmatpush1.bf16.msra.mxu0 %v940
      %954 = vmatprep.subr.bf16.mxu0 0
      %955 = vmatpush1.bf16.msra.mxu0 %v939
      %956 = vmatprep.subr.bf16.mxu0 0
      %957 = vmatpush1.bf16.msra.mxu0 %v938
      %958 = vmatprep.subr.bf16.mxu0 0
      %959 = vmatpush1.bf16.msra.mxu0 %v937
      %960 = vmatprep.subr.bf16.mxu0 0
      %961 = vmatpush1.bf16.msra.mxu0 %v936
      %962 = vmatprep.subr.bf16.mxu0 0
      %963 = vmatpush1.bf16.msra.mxu0 %v935
      %964 = vmatprep.subr.bf16.mxu0 0
      %965 = vmatpush1.bf16.msra.mxu0 %v934
      %966 = vmatprep.subr.bf16.mxu0 0
      %967 = vmatpush2.bf16.msra.mxu0 0
      %968 = vmatprep.subr.bf16.mxu0 0
      %969 = vmatpush2.bf16.msra.mxu0 0
      %970 = vmatprep.subr.bf16.mxu0 0
      %971 = vmatpush2.bf16.msra.mxu0 0
      %972 = vmatprep.subr.bf16.mxu0 0
      %973 = vmatpush2.bf16.msra.mxu0 0
      %974 = vmatprep.subr.bf16.mxu0 0
      %975 = vmatpush2.bf16.msra.mxu0 0
      %976 = vmatprep.subr.bf16.mxu0 0
      %977 = vmatpush2.bf16.msra.mxu0 0
      %978 = vmatprep.subr.bf16.mxu0 0
      %979 = vmatpush2.bf16.msra.mxu0 0
      %980 = vmatprep.subr.bf16.mxu0 0
      %981 = vmatpush2.bf16.msra.mxu0 0
      %982 = vmatprep.mubr.bf16.mxu0 0
      %983 = vmatmul.mubr.bf16.gmra.mxu0 %v900
      %v984 = vpop.f32.mrf.mxu0
      %v985 = vadd.f32 0.0, %v984
      %v986 = vpop.f32.mrf.mxu0
      %v987 = vpop.f32.mrf.mxu0
      %v988 = vadd.f32 0.0, %v987
      %v989 = vpop.f32.mrf.mxu0
      %990 = vdwg.mxu0
      %v991 = vadd.f32 %v857, %v985
      %v992 = vadd.f32 %v858, %v988
      %v993 = vld [vmem:[%s200] sm:$0x7]
      %v994 = vld [vmem:[%s200 + $0x4] sm:$0x7]
      %v995 = vld [vmem:[%s200 + $0x8] sm:$0x7]
      %v996 = vld [vmem:[%s200 + $0xc] sm:$0x7]
      %v1002 = vunpack.c.l.s4 1983009808
      %v1003 = vunpack.c.0.s8 %v1002
      %v1004 = vlaneseq
      %v1005 = vshrl.u32 %v1004, 7
      %v1006 = vsub.s32 %v1003, %v1005
      %v1007 = vrot.slane %v993, %v1006
      %v1008 = vcombine.high %v1007, %v1007
      %v1010 = vunpack.c.l.s4 1983009808
      %v1011 = vunpack.c.0.s8 %v1010
      %v1012 = vlaneseq
      %v1013 = vshrl.u32 %v1012, 7
      %v1014 = vsub.s32 %v1011, %v1013
      %v1015 = vrot.slane %v994, %v1014
      %v1016 = vcombine.high %v1015, %v1015
      %v1018 = vunpack.c.l.s4 1983009808
      %v1019 = vunpack.c.0.s8 %v1018
      %v1020 = vlaneseq
      %v1021 = vshrl.u32 %v1020, 7
      %v1022 = vsub.s32 %v1019, %v1021
      %v1023 = vrot.slane %v995, %v1022
      %v1024 = vcombine.high %v1023, %v1023
      %v1026 = vunpack.c.l.s4 1983009808
      %v1027 = vunpack.c.0.s8 %v1026
      %v1028 = vlaneseq
      %v1029 = vshrl.u32 %v1028, 7
      %v1030 = vsub.s32 %v1027, %v1029
      %v1031 = vrot.slane %v996, %v1030
      %v1032 = vcombine.high %v1031, %v1031
      %v1034 = vshrl.u32 %v1007, 16
      %v1036 = vrot.slane %v1034, 6
      %v1037 = vshll.u32 %v1007, 16
      %v1039 = vrot.slane %v1037, 7
      %v1040 = vor.u32 %v1036, %v1039
      %v1041 = vrot.slane %v1040, 2
      %v1043 = vshll.u32 %v1008, 16
      %v1045 = vrot.slane %v1043, 7
      %v1046 = vsel %vm380, %v1041, %v1045
      %v1048 = vshrl.u32 %v1015, 16
      %v1050 = vrot.slane %v1048, 6
      %v1051 = vshll.u32 %v1015, 16
      %v1053 = vrot.slane %v1051, 7
      %v1054 = vor.u32 %v1050, %v1053
      %v1055 = vrot.slane %v1054, 2
      %v1057 = vshll.u32 %v1016, 16
      %v1059 = vrot.slane %v1057, 7
      %v1060 = vsel %vm380, %v1055, %v1059
      %v1062 = vshrl.u32 %v1023, 16
      %v1064 = vrot.slane %v1062, 6
      %v1065 = vshll.u32 %v1023, 16
      %v1067 = vrot.slane %v1065, 7
      %v1068 = vor.u32 %v1064, %v1067
      %v1069 = vrot.slane %v1068, 2
      %v1071 = vshll.u32 %v1024, 16
      %v1073 = vrot.slane %v1071, 7
      %v1074 = vsel %vm380, %v1069, %v1073
      %v1076 = vshrl.u32 %v1031, 16
      %v1078 = vrot.slane %v1076, 6
      %v1079 = vshll.u32 %v1031, 16
      %v1081 = vrot.slane %v1079, 7
      %v1082 = vor.u32 %v1078, %v1081
      %v1083 = vrot.slane %v1082, 2
      %v1085 = vshll.u32 %v1032, 16
      %v1087 = vrot.slane %v1085, 7
      %v1088 = vsel %vm380, %v1083, %v1087
      %s1089 = scalar_lea.vmem %s1, 256
      %v1090 = vld [vmem:[%s1089] sm:$0xf]
      %v1091 = vld [vmem:[%s1089 + $0x4] sm:$0xf]
      %v1092 = vld [vmem:[%s1089 + $0x8] sm:$0xf]
      %v1093 = vld [vmem:[%s1089 + $0xc] sm:$0xf]
      %v1094 = vld [vmem:[%s1089 + $0x10] sm:$0xf]
      %v1095 = vld [vmem:[%s1089 + $0x14] sm:$0xf]
      %v1096 = vld [vmem:[%s1089 + $0x18] sm:$0xf]
      %v1097 = vld [vmem:[%s1089 + $0x1c] sm:$0xf]
      %v1098 = vld [vmem:[%s1089 + $0x20] sm:$0xf]
      %v1099 = vld [vmem:[%s1089 + $0x24] sm:$0xf]
      %v1100 = vld [vmem:[%s1089 + $0x28] sm:$0xf]
      %v1101 = vld [vmem:[%s1089 + $0x2c] sm:$0xf]
      %v1102 = vld [vmem:[%s1089 + $0x30] sm:$0xf]
      %v1103 = vld [vmem:[%s1089 + $0x34] sm:$0xf]
      %v1104 = vld [vmem:[%s1089 + $0x38] sm:$0xf]
      %v1105 = vld [vmem:[%s1089 + $0x3c] sm:$0xf]
      %v1106 = vcombine.low %v1046, %v1060
      %v1107 = vcombine.low %v1074, %v1088
      %v1109 = vunpack.c.l.s4 1983009808
      %v1110 = vunpack.c.0.s8 %v1109
      %v1111 = vlaneseq
      %v1112 = vshrl.u32 %v1111, 7
      %v1113 = vsub.s32 %v1110, %v1112
      %v1114 = vrot.slane %v1106, %v1113
      %v1116 = vunpack.c.l.s4 1983009808
      %v1117 = vunpack.c.0.s8 %v1116
      %v1118 = vlaneseq
      %v1119 = vshrl.u32 %v1118, 7
      %v1120 = vsub.s32 %v1117, %v1119
      %v1121 = vrot.slane %v1107, %v1120
      %v1122 = vcombine.low %v1114, %v1121
      %v1140 = vunpack.c.l.b16 %v1090
      %v1141 = vunpack.c.l.b16 %v1091
      %v1142 = vunpack.c.l.b16 %v1092
      %v1143 = vunpack.c.l.b16 %v1093
      %v1144 = vunpack.c.l.b16 %v1094
      %v1145 = vunpack.c.l.b16 %v1095
      %v1146 = vunpack.c.l.b16 %v1096
      %v1147 = vunpack.c.l.b16 %v1097
      %v1148 = vunpack.c.l.b16 %v1098
      %v1149 = vunpack.c.l.b16 %v1099
      %v1150 = vunpack.c.l.b16 %v1100
      %v1151 = vunpack.c.l.b16 %v1101
      %v1152 = vunpack.c.l.b16 %v1102
      %v1153 = vunpack.c.l.b16 %v1103
      %v1154 = vunpack.c.l.b16 %v1104
      %v1155 = vunpack.c.l.b16 %v1105
      %v1156 = vpack.c.b16 %v1141, %v1140
      %v1157 = vpack.c.b16 %v1143, %v1142
      %v1158 = vpack.c.b16 %v1145, %v1144
      %v1159 = vpack.c.b16 %v1147, %v1146
      %v1160 = vpack.c.b16 %v1149, %v1148
      %v1161 = vpack.c.b16 %v1151, %v1150
      %v1162 = vpack.c.b16 %v1153, %v1152
      %v1163 = vpack.c.b16 %v1155, %v1154
      %1172 = vmatprep.subr.bf16.mxu0 0
      %1173 = vmatpush1.bf16.msra.mxu0 %v1163
      %1174 = vmatprep.subr.bf16.mxu0 0
      %1175 = vmatpush1.bf16.msra.mxu0 %v1162
      %1176 = vmatprep.subr.bf16.mxu0 0
      %1177 = vmatpush1.bf16.msra.mxu0 %v1161
      %1178 = vmatprep.subr.bf16.mxu0 0
      %1179 = vmatpush1.bf16.msra.mxu0 %v1160
      %1180 = vmatprep.subr.bf16.mxu0 0
      %1181 = vmatpush1.bf16.msra.mxu0 %v1159
      %1182 = vmatprep.subr.bf16.mxu0 0
      %1183 = vmatpush1.bf16.msra.mxu0 %v1158
      %1184 = vmatprep.subr.bf16.mxu0 0
      %1185 = vmatpush1.bf16.msra.mxu0 %v1157
      %1186 = vmatprep.subr.bf16.mxu0 0
      %1187 = vmatpush1.bf16.msra.mxu0 %v1156
      %1188 = vmatprep.subr.bf16.mxu0 0
      %1189 = vmatpush2.bf16.msra.mxu0 0
      %1190 = vmatprep.subr.bf16.mxu0 0
      %1191 = vmatpush2.bf16.msra.mxu0 0
      %1192 = vmatprep.subr.bf16.mxu0 0
      %1193 = vmatpush2.bf16.msra.mxu0 0
      %1194 = vmatprep.subr.bf16.mxu0 0
      %1195 = vmatpush2.bf16.msra.mxu0 0
      %1196 = vmatprep.subr.bf16.mxu0 0
      %1197 = vmatpush2.bf16.msra.mxu0 0
      %1198 = vmatprep.subr.bf16.mxu0 0
      %1199 = vmatpush2.bf16.msra.mxu0 0
      %1200 = vmatprep.subr.bf16.mxu0 0
      %1201 = vmatpush2.bf16.msra.mxu0 0
      %1202 = vmatprep.subr.bf16.mxu0 0
      %1203 = vmatpush2.bf16.msra.mxu0 0
      %1204 = vmatprep.mubr.bf16.mxu0 0
      %1205 = vmatmul.mubr.bf16.gmra.mxu0 %v1122
      %v1206 = vpop.f32.mrf.mxu0
      %v1207 = vadd.f32 0.0, %v1206
      %v1208 = vpop.f32.mrf.mxu0
      %v1209 = vpop.f32.mrf.mxu0
      %v1210 = vadd.f32 0.0, %v1209
      %v1211 = vpop.f32.mrf.mxu0
      %1212 = vdwg.mxu0
      %v1213 = vadd.f32 %v991, %v1207
      %v1214 = vadd.f32 %v992, %v1210
      %v1215 = vld [vmem:[%s200] sm:$0x6]
      %v1216 = vld [vmem:[%s200 + $0x4] sm:$0x6]
      %v1217 = vld [vmem:[%s200 + $0x8] sm:$0x6]
      %v1218 = vld [vmem:[%s200 + $0xc] sm:$0x6]
      %v1224 = vunpack.c.l.s4 1983009808
      %v1225 = vunpack.c.0.s8 %v1224
      %v1226 = vlaneseq
      %v1227 = vshrl.u32 %v1226, 7
      %v1228 = vsub.s32 %v1225, %v1227
      %v1229 = vrot.slane %v1215, %v1228
      %v1230 = vcombine.high %v1229, %v1229
      %v1232 = vunpack.c.l.s4 1983009808
      %v1233 = vunpack.c.0.s8 %v1232
      %v1234 = vlaneseq
      %v1235 = vshrl.u32 %v1234, 7
      %v1236 = vsub.s32 %v1233, %v1235
      %v1237 = vrot.slane %v1216, %v1236
      %v1238 = vcombine.high %v1237, %v1237
      %v1240 = vunpack.c.l.s4 1983009808
      %v1241 = vunpack.c.0.s8 %v1240
      %v1242 = vlaneseq
      %v1243 = vshrl.u32 %v1242, 7
      %v1244 = vsub.s32 %v1241, %v1243
      %v1245 = vrot.slane %v1217, %v1244
      %v1246 = vcombine.high %v1245, %v1245
      %v1248 = vunpack.c.l.s4 1983009808
      %v1249 = vunpack.c.0.s8 %v1248
      %v1250 = vlaneseq
      %v1251 = vshrl.u32 %v1250, 7
      %v1252 = vsub.s32 %v1249, %v1251
      %v1253 = vrot.slane %v1218, %v1252
      %v1254 = vcombine.high %v1253, %v1253
      %v1255 = vrot.slane %v1229, 7
      %v1256 = vrot.slane %v1255, 2
      %v1257 = vrot.slane %v1230, 7
      %v1258 = vsel %vm716, %v1256, %v1257
      %v1259 = vrot.slane %v1237, 7
      %v1260 = vrot.slane %v1259, 2
      %v1261 = vrot.slane %v1238, 7
      %v1262 = vsel %vm716, %v1260, %v1261
      %v1263 = vrot.slane %v1245, 7
      %v1264 = vrot.slane %v1263, 2
      %v1265 = vrot.slane %v1246, 7
      %v1266 = vsel %vm716, %v1264, %v1265
      %v1267 = vrot.slane %v1253, 7
      %v1268 = vrot.slane %v1267, 2
      %v1269 = vrot.slane %v1254, 7
      %v1270 = vsel %vm716, %v1268, %v1269
      %s1271 = scalar_lea.vmem %s1, 320
      %v1272 = vld [vmem:[%s1271] sm:$0xf]
      %v1273 = vld [vmem:[%s1271 + $0x4] sm:$0xf]
      %v1274 = vld [vmem:[%s1271 + $0x8] sm:$0xf]
      %v1275 = vld [vmem:[%s1271 + $0xc] sm:$0xf]
      %v1276 = vld [vmem:[%s1271 + $0x10] sm:$0xf]
      %v1277 = vld [vmem:[%s1271 + $0x14] sm:$0xf]
      %v1278 = vld [vmem:[%s1271 + $0x18] sm:$0xf]
      %v1279 = vld [vmem:[%s1271 + $0x1c] sm:$0xf]
      %v1280 = vld [vmem:[%s1271 + $0x20] sm:$0xf]
      %v1281 = vld [vmem:[%s1271 + $0x24] sm:$0xf]
      %v1282 = vld [vmem:[%s1271 + $0x28] sm:$0xf]
      %v1283 = vld [vmem:[%s1271 + $0x2c] sm:$0xf]
      %v1284 = vld [vmem:[%s1271 + $0x30] sm:$0xf]
      %v1285 = vld [vmem:[%s1271 + $0x34] sm:$0xf]
      %v1286 = vld [vmem:[%s1271 + $0x38] sm:$0xf]
      %v1287 = vld [vmem:[%s1271 + $0x3c] sm:$0xf]
      %v1288 = vcombine.low %v1258, %v1262
      %v1289 = vcombine.low %v1266, %v1270
      %v1291 = vunpack.c.l.s4 1983009808
      %v1292 = vunpack.c.0.s8 %v1291
      %v1293 = vlaneseq
      %v1294 = vshrl.u32 %v1293, 7
      %v1295 = vsub.s32 %v1292, %v1294
      %v1296 = vrot.slane %v1288, %v1295
      %v1298 = vunpack.c.l.s4 1983009808
      %v1299 = vunpack.c.0.s8 %v1298
      %v1300 = vlaneseq
      %v1301 = vshrl.u32 %v1300, 7
      %v1302 = vsub.s32 %v1299, %v1301
      %v1303 = vrot.slane %v1289, %v1302
      %v1304 = vcombine.low %v1296, %v1303
      %v1322 = vunpack.c.l.b16 %v1272
      %v1323 = vunpack.c.l.b16 %v1273
      %v1324 = vunpack.c.l.b16 %v1274
      %v1325 = vunpack.c.l.b16 %v1275
      %v1326 = vunpack.c.l.b16 %v1276
      %v1327 = vunpack.c.l.b16 %v1277
      %v1328 = vunpack.c.l.b16 %v1278
      %v1329 = vunpack.c.l.b16 %v1279
      %v1330 = vunpack.c.l.b16 %v1280
      %v1331 = vunpack.c.l.b16 %v1281
      %v1332 = vunpack.c.l.b16 %v1282
      %v1333 = vunpack.c.l.b16 %v1283
      %v1334 = vunpack.c.l.b16 %v1284
      %v1335 = vunpack.c.l.b16 %v1285
      %v1336 = vunpack.c.l.b16 %v1286
      %v1337 = vunpack.c.l.b16 %v1287
      %v1338 = vpack.c.b16 %v1323, %v1322
      %v1339 = vpack.c.b16 %v1325, %v1324
      %v1340 = vpack.c.b16 %v1327, %v1326
      %v1341 = vpack.c.b16 %v1329, %v1328
      %v1342 = vpack.c.b16 %v1331, %v1330
      %v1343 = vpack.c.b16 %v1333, %v1332
      %v1344 = vpack.c.b16 %v1335, %v1334
      %v1345 = vpack.c.b16 %v1337, %v1336
      %1354 = vmatprep.subr.bf16.mxu0 0
      %1355 = vmatpush1.bf16.msra.mxu0 %v1345
      %1356 = vmatprep.subr.bf16.mxu0 0
      %1357 = vmatpush1.bf16.msra.mxu0 %v1344
      %1358 = vmatprep.subr.bf16.mxu0 0
      %1359 = vmatpush1.bf16.msra.mxu0 %v1343
      %1360 = vmatprep.subr.bf16.mxu0 0
      %1361 = vmatpush1.bf16.msra.mxu0 %v1342
      %1362 = vmatprep.subr.bf16.mxu0 0
      %1363 = vmatpush1.bf16.msra.mxu0 %v1341
      %1364 = vmatprep.subr.bf16.mxu0 0
      %1365 = vmatpush1.bf16.msra.mxu0 %v1340
      %1366 = vmatprep.subr.bf16.mxu0 0
      %1367 = vmatpush1.bf16.msra.mxu0 %v1339
      %1368 = vmatprep.subr.bf16.mxu0 0
      %1369 = vmatpush1.bf16.msra.mxu0 %v1338
      %1370 = vmatprep.subr.bf16.mxu0 0
      %1371 = vmatpush2.bf16.msra.mxu0 0
      %1372 = vmatprep.subr.bf16.mxu0 0
      %1373 = vmatpush2.bf16.msra.mxu0 0
      %1374 = vmatprep.subr.bf16.mxu0 0
      %1375 = vmatpush2.bf16.msra.mxu0 0
      %1376 = vmatprep.subr.bf16.mxu0 0
      %1377 = vmatpush2.bf16.msra.mxu0 0
      %1378 = vmatprep.subr.bf16.mxu0 0
      %1379 = vmatpush2.bf16.msra.mxu0 0
      %1380 = vmatprep.subr.bf16.mxu0 0
      %1381 = vmatpush2.bf16.msra.mxu0 0
      %1382 = vmatprep.subr.bf16.mxu0 0
      %1383 = vmatpush2.bf16.msra.mxu0 0
      %1384 = vmatprep.subr.bf16.mxu0 0
      %1385 = vmatpush2.bf16.msra.mxu0 0
      %1386 = vmatprep.mubr.bf16.mxu0 0
      %1387 = vmatmul.mubr.bf16.gmra.mxu0 %v1304
      %v1388 = vpop.f32.mrf.mxu0
      %v1389 = vadd.f32 0.0, %v1388
      %v1390 = vpop.f32.mrf.mxu0
      %v1391 = vpop.f32.mrf.mxu0
      %v1392 = vadd.f32 0.0, %v1391
      %v1393 = vpop.f32.mrf.mxu0
      %1394 = vdwg.mxu0
      %v1395 = vadd.f32 %v1213, %v1389
      %v1396 = vadd.f32 %v1214, %v1392
      %s1397 = scalar_lea.vmem [#allocation2], 8
      %v1398 = vld [vmem:[%s1397] sm:$0x3]
      %v1399 = vld [vmem:[%s1397 + $0x4] sm:$0x3]
      %v1400 = vld [vmem:[%s1397 + $0x8] sm:$0x3]
      %v1401 = vld [vmem:[%s1397 + $0xc] sm:$0x3]
      %s1402 = scalar_lea.vmem %s1, 384
      %v1403 = vld [vmem:[%s1402] sm:$0xf]
      %v1404 = vld [vmem:[%s1402 + $0x4] sm:$0xf]
      %v1405 = vld [vmem:[%s1402 + $0x8] sm:$0xf]
      %v1406 = vld [vmem:[%s1402 + $0xc] sm:$0xf]
      %v1407 = vld [vmem:[%s1402 + $0x10] sm:$0xf]
      %v1408 = vld [vmem:[%s1402 + $0x14] sm:$0xf]
      %v1409 = vld [vmem:[%s1402 + $0x18] sm:$0xf]
      %v1410 = vld [vmem:[%s1402 + $0x1c] sm:$0xf]
      %v1411 = vld [vmem:[%s1402 + $0x20] sm:$0xf]
      %v1412 = vld [vmem:[%s1402 + $0x24] sm:$0xf]
      %v1413 = vld [vmem:[%s1402 + $0x28] sm:$0xf]
      %v1414 = vld [vmem:[%s1402 + $0x2c] sm:$0xf]
      %v1415 = vld [vmem:[%s1402 + $0x30] sm:$0xf]
      %v1416 = vld [vmem:[%s1402 + $0x34] sm:$0xf]
      %v1417 = vld [vmem:[%s1402 + $0x38] sm:$0xf]
      %v1418 = vld [vmem:[%s1402 + $0x3c] sm:$0xf]
      %v1423 = vcombine.low %v1398, %v1399
      %v1424 = vcombine.low %v1400, %v1401
      %v1426 = vunpack.c.l.s4 1983009808
      %v1427 = vunpack.c.0.s8 %v1426
      %v1428 = vlaneseq
      %v1429 = vshrl.u32 %v1428, 7
      %v1430 = vsub.s32 %v1427, %v1429
      %v1431 = vrot.slane %v1423, %v1430
      %v1433 = vunpack.c.l.s4 1983009808
      %v1434 = vunpack.c.0.s8 %v1433
      %v1435 = vlaneseq
      %v1436 = vshrl.u32 %v1435, 7
      %v1437 = vsub.s32 %v1434, %v1436
      %v1438 = vrot.slane %v1424, %v1437
      %v1439 = vcombine.low %v1431, %v1438
      %v1457 = vunpack.c.l.b16 %v1403
      %v1458 = vunpack.c.l.b16 %v1404
      %v1459 = vunpack.c.l.b16 %v1405
      %v1460 = vunpack.c.l.b16 %v1406
      %v1461 = vunpack.c.l.b16 %v1407
      %v1462 = vunpack.c.l.b16 %v1408
      %v1463 = vunpack.c.l.b16 %v1409
      %v1464 = vunpack.c.l.b16 %v1410
      %v1465 = vunpack.c.l.b16 %v1411
      %v1466 = vunpack.c.l.b16 %v1412
      %v1467 = vunpack.c.l.b16 %v1413
      %v1468 = vunpack.c.l.b16 %v1414
      %v1469 = vunpack.c.l.b16 %v1415
      %v1470 = vunpack.c.l.b16 %v1416
      %v1471 = vunpack.c.l.b16 %v1417
      %v1472 = vunpack.c.l.b16 %v1418
      %v1473 = vpack.c.b16 %v1458, %v1457
      %v1474 = vpack.c.b16 %v1460, %v1459
      %v1475 = vpack.c.b16 %v1462, %v1461
      %v1476 = vpack.c.b16 %v1464, %v1463
      %v1477 = vpack.c.b16 %v1466, %v1465
      %v1478 = vpack.c.b16 %v1468, %v1467
      %v1479 = vpack.c.b16 %v1470, %v1469
      %v1480 = vpack.c.b16 %v1472, %v1471
      %1489 = vmatprep.subr.bf16.mxu0 0
      %1490 = vmatpush1.bf16.msra.mxu0 %v1480
      %1491 = vmatprep.subr.bf16.mxu0 0
      %1492 = vmatpush1.bf16.msra.mxu0 %v1479
      %1493 = vmatprep.subr.bf16.mxu0 0
      %1494 = vmatpush1.bf16.msra.mxu0 %v1478
      %1495 = vmatprep.subr.bf16.mxu0 0
      %1496 = vmatpush1.bf16.msra.mxu0 %v1477
      %1497 = vmatprep.subr.bf16.mxu0 0
      %1498 = vmatpush1.bf16.msra.mxu0 %v1476
      %1499 = vmatprep.subr.bf16.mxu0 0
      %1500 = vmatpush1.bf16.msra.mxu0 %v1475
      %1501 = vmatprep.subr.bf16.mxu0 0
      %1502 = vmatpush1.bf16.msra.mxu0 %v1474
      %1503 = vmatprep.subr.bf16.mxu0 0
      %1504 = vmatpush1.bf16.msra.mxu0 %v1473
      %1505 = vmatprep.subr.bf16.mxu0 0
      %1506 = vmatpush2.bf16.msra.mxu0 0
      %1507 = vmatprep.subr.bf16.mxu0 0
      %1508 = vmatpush2.bf16.msra.mxu0 0
      %1509 = vmatprep.subr.bf16.mxu0 0
      %1510 = vmatpush2.bf16.msra.mxu0 0
      %1511 = vmatprep.subr.bf16.mxu0 0
      %1512 = vmatpush2.bf16.msra.mxu0 0
      %1513 = vmatprep.subr.bf16.mxu0 0
      %1514 = vmatpush2.bf16.msra.mxu0 0
      %1515 = vmatprep.subr.bf16.mxu0 0
      %1516 = vmatpush2.bf16.msra.mxu0 0
      %1517 = vmatprep.subr.bf16.mxu0 0
      %1518 = vmatpush2.bf16.msra.mxu0 0
      %1519 = vmatprep.subr.bf16.mxu0 0
      %1520 = vmatpush2.bf16.msra.mxu0 0
      %1521 = vmatprep.mubr.bf16.mxu0 0
      %1522 = vmatmul.mubr.bf16.gmra.mxu0 %v1439
      %v1523 = vpop.f32.mrf.mxu0
      %v1524 = vadd.f32 0.0, %v1523
      %v1525 = vpop.f32.mrf.mxu0
      %v1526 = vpop.f32.mrf.mxu0
      %v1527 = vadd.f32 0.0, %v1526
      %v1528 = vpop.f32.mrf.mxu0
      %1529 = vdwg.mxu0
      %v1530 = vadd.f32 %v1395, %v1524
      %v1531 = vadd.f32 %v1396, %v1527
      %v1532 = vld [vmem:[%s1397] sm:$0x7]
      %v1533 = vld [vmem:[%s1397 + $0x4] sm:$0x7]
      %v1534 = vld [vmem:[%s1397 + $0x8] sm:$0x7]
      %v1535 = vld [vmem:[%s1397 + $0xc] sm:$0x7]
      %v1541 = vunpack.c.l.s4 1983009808
      %v1542 = vunpack.c.0.s8 %v1541
      %v1543 = vlaneseq
      %v1544 = vshrl.u32 %v1543, 7
      %v1545 = vsub.s32 %v1542, %v1544
      %v1546 = vrot.slane %v1532, %v1545
      %v1547 = vcombine.high %v1546, %v1546
      %v1549 = vunpack.c.l.s4 1983009808
      %v1550 = vunpack.c.0.s8 %v1549
      %v1551 = vlaneseq
      %v1552 = vshrl.u32 %v1551, 7
      %v1553 = vsub.s32 %v1550, %v1552
      %v1554 = vrot.slane %v1533, %v1553
      %v1555 = vcombine.high %v1554, %v1554
      %v1557 = vunpack.c.l.s4 1983009808
      %v1558 = vunpack.c.0.s8 %v1557
      %v1559 = vlaneseq
      %v1560 = vshrl.u32 %v1559, 7
      %v1561 = vsub.s32 %v1558, %v1560
      %v1562 = vrot.slane %v1534, %v1561
      %v1563 = vcombine.high %v1562, %v1562
      %v1565 = vunpack.c.l.s4 1983009808
      %v1566 = vunpack.c.0.s8 %v1565
      %v1567 = vlaneseq
      %v1568 = vshrl.u32 %v1567, 7
      %v1569 = vsub.s32 %v1566, %v1568
      %v1570 = vrot.slane %v1535, %v1569
      %v1571 = vcombine.high %v1570, %v1570
      %v1573 = vshrl.u32 %v1546, 16
      %v1575 = vrot.slane %v1573, 6
      %v1576 = vshll.u32 %v1546, 16
      %v1578 = vrot.slane %v1576, 7
      %v1579 = vor.u32 %v1575, %v1578
      %v1580 = vrot.slane %v1579, 2
      %v1582 = vshll.u32 %v1547, 16
      %v1584 = vrot.slane %v1582, 7
      %v1585 = vsel %vm380, %v1580, %v1584
      %v1587 = vshrl.u32 %v1554, 16
      %v1589 = vrot.slane %v1587, 6
      %v1590 = vshll.u32 %v1554, 16
      %v1592 = vrot.slane %v1590, 7
      %v1593 = vor.u32 %v1589, %v1592
      %v1594 = vrot.slane %v1593, 2
      %v1596 = vshll.u32 %v1555, 16
      %v1598 = vrot.slane %v1596, 7
      %v1599 = vsel %vm380, %v1594, %v1598
      %v1601 = vshrl.u32 %v1562, 16
      %v1603 = vrot.slane %v1601, 6
      %v1604 = vshll.u32 %v1562, 16
      %v1606 = vrot.slane %v1604, 7
      %v1607 = vor.u32 %v1603, %v1606
      %v1608 = vrot.slane %v1607, 2
      %v1610 = vshll.u32 %v1563, 16
      %v1612 = vrot.slane %v1610, 7
      %v1613 = vsel %vm380, %v1608, %v1612
      %v1615 = vshrl.u32 %v1570, 16
      %v1617 = vrot.slane %v1615, 6
      %v1618 = vshll.u32 %v1570, 16
      %v1620 = vrot.slane %v1618, 7
      %v1621 = vor.u32 %v1617, %v1620
      %v1622 = vrot.slane %v1621, 2
      %v1624 = vshll.u32 %v1571, 16
      %v1626 = vrot.slane %v1624, 7
      %v1627 = vsel %vm380, %v1622, %v1626
      %s1628 = scalar_lea.vmem %s1, 448
      %v1629 = vld [vmem:[%s1628] sm:$0xf]
      %v1630 = vld [vmem:[%s1628 + $0x4] sm:$0xf]
      %v1631 = vld [vmem:[%s1628 + $0x8] sm:$0xf]
      %v1632 = vld [vmem:[%s1628 + $0xc] sm:$0xf]
      %v1633 = vld [vmem:[%s1628 + $0x10] sm:$0xf]
      %v1634 = vld [vmem:[%s1628 + $0x14] sm:$0xf]
      %v1635 = vld [vmem:[%s1628 + $0x18] sm:$0xf]
      %v1636 = vld [vmem:[%s1628 + $0x1c] sm:$0xf]
      %v1637 = vld [vmem:[%s1628 + $0x20] sm:$0xf]
      %v1638 = vld [vmem:[%s1628 + $0x24] sm:$0xf]
      %v1639 = vld [vmem:[%s1628 + $0x28] sm:$0xf]
      %v1640 = vld [vmem:[%s1628 + $0x2c] sm:$0xf]
      %v1641 = vld [vmem:[%s1628 + $0x30] sm:$0xf]
      %v1642 = vld [vmem:[%s1628 + $0x34] sm:$0xf]
      %v1643 = vld [vmem:[%s1628 + $0x38] sm:$0xf]
      %v1644 = vld [vmem:[%s1628 + $0x3c] sm:$0xf]
      %v1645 = vcombine.low %v1585, %v1599
      %v1646 = vcombine.low %v1613, %v1627
      %v1648 = vunpack.c.l.s4 1983009808
      %v1649 = vunpack.c.0.s8 %v1648
      %v1650 = vlaneseq
      %v1651 = vshrl.u32 %v1650, 7
      %v1652 = vsub.s32 %v1649, %v1651
      %v1653 = vrot.slane %v1645, %v1652
      %v1655 = vunpack.c.l.s4 1983009808
      %v1656 = vunpack.c.0.s8 %v1655
      %v1657 = vlaneseq
      %v1658 = vshrl.u32 %v1657, 7
      %v1659 = vsub.s32 %v1656, %v1658
      %v1660 = vrot.slane %v1646, %v1659
      %v1661 = vcombine.low %v1653, %v1660
      %v1679 = vunpack.c.l.b16 %v1629
      %v1680 = vunpack.c.l.b16 %v1630
      %v1681 = vunpack.c.l.b16 %v1631
      %v1682 = vunpack.c.l.b16 %v1632
      %v1683 = vunpack.c.l.b16 %v1633
      %v1684 = vunpack.c.l.b16 %v1634
      %v1685 = vunpack.c.l.b16 %v1635
      %v1686 = vunpack.c.l.b16 %v1636
      %v1687 = vunpack.c.l.b16 %v1637
      %v1688 = vunpack.c.l.b16 %v1638
      %v1689 = vunpack.c.l.b16 %v1639
      %v1690 = vunpack.c.l.b16 %v1640
      %v1691 = vunpack.c.l.b16 %v1641
      %v1692 = vunpack.c.l.b16 %v1642
      %v1693 = vunpack.c.l.b16 %v1643
      %v1694 = vunpack.c.l.b16 %v1644
      %v1695 = vpack.c.b16 %v1680, %v1679
      %v1696 = vpack.c.b16 %v1682, %v1681
      %v1697 = vpack.c.b16 %v1684, %v1683
      %v1698 = vpack.c.b16 %v1686, %v1685
      %v1699 = vpack.c.b16 %v1688, %v1687
      %v1700 = vpack.c.b16 %v1690, %v1689
      %v1701 = vpack.c.b16 %v1692, %v1691
      %v1702 = vpack.c.b16 %v1694, %v1693
      %1711 = vmatprep.subr.bf16.mxu0 0
      %1712 = vmatpush1.bf16.msra.mxu0 %v1702
      %1713 = vmatprep.subr.bf16.mxu0 0
      %1714 = vmatpush1.bf16.msra.mxu0 %v1701
      %1715 = vmatprep.subr.bf16.mxu0 0
      %1716 = vmatpush1.bf16.msra.mxu0 %v1700
      %1717 = vmatprep.subr.bf16.mxu0 0
      %1718 = vmatpush1.bf16.msra.mxu0 %v1699
      %1719 = vmatprep.subr.bf16.mxu0 0
      %1720 = vmatpush1.bf16.msra.mxu0 %v1698
      %1721 = vmatprep.subr.bf16.mxu0 0
      %1722 = vmatpush1.bf16.msra.mxu0 %v1697
      %1723 = vmatprep.subr.bf16.mxu0 0
      %1724 = vmatpush1.bf16.msra.mxu0 %v1696
      %1725 = vmatprep.subr.bf16.mxu0 0
      %1726 = vmatpush1.bf16.msra.mxu0 %v1695
      %1727 = vmatprep.subr.bf16.mxu0 0
      %1728 = vmatpush2.bf16.msra.mxu0 0
      %1729 = vmatprep.subr.bf16.mxu0 0
      %1730 = vmatpush2.bf16.msra.mxu0 0
      %1731 = vmatprep.subr.bf16.mxu0 0
      %1732 = vmatpush2.bf16.msra.mxu0 0
      %1733 = vmatprep.subr.bf16.mxu0 0
      %1734 = vmatpush2.bf16.msra.mxu0 0
      %1735 = vmatprep.subr.bf16.mxu0 0
      %1736 = vmatpush2.bf16.msra.mxu0 0
      %1737 = vmatprep.subr.bf16.mxu0 0
      %1738 = vmatpush2.bf16.msra.mxu0 0
      %1739 = vmatprep.subr.bf16.mxu0 0
      %1740 = vmatpush2.bf16.msra.mxu0 0
      %1741 = vmatprep.subr.bf16.mxu0 0
      %1742 = vmatpush2.bf16.msra.mxu0 0
      %1743 = vmatprep.mubr.bf16.mxu0 0
      %1744 = vmatmul.mubr.bf16.gmra.mxu0 %v1661
      %v1745 = vpop.f32.mrf.mxu0
      %v1746 = vadd.f32 0.0, %v1745
      %v1747 = vpop.f32.mrf.mxu0
      %v1748 = vpop.f32.mrf.mxu0
      %v1749 = vadd.f32 0.0, %v1748
      %v1750 = vpop.f32.mrf.mxu0
      %1751 = vdwg.mxu0
      %v1752 = vadd.f32 %v1530, %v1746
      %v1753 = vadd.f32 %v1531, %v1749
      %v1754 = vld [vmem:[%s1397] sm:$0x6]
      %v1755 = vld [vmem:[%s1397 + $0x4] sm:$0x6]
      %v1756 = vld [vmem:[%s1397 + $0x8] sm:$0x6]
      %v1757 = vld [vmem:[%s1397 + $0xc] sm:$0x6]
      %v1763 = vunpack.c.l.s4 1983009808
      %v1764 = vunpack.c.0.s8 %v1763
      %v1765 = vlaneseq
      %v1766 = vshrl.u32 %v1765, 7
      %v1767 = vsub.s32 %v1764, %v1766
      %v1768 = vrot.slane %v1754, %v1767
      %v1769 = vcombine.high %v1768, %v1768
      %v1771 = vunpack.c.l.s4 1983009808
      %v1772 = vunpack.c.0.s8 %v1771
      %v1773 = vlaneseq
      %v1774 = vshrl.u32 %v1773, 7
      %v1775 = vsub.s32 %v1772, %v1774
      %v1776 = vrot.slane %v1755, %v1775
      %v1777 = vcombine.high %v1776, %v1776
      %v1779 = vunpack.c.l.s4 1983009808
      %v1780 = vunpack.c.0.s8 %v1779
      %v1781 = vlaneseq
      %v1782 = vshrl.u32 %v1781, 7
      %v1783 = vsub.s32 %v1780, %v1782
      %v1784 = vrot.slane %v1756, %v1783
      %v1785 = vcombine.high %v1784, %v1784
      %v1787 = vunpack.c.l.s4 1983009808
      %v1788 = vunpack.c.0.s8 %v1787
      %v1789 = vlaneseq
      %v1790 = vshrl.u32 %v1789, 7
      %v1791 = vsub.s32 %v1788, %v1790
      %v1792 = vrot.slane %v1757, %v1791
      %v1793 = vcombine.high %v1792, %v1792
      %v1794 = vrot.slane %v1768, 7
      %v1795 = vrot.slane %v1794, 2
      %v1796 = vrot.slane %v1769, 7
      %v1797 = vsel %vm716, %v1795, %v1796
      %v1798 = vrot.slane %v1776, 7
      %v1799 = vrot.slane %v1798, 2
      %v1800 = vrot.slane %v1777, 7
      %v1801 = vsel %vm716, %v1799, %v1800
      %v1802 = vrot.slane %v1784, 7
      %v1803 = vrot.slane %v1802, 2
      %v1804 = vrot.slane %v1785, 7
      %v1805 = vsel %vm716, %v1803, %v1804
      %v1806 = vrot.slane %v1792, 7
      %v1807 = vrot.slane %v1806, 2
      %v1808 = vrot.slane %v1793, 7
      %v1809 = vsel %vm716, %v1807, %v1808
      %s1810 = scalar_lea.vmem %s1, 512
      %v1811 = vld [vmem:[%s1810] sm:$0xf]
      %v1812 = vld [vmem:[%s1810 + $0x4] sm:$0xf]
      %v1813 = vld [vmem:[%s1810 + $0x8] sm:$0xf]
      %v1814 = vld [vmem:[%s1810 + $0xc] sm:$0xf]
      %v1815 = vld [vmem:[%s1810 + $0x10] sm:$0xf]
      %v1816 = vld [vmem:[%s1810 + $0x14] sm:$0xf]
      %v1817 = vld [vmem:[%s1810 + $0x18] sm:$0xf]
      %v1818 = vld [vmem:[%s1810 + $0x1c] sm:$0xf]
      %v1819 = vld [vmem:[%s1810 + $0x20] sm:$0xf]
      %v1820 = vld [vmem:[%s1810 + $0x24] sm:$0xf]
      %v1821 = vld [vmem:[%s1810 + $0x28] sm:$0xf]
      %v1822 = vld [vmem:[%s1810 + $0x2c] sm:$0xf]
      %v1823 = vld [vmem:[%s1810 + $0x30] sm:$0xf]
      %v1824 = vld [vmem:[%s1810 + $0x34] sm:$0xf]
      %v1825 = vld [vmem:[%s1810 + $0x38] sm:$0xf]
      %v1826 = vld [vmem:[%s1810 + $0x3c] sm:$0xf]
      %v1827 = vcombine.low %v1797, %v1801
      %v1828 = vcombine.low %v1805, %v1809
      %v1830 = vunpack.c.l.s4 1983009808
      %v1831 = vunpack.c.0.s8 %v1830
      %v1832 = vlaneseq
      %v1833 = vshrl.u32 %v1832, 7
      %v1834 = vsub.s32 %v1831, %v1833
      %v1835 = vrot.slane %v1827, %v1834
      %v1837 = vunpack.c.l.s4 1983009808
      %v1838 = vunpack.c.0.s8 %v1837
      %v1839 = vlaneseq
      %v1840 = vshrl.u32 %v1839, 7
      %v1841 = vsub.s32 %v1838, %v1840
      %v1842 = vrot.slane %v1828, %v1841
      %v1843 = vcombine.low %v1835, %v1842
      %v1861 = vunpack.c.l.b16 %v1811
      %v1862 = vunpack.c.l.b16 %v1812
      %v1863 = vunpack.c.l.b16 %v1813
      %v1864 = vunpack.c.l.b16 %v1814
      %v1865 = vunpack.c.l.b16 %v1815
      %v1866 = vunpack.c.l.b16 %v1816
      %v1867 = vunpack.c.l.b16 %v1817
      %v1868 = vunpack.c.l.b16 %v1818
      %v1869 = vunpack.c.l.b16 %v1819
      %v1870 = vunpack.c.l.b16 %v1820
      %v1871 = vunpack.c.l.b16 %v1821
      %v1872 = vunpack.c.l.b16 %v1822
      %v1873 = vunpack.c.l.b16 %v1823
      %v1874 = vunpack.c.l.b16 %v1824
      %v1875 = vunpack.c.l.b16 %v1825
      %v1876 = vunpack.c.l.b16 %v1826
      %v1877 = vpack.c.b16 %v1862, %v1861
      %v1878 = vpack.c.b16 %v1864, %v1863
      %v1879 = vpack.c.b16 %v1866, %v1865
      %v1880 = vpack.c.b16 %v1868, %v1867
      %v1881 = vpack.c.b16 %v1870, %v1869
      %v1882 = vpack.c.b16 %v1872, %v1871
      %v1883 = vpack.c.b16 %v1874, %v1873
      %v1884 = vpack.c.b16 %v1876, %v1875
      %1893 = vmatprep.subr.bf16.mxu0 0
      %1894 = vmatpush1.bf16.msra.mxu0 %v1884
      %1895 = vmatprep.subr.bf16.mxu0 0
      %1896 = vmatpush1.bf16.msra.mxu0 %v1883
      %1897 = vmatprep.subr.bf16.mxu0 0
      %1898 = vmatpush1.bf16.msra.mxu0 %v1882
      %1899 = vmatprep.subr.bf16.mxu0 0
      %1900 = vmatpush1.bf16.msra.mxu0 %v1881
      %1901 = vmatprep.subr.bf16.mxu0 0
      %1902 = vmatpush1.bf16.msra.mxu0 %v1880
      %1903 = vmatprep.subr.bf16.mxu0 0
      %1904 = vmatpush1.bf16.msra.mxu0 %v1879
      %1905 = vmatprep.subr.bf16.mxu0 0
      %1906 = vmatpush1.bf16.msra.mxu0 %v1878
      %1907 = vmatprep.subr.bf16.mxu0 0
      %1908 = vmatpush1.bf16.msra.mxu0 %v1877
      %1909 = vmatprep.subr.bf16.mxu0 0
      %1910 = vmatpush2.bf16.msra.mxu0 0
      %1911 = vmatprep.subr.bf16.mxu0 0
      %1912 = vmatpush2.bf16.msra.mxu0 0
      %1913 = vmatprep.subr.bf16.mxu0 0
      %1914 = vmatpush2.bf16.msra.mxu0 0
      %1915 = vmatprep.subr.bf16.mxu0 0
      %1916 = vmatpush2.bf16.msra.mxu0 0
      %1917 = vmatprep.subr.bf16.mxu0 0
      %1918 = vmatpush2.bf16.msra.mxu0 0
      %1919 = vmatprep.subr.bf16.mxu0 0
      %1920 = vmatpush2.bf16.msra.mxu0 0
      %1921 = vmatprep.subr.bf16.mxu0 0
      %1922 = vmatpush2.bf16.msra.mxu0 0
      %1923 = vmatprep.subr.bf16.mxu0 0
      %1924 = vmatpush2.bf16.msra.mxu0 0
      %1925 = vmatprep.mubr.bf16.mxu0 0
      %1926 = vmatmul.mubr.bf16.gmra.mxu0 %v1843
      %v1927 = vpop.f32.mrf.mxu0
      %v1928 = vadd.f32 0.0, %v1927
      %v1929 = vpop.f32.mrf.mxu0
      %v1930 = vpop.f32.mrf.mxu0
      %v1931 = vadd.f32 0.0, %v1930
      %v1932 = vpop.f32.mrf.mxu0
      %1933 = vdwg.mxu0
      %v1934 = vadd.f32 %v1752, %v1928
      %v1935 = vadd.f32 %v1753, %v1931
      %v1936 = vadd.f32 %v1934, %v1935
      %v1937 = vrot.slane %v1936, 4
      %v1938 = vadd.f32 %v1936, %v1937
      %v1939 = vrot.slane %v1938, 2
      %v1940 = vadd.f32 %v1938, %v1939
      %v1941 = vrot.slane %v1940, 1
      %v1942 = vadd.f32 %v1940, %v1941
      %v1943 = vmul.f32 %v1934, %v1934
      %v1944 = vmul.f32 %v1935, %v1935
      %v1945 = vadd.f32 %v1943, %v1944
      %v1946 = vrot.slane %v1945, 4
      %v1947 = vadd.f32 %v1945, %v1946
      %v1948 = vrot.slane %v1947, 2
      %v1949 = vadd.f32 %v1947, %v1948
      %v1950 = vrot.slane %v1949, 1
      %v1951 = vadd.f32 %v1949, %v1950
      %v1952 = vmul.f32 %v1942, 0.0625
      %v1953 = vmul.f32 %v1951, 0.0625
      %v1954 = vmul.f32 %v1952, %v1952
      %v1955 = vsub.f32 %v1953, %v1954
      %v1956 = vmax.f32 %v1955, 0.0
      %v1957 = vsub.f32 %v1934, %v1952
      %v1958 = vsub.f32 %v1935, %v1952
      %v1959 = vadd.f32 %v1956, 1e-05
      %v1960 = vrsqrt.pop %v1959
      %v1961 = vmul.f32 %v1957, %v1960
      %v1962 = vmul.f32 %v1958, %v1960
      %v1963 = vld [vmem:[%s2] sm:$0x1]
      %v1965 = vlaneseq
      %v1966 = vshrl.u32 %v1965, 7
      %v1967 = vsub.s32 0, %v1966
      %v1968 = vrot.slane %v1963, %v1967
      %v1970 = vmul.f32 %v1961, %v1968
      %v1971 = vmul.f32 %v1962, %v1968
      %v1972 = vld [vmem:[%s3] sm:$0x1]
      %v1974 = vlaneseq
      %v1975 = vshrl.u32 %v1974, 7
      %v1976 = vsub.s32 0, %v1975
      %v1977 = vrot.slane %v1972, %v1976
      %v1979 = vadd.f32 %v1970, %v1977
      %v1980 = vadd.f32 %v1971, %v1977
      %vm1981 = vcmp.gt.f32.partialorder %v1979, 0.0
      %vm1982 = vcmp.gt.f32.partialorder %v1980, 0.0
      %v1983 = vmul.f32 %v1979, 0.01
      %v1984 = vmul.f32 %v1980, 0.01
      %v1985 = vsel %vm1981, %v1979, %v1983
      %v1986 = vsel %vm1982, %v1980, %v1984
      %1987 = vst [vmem:[#allocation3] sm:$0xf] %v1985
      %s1988 = scalar_lea.vmem [#allocation3], 4
      %1989 = vst [vmem:[%s1988 - $0x4] sm:$0xf0] %v1985
      %s1990 = scalar_lea.vmem [#allocation3], 8
      %1991 = vst [vmem:[%s1990] sm:$0xf] %v1986
      %s1992 = scalar_lea.vmem [#allocation3], 12
      %1993 = vst [vmem:[%s1992 - $0x4] sm:$0xf0] %v1986
      %v1994 = vld [vmem:[#allocation3] ss:$2 sm:$0x3]
      %s1995 = scalar_lea.vmem [#allocation3], 4
      %v1996 = vld [vmem:[%s1995] ss:$2 sm:$0x3]
      %s1997 = scalar_lea.vmem [#allocation3], 8
      %v1998 = vld [vmem:[%s1997] ss:$2 sm:$0x3]
      %s1999 = scalar_lea.vmem [#allocation3], 12
      %v2000 = vld [vmem:[%s1999] ss:$2 sm:$0x3]
      %s2001 = scalar_lea.vmem [#allocation3], 1
      %v2002 = vld [vmem:[%s2001] ss:$2 sm:$0x3]
      %s2003 = scalar_lea.vmem [#allocation3], 5
      %v2004 = vld [vmem:[%s2003] ss:$2 sm:$0x3]
      %s2005 = scalar_lea.vmem [#allocation3], 9
      %v2006 = vld [vmem:[%s2005] ss:$2 sm:$0x3]
      %s2007 = scalar_lea.vmem [#allocation3], 13
      %v2008 = vld [vmem:[%s2007] ss:$2 sm:$0x3]
      %v2009 = vadd.f32 %v1994, %v2002
      %v2010 = vadd.f32 %v1996, %v2004
      %v2011 = vadd.f32 %v1998, %v2006
      %v2012 = vadd.f32 %v2000, %v2008
      %v2013 = vadd.f32 %v2009, %v2010
      %v2014 = vadd.f32 %v2011, %v2012
      %v2015 = vmul.f32 %v2013, 0.25
      %v2016 = vmul.f32 %v2014, 0.25
      %v2017 = vpack.c.bf16 %v2015, %v2015
      %v2018 = vpack.c.bf16 %v2016, %v2016
      %2019 = vst [vmem:[%s195] sm:$0x1] %v2017
      %2020 = vst [vmem:[%s195 + $0x1] sm:$0x1] %v2018
      %p2021 = scmp.lt.s32.totalorder %s15, 1
      %s2022 = scalar_select %p2021, %s15, 1
      %s2023 = smul.addr %s2022, 2
      %s2024 = scalar_lea.vmem %s4, %s2023
      // Predicated region
      $region37: #{_lambda_.6} parent=35 // pred_check
        %p2025 = pneg %p122
      $region38: #{_lambda_.6} parent=35 // pred_check_branch
        %2027 = sbr.rel (%p2025) target = $region40
      $region39: #{_lambda_.6} parent=35 // pred_region
        _
      $region40: #{_lambda_.6} parent=35 // pred_fallthru
        _
    $region36: #{_lambda_.6} parent=5 // pred_fallthru
      _
    %p2028 = scmp.le.s32.totalorder 2, %s10
    // Predicated region
    $region41: #{_lambda_.6} parent=5 // pred_check
      %p2029 = pneg %p2028
    $region42: #{_lambda_.6} parent=5 // pred_check_branch
      %2031 = sbr.rel (%p2029) target = $region44
    $region43: #{_lambda_.6} parent=5 // pred_region
      %s2032 = ssub.s32 %s10, 2
      // Predicated region
      $region45: #{_lambda_.6} parent=43 // pred_check
        %p2033 = pneg %p128
      $region46: #{_lambda_.6} parent=43 // pred_check_branch
        %2035 = sbr.rel (%p2033) target = $region48
      $region47: #{_lambda_.6} parent=43 // pred_region
        %p2036 = scmp.lt.s32.totalorder %s16, 1
        %s2037 = scalar_select %p2036, %s16, 1
        %s2038 = smul.addr %s2037, 2
        %s2039 = scalar_lea.vmem %s4, %s2038
      $region48: #{_lambda_.6} parent=43 // pred_fallthru
        _
    $region44: #{_lambda_.6} parent=5 // pred_fallthru
      _
  $region6: #{_lambda_.6} parent=0 // loop_footer
    %s14 = sadd.s32 1, %s10
  $region7: #{_lambda_.6} parent=0 // loop_footer_branch
    %9 = sbr.rel target = $region3
  $region8: #{_lambda_.6} parent=0 // loop_exit
    _

</llo_original>
